<compile_context>
chip_gen: v5e
topology: v5e:2x2
jax: 0.10.0
libtpu: 0.0.40
codegen_flags: <defaults>
</compile_context>

<pallas_src>
import functools

import jax
import jax.numpy as jnp
from jax import lax
from jax.experimental import pallas as pl
from jax.experimental.pallas import tpu as pltpu


def _h_swish(v):
    return v * jnp.clip(v + 3.0, 0.0, 6.0) * (1.0 / 6.0)


def _attention_vectors(pooled, w1t_ref, b1_ref, wt_ref, b_ref):
    """pooled (C, L) -> sigmoid(conv(h_swish(conv1(pooled) [BN folded]))) : (oup, L)."""
    y = _h_swish(jnp.dot(w1t_ref[...], pooled,
                         preferred_element_type=jnp.float32) + b1_ref[...])
    return jax.nn.sigmoid(jnp.dot(wt_ref[...], y,
                                  preferred_element_type=jnp.float32) + b_ref[...])


# ---------------------------------------------------------------------------
# Fused single-pass kernel: whole image resident, x read from HBM once.
# ---------------------------------------------------------------------------
def _coordatt_fused_kernel(x_ref, w1t_ref, b1_ref, wht_ref, bh_ref,
                           wwt_ref, bw_ref, out_ref):
    x = x_ref[0].astype(jnp.float32)                      # (C, H, W)
    ph = jnp.mean(x, axis=2)                              # (C, H)  mean over W
    pw = jnp.mean(x, axis=1)                              # (C, W)  mean over H
    a_h = _attention_vectors(ph, w1t_ref, b1_ref, wht_ref, bh_ref)   # (oup, H)
    a_w = _attention_vectors(pw, w1t_ref, b1_ref, wwt_ref, bw_ref)   # (oup, W)
    out_ref[0] = (x * a_h[:, :, None] * a_w[:, None, :]).astype(out_ref.dtype)


# ---------------------------------------------------------------------------
# Two-pass tiled fallback.
# ---------------------------------------------------------------------------
def _coordatt_attn_kernel(inv_h,
                          x_ref, w1t_ref, b1_ref, wht_ref, bh_ref,
                          wwt_ref, bw_ref,
                          a_h_ref, a_w_ref, pw_acc):
    """Pass 1: grid (N, H_tiles); H_tiles is a reduction accumulating the
    over-H column pooling in VMEM. a_h for the tile's rows is produced
    immediately; a_w on the last tile."""
    t = pl.program_id(1)
    x = x_ref[0].astype(jnp.float32)                      # (C, TH, W)

    @pl.when(t == 0)
    def _():
        pw_acc[...] = jnp.zeros_like(pw_acc)

    pw_acc[...] += jnp.sum(x, axis=1)                     # (C, W)

    ph = jnp.mean(x, axis=2)                              # (C, TH)
    a_h_ref[0, 0] = _attention_vectors(ph, w1t_ref, b1_ref, wht_ref, bh_ref)

    @pl.when(t == pl.num_programs(1) - 1)
    def _():
        pw = pw_acc[...] * inv_h                          # mean over H
        a_w_ref[0] = _attention_vectors(pw, w1t_ref, b1_ref, wwt_ref, bw_ref)


def _coordatt_gate_kernel(x_ref, a_h_ref, a_w_ref, out_ref):
    """Pass 2: out = identity * a_h * a_w (fully parallel, DMA-bound)."""
    x = x_ref[0].astype(jnp.float32)                      # (C, TH, W)
    a_h = a_h_ref[0, 0]                                   # (C, TH)
    a_w = a_w_ref[0]                                      # (C, W)
    out_ref[0] = (x * a_h[:, :, None] * a_w[:, None, :]).astype(out_ref.dtype)


# ---------------------------------------------------------------------------
# Wrapper
# ---------------------------------------------------------------------------
def _tpu_vmem_capacity_bytes():
    try:
        info = pltpu.get_tpu_info()
        cap = int(getattr(info, "vmem_capacity_bytes", 0))
        if cap > 0:
            return cap
    except Exception:
        pass
    return 64 << 20                                       # conservative (v7x-sized)


def _pick_h_tile(H, row_bytes, max_block_bytes):
    """Largest TH that is a multiple of 8, divides H, and fits the budget."""
    best = None
    th = 8
    while th <= H:
        if H % th == 0 and th * row_bytes <= max_block_bytes:
            best = th
        th += 8
    if best is None:
        best = 8 if H % 8 == 0 else H                     # smallest legal tile / full H
    return best


def coordatt_forward(x_nchw, params, *, act_dtype=None, fuse=None, h_tile=None):
    N, C, H, W = x_nchw.shape
    mip, c_in = params['w1t'].shape
    oup = params['wht'].shape[0]
    assert c_in == C, f"param/input channel mismatch ({c_in} vs {C})"
    assert oup == C, "CoordAtt gating broadcasts over the identity: oup must equal inp"

    act_dtype = jnp.dtype(act_dtype or x_nchw.dtype)
    x = x_nchw.astype(act_dtype)                          # NCHW; no layout transpose
    itemsize = act_dtype.itemsize

    # Generation-aware VMEM budgeting (v7x: 64 MiB physical; v5e/v6e: 128 MiB).
    phys = _tpu_vmem_capacity_bytes()
    vmem_limit = max(32 << 20, min(int(phys * 0.75), 112 << 20))
    working_budget = min(vmem_limit // 2, 48 << 20)       # target for 2x(in)+2x(out)
    max_block_bytes = working_budget // 4

    def cparams(sem):
        return pltpu.CompilerParams(dimension_semantics=sem,
                                    vmem_limit_bytes=int(vmem_limit))

    w_args = (params['w1t'], params['b1'], params['wht'], params['bh'],
              params['wwt'], params['bw'])

    def full_spec(shape):
        return pl.BlockSpec(shape, lambda *_: (0,) * len(shape))

    w_specs = [full_spec(p.shape) for p in w_args]

    if fuse is None:
        fuse = 4 * C * H * W * itemsize + 2 * C * max(H, W) * 4 <= working_budget

    if fuse:
        # ---- Single fused pass: x read once, gated in place. ----
        return pl.pallas_call(
            _coordatt_fused_kernel,
            out_shape=jax.ShapeDtypeStruct((N, C, H, W), act_dtype),
            grid_spec=pltpu.PrefetchScalarGridSpec(
                num_scalar_prefetch=0,
                grid=(N,),
                in_specs=[pl.BlockSpec((1, C, H, W), lambda n: (n, 0, 0, 0))]
                         + w_specs,
                out_specs=pl.BlockSpec((1, C, H, W), lambda n: (n, 0, 0, 0)),
            ),
            compiler_params=cparams(("parallel",)),
            input_output_aliases={0: 0},
        )(x, *w_args)

    # ---- Two-pass tiled path ----
    row_bytes = C * W * itemsize
    TH = h_tile if h_tile is not None else _pick_h_tile(H, row_bytes, max_block_bytes)
    assert H % TH == 0 and (TH % 8 == 0 or TH == H), (H, TH)
    n_ht = H // TH

    a_h, a_w = pl.pallas_call(
        functools.partial(_coordatt_attn_kernel, 1.0 / H),
        out_shape=(jax.ShapeDtypeStruct((N, n_ht, oup, TH), jnp.float32),
                   jax.ShapeDtypeStruct((N, oup, W), jnp.float32)),
        grid_spec=pltpu.PrefetchScalarGridSpec(
            num_scalar_prefetch=0,
            grid=(N, n_ht),
            in_specs=[pl.BlockSpec((1, C, TH, W), lambda n, t: (n, 0, t, 0))]
                     + w_specs,
            out_specs=[pl.BlockSpec((1, 1, oup, TH), lambda n, t: (n, t, 0, 0)),
                       pl.BlockSpec((1, oup, W), lambda n, t: (n, 0, 0))],
            scratch_shapes=[pltpu.VMEM((C, W), jnp.float32)],
        ),
        compiler_params=cparams(("parallel", "arbitrary")),
    )(x, *w_args)

    return pl.pallas_call(
        _coordatt_gate_kernel,
        out_shape=jax.ShapeDtypeStruct((N, C, H, W), act_dtype),
        grid_spec=pltpu.PrefetchScalarGridSpec(
            num_scalar_prefetch=0,
            grid=(N, n_ht),
            in_specs=[pl.BlockSpec((1, C, TH, W), lambda n, t: (n, 0, t, 0)),
                      pl.BlockSpec((1, 1, oup, TH), lambda n, t: (n, t, 0, 0)),
                      pl.BlockSpec((1, oup, W), lambda n, t: (n, 0, 0))],
            out_specs=pl.BlockSpec((1, C, TH, W), lambda n, t: (n, 0, t, 0)),
        ),
        compiler_params=cparams(("parallel", "parallel")),
        input_output_aliases={0: 0},
    )(x, a_h, a_w)


# ---------------------------------------------------------------------------
# Params (BN folded, channel-major layout) and pure-JAX reference.
# ---------------------------------------------------------------------------
def init_params(key, inp, oup, reduction=32):
    mip = max(8, inp // reduction)
    k = jax.random.split(key, 10)

    w1 = jax.random.normal(k[0], (mip, inp)) / jnp.sqrt(float(inp))   # conv1 (out, in)
    cb1 = 0.1 * jax.random.normal(k[1], (mip,))
    gamma = 1.0 + 0.1 * jax.random.normal(k[2], (mip,))
    beta = 0.1 * jax.random.normal(k[3], (mip,))
    mean = 0.1 * jax.random.normal(k[4], (mip,))
    var = jax.random.uniform(k[5], (mip,), minval=0.5, maxval=1.5)
    scale = gamma * lax.rsqrt(var + 1e-5)

    return {
        'w1t': (w1 * scale[:, None]).astype(jnp.float32),             # (mip, inp)
        'b1': ((cb1 - mean) * scale + beta).reshape(mip, 1).astype(jnp.float32),
        'wht': (jax.random.normal(k[6], (oup, mip))
                / jnp.sqrt(float(mip))).astype(jnp.float32),
        'bh': (0.1 * jax.random.normal(k[7], (oup,))
               ).reshape(oup, 1).astype(jnp.float32),
        'wwt': (jax.random.normal(k[8], (oup, mip))
                / jnp.sqrt(float(mip))).astype(jnp.float32),
        'bw': (0.1 * jax.random.normal(k[9], (oup,))
               ).reshape(oup, 1).astype(jnp.float32),
    }


def coordatt_reference(x_nchw, params):
    """Pure-JAX reference mirroring the PyTorch forward (folded BN)."""
    x = x_nchw.astype(jnp.float32)
    ph = jnp.mean(x, axis=3)                              # (N, C, H)  pool over W
    pw = jnp.mean(x, axis=2)                              # (N, C, W)  pool over H

    def attn(p, wt, b):
        y = jnp.einsum('mc,nch->nmh', params['w1t'], p) + params['b1'][None]
        y = _h_swish(y)
        return jax.nn.sigmoid(jnp.einsum('om,nmh->noh', wt, y) + b[None])

    a_h = attn(ph, params['wht'], params['bh'])           # (N, oup, H)
    a_w = attn(pw, params['wwt'], params['bw'])           # (N, oup, W)
    return x * a_h[:, :, :, None] * a_w[:, :, None, :]


if __name__ == "__main__":
    key = jax.random.PRNGKey(0)
    kx, kp = jax.random.split(key)

    # Small demo shape: mip = max(8, 64 // 32) = 8; oup == inp as the module's
    # broadcasting requires.
    N, C, H, W = 2, 64, 16, 16
    x = jax.random.normal(kx, (N, C, H, W), dtype=jnp.float32)
    params = init_params(kp, C, C, reduction=32)

    ref = jax.block_until_ready(coordatt_reference(x, params))

    # 1) f32, fused single-pass path (image fits the VMEM budget).
    out = jax.block_until_ready(coordatt_forward(x, params, fuse=True))
    assert out.shape == (N, C, H, W), out.shape
    err = float(jnp.max(jnp.abs(out - ref)))
    assert jnp.allclose(out, ref, atol=5e-3, rtol=5e-3), err

    # 2) f32, forced two-pass tiled path (exercises the H reduction + gate).
    out_tiled = jax.block_until_ready(
        coordatt_forward(x, params, fuse=False, h_tile=8))
    err = float(jnp.max(jnp.abs(out_tiled - ref)))
    assert jnp.allclose(out_tiled, ref, atol=5e-3, rtol=5e-3), err

    # 3) bf16 activation path (half the DMA bytes; f32 math inside kernels).
    out_bf16 = jax.block_until_ready(
        coordatt_forward(x, params, act_dtype=jnp.bfloat16, fuse=True))
    assert out_bf16.dtype == jnp.bfloat16
    err = float(jnp.max(jnp.abs(out_bf16.astype(jnp.float32) - ref)))
    assert jnp.allclose(out_bf16.astype(jnp.float32), ref, atol=5e-2, rtol=5e-2), err

    print("KERNEL_OK")
</pallas_src>

<mosaic_0001>
module attributes {stable_mosaic.version = 11 : i64} {
  func.func @_coordatt_fused_kernel(%arg0: i32, %arg1: memref<1x64x16x16xf32, #tpu.memory_space<vmem>>, %arg2: memref<8x64xf32, #tpu.memory_space<vmem>>, %arg3: memref<8x1xf32, #tpu.memory_space<vmem>>, %arg4: memref<64x8xf32, #tpu.memory_space<vmem>>, %arg5: memref<64x1xf32, #tpu.memory_space<vmem>>, %arg6: memref<64x8xf32, #tpu.memory_space<vmem>>, %arg7: memref<64x1xf32, #tpu.memory_space<vmem>>, %arg8: memref<1x64x16x16xf32, #tpu.memory_space<vmem>>) attributes {dimension_semantics = [#tpu.dimension_semantics<parallel>], iteration_bounds = array<i64: 2>, scalar_prefetch = 0 : i64, scratch_operands = 0 : i64, tpu.core_type = #tpu.core_type<tc>, window_params = [{transform_indices = @transform_0, window_bounds = array<i64: 1, 64, 16, 16>}, {pipeline_mode = #tpu.pipeline_mode<synchronous>, transform_indices = @transform_1, window_bounds = array<i64: 8, 64>}, {pipeline_mode = #tpu.pipeline_mode<synchronous>, transform_indices = @transform_2, window_bounds = array<i64: 8, 1>}, {pipeline_mode = #tpu.pipeline_mode<synchronous>, transform_indices = @transform_3, window_bounds = array<i64: 64, 8>}, {pipeline_mode = #tpu.pipeline_mode<synchronous>, transform_indices = @transform_4, window_bounds = array<i64: 64, 1>}, {pipeline_mode = #tpu.pipeline_mode<synchronous>, transform_indices = @transform_5, window_bounds = array<i64: 64, 8>}, {pipeline_mode = #tpu.pipeline_mode<synchronous>, transform_indices = @transform_6, window_bounds = array<i64: 64, 1>}, {transform_indices = @transform_7, window_bounds = array<i64: 1, 64, 16, 16>}]} {
    %c0 = arith.constant 0 : index
    %c0_0 = arith.constant 0 : index
    %c0_1 = arith.constant 0 : index
    %c0_2 = arith.constant 0 : index
    %0 = vector.load %arg1[%c0, %c0_0, %c0_1, %c0_2] : memref<1x64x16x16xf32, #tpu.memory_space<vmem>>, vector<1x64x16x16xf32>
    %1 = vector.shape_cast %0 : vector<1x64x16x16xf32> to vector<64x16x16xf32>
    %cst = arith.constant dense<0.000000e+00> : vector<64x16xf32>
    %2 = vector.multi_reduction <add>, %1, %cst [2] : vector<64x16x16xf32> to vector<64x16xf32>
    %cst_3 = arith.constant 1.600000e+01 : f32
    %3 = vector.broadcast %cst_3 : f32 to vector<64x16xf32>
    %4 = arith.divf %2, %3 : vector<64x16xf32>
    %cst_4 = arith.constant dense<0.000000e+00> : vector<64x16xf32>
    %5 = vector.multi_reduction <add>, %1, %cst_4 [1] : vector<64x16x16xf32> to vector<64x16xf32>
    %cst_5 = arith.constant 1.600000e+01 : f32
    %6 = vector.broadcast %cst_5 : f32 to vector<64x16xf32>
    %7 = arith.divf %5, %6 : vector<64x16xf32>
    %c0_6 = arith.constant 0 : index
    %c0_7 = arith.constant 0 : index
    %8 = vector.load %arg2[%c0_6, %c0_7] : memref<8x64xf32, #tpu.memory_space<vmem>>, vector<8x64xf32>
    %cst_8 = arith.constant dense<0.000000e+00> : vector<8x16xf32>
    %9 = tpu.matmul %8, %4, %cst_8 {dimension_numbers = #tpu.dot_dimension_numbers<[1], [0], [0], [1], [0, 0, 1, 1], [], []>} : vector<8x64xf32>, vector<64x16xf32>, vector<8x16xf32> -> vector<8x16xf32>
    %c0_9 = arith.constant 0 : index
    %c0_10 = arith.constant 0 : index
    %10 = vector.load %arg3[%c0_9, %c0_10] : memref<8x1xf32, #tpu.memory_space<vmem>>, vector<8x1xf32>
    %11 = vector.broadcast %10 : vector<8x1xf32> to vector<8x16xf32>
    %12 = arith.addf %9, %11 : vector<8x16xf32>
    %cst_11 = arith.constant 3.000000e+00 : f32
    %13 = vector.broadcast %cst_11 : f32 to vector<8x16xf32>
    %14 = arith.addf %12, %13 : vector<8x16xf32>
    %cst_12 = arith.constant 0.000000e+00 : f32
    %cst_13 = arith.constant 6.000000e+00 : f32
    %15 = vector.broadcast %cst_12 : f32 to vector<8x16xf32>
    %16 = arith.maximumf %15, %14 : vector<8x16xf32>
    %17 = vector.broadcast %cst_13 : f32 to vector<8x16xf32>
    %18 = arith.minimumf %17, %16 : vector<8x16xf32>
    %19 = arith.mulf %12, %18 : vector<8x16xf32>
    %cst_14 = arith.constant 0.166666672 : f32
    %20 = vector.broadcast %cst_14 : f32 to vector<8x16xf32>
    %21 = arith.mulf %19, %20 : vector<8x16xf32>
    %c0_15 = arith.constant 0 : index
    %c0_16 = arith.constant 0 : index
    %22 = vector.load %arg4[%c0_15, %c0_16] : memref<64x8xf32, #tpu.memory_space<vmem>>, vector<64x8xf32>
    %cst_17 = arith.constant dense<0.000000e+00> : vector<64x16xf32>
    %23 = tpu.matmul %22, %21, %cst_17 {dimension_numbers = #tpu.dot_dimension_numbers<[1], [0], [0], [1], [0, 0, 1, 1], [], []>} : vector<64x8xf32>, vector<8x16xf32>, vector<64x16xf32> -> vector<64x16xf32>
    %c0_18 = arith.constant 0 : index
    %c0_19 = arith.constant 0 : index
    %24 = vector.load %arg5[%c0_18, %c0_19] : memref<64x1xf32, #tpu.memory_space<vmem>>, vector<64x1xf32>
    %25 = vector.broadcast %24 : vector<64x1xf32> to vector<64x16xf32>
    %26 = arith.addf %23, %25 : vector<64x16xf32>
    %27 = arith.negf %26 : vector<64x16xf32>
    %28 = math.exp %27 : vector<64x16xf32>
    %cst_20 = arith.constant 1.000000e+00 : f32
    %29 = vector.broadcast %cst_20 : f32 to vector<64x16xf32>
    %30 = arith.addf %29, %28 : vector<64x16xf32>
    %31 = arith.divf %29, %30 : vector<64x16xf32>
    %c0_21 = arith.constant 0 : index
    %c0_22 = arith.constant 0 : index
    %32 = vector.load %arg2[%c0_21, %c0_22] : memref<8x64xf32, #tpu.memory_space<vmem>>, vector<8x64xf32>
    %cst_23 = arith.constant dense<0.000000e+00> : vector<8x16xf32>
    %33 = tpu.matmul %32, %7, %cst_23 {dimension_numbers = #tpu.dot_dimension_numbers<[1], [0], [0], [1], [0, 0, 1, 1], [], []>} : vector<8x64xf32>, vector<64x16xf32>, vector<8x16xf32> -> vector<8x16xf32>
    %c0_24 = arith.constant 0 : index
    %c0_25 = arith.constant 0 : index
    %34 = vector.load %arg3[%c0_24, %c0_25] : memref<8x1xf32, #tpu.memory_space<vmem>>, vector<8x1xf32>
    %35 = vector.broadcast %34 : vector<8x1xf32> to vector<8x16xf32>
    %36 = arith.addf %33, %35 : vector<8x16xf32>
    %cst_26 = arith.constant 3.000000e+00 : f32
    %37 = vector.broadcast %cst_26 : f32 to vector<8x16xf32>
    %38 = arith.addf %36, %37 : vector<8x16xf32>
    %cst_27 = arith.constant 0.000000e+00 : f32
    %cst_28 = arith.constant 6.000000e+00 : f32
    %39 = vector.broadcast %cst_27 : f32 to vector<8x16xf32>
    %40 = arith.maximumf %39, %38 : vector<8x16xf32>
    %41 = vector.broadcast %cst_28 : f32 to vector<8x16xf32>
    %42 = arith.minimumf %41, %40 : vector<8x16xf32>
    %43 = arith.mulf %36, %42 : vector<8x16xf32>
    %cst_29 = arith.constant 0.166666672 : f32
    %44 = vector.broadcast %cst_29 : f32 to vector<8x16xf32>
    %45 = arith.mulf %43, %44 : vector<8x16xf32>
    %c0_30 = arith.constant 0 : index
    %c0_31 = arith.constant 0 : index
    %46 = vector.load %arg6[%c0_30, %c0_31] : memref<64x8xf32, #tpu.memory_space<vmem>>, vector<64x8xf32>
    %cst_32 = arith.constant dense<0.000000e+00> : vector<64x16xf32>
    %47 = tpu.matmul %46, %45, %cst_32 {dimension_numbers = #tpu.dot_dimension_numbers<[1], [0], [0], [1], [0, 0, 1, 1], [], []>} : vector<64x8xf32>, vector<8x16xf32>, vector<64x16xf32> -> vector<64x16xf32>
    %c0_33 = arith.constant 0 : index
    %c0_34 = arith.constant 0 : index
    %48 = vector.load %arg7[%c0_33, %c0_34] : memref<64x1xf32, #tpu.memory_space<vmem>>, vector<64x1xf32>
    %49 = vector.broadcast %48 : vector<64x1xf32> to vector<64x16xf32>
    %50 = arith.addf %47, %49 : vector<64x16xf32>
    %51 = arith.negf %50 : vector<64x16xf32>
    %52 = math.exp %51 : vector<64x16xf32>
    %cst_35 = arith.constant 1.000000e+00 : f32
    %53 = vector.broadcast %cst_35 : f32 to vector<64x16xf32>
    %54 = arith.addf %53, %52 : vector<64x16xf32>
    %55 = arith.divf %53, %54 : vector<64x16xf32>
    %56 = vector.shape_cast %31 : vector<64x16xf32> to vector<64x16x1xf32>
    %57 = vector.broadcast %56 : vector<64x16x1xf32> to vector<64x16x16xf32>
    %58 = arith.mulf %1, %57 : vector<64x16x16xf32>
    %59 = vector.shape_cast %55 : vector<64x16xf32> to vector<64x1x16xf32>
    %60 = vector.broadcast %59 : vector<64x1x16xf32> to vector<64x16x16xf32>
    %61 = arith.mulf %58, %60 : vector<64x16x16xf32>
    %c0_36 = arith.constant 0 : index
    %c0_37 = arith.constant 0 : index
    %c0_38 = arith.constant 0 : index
    %c0_39 = arith.constant 0 : index
    %62 = vector.load %arg8[%c0_36, %c0_37, %c0_38, %c0_39] : memref<1x64x16x16xf32, #tpu.memory_space<vmem>>, vector<1x64x16x16xf32>
    %63 = vector.shape_cast %62 : vector<1x64x16x16xf32> to vector<64x16x16xf32>
    %64 = vector.shape_cast %61 : vector<64x16x16xf32> to vector<1x64x16x16xf32>
    tpu.vector_store %arg8[%c0_36, %c0_37, %c0_38, %c0_39], %64 {strides = array<i32>} : memref<1x64x16x16xf32, #tpu.memory_space<vmem>>, vector<1x64x16x16xf32>,
    return
  }
  func.func @transform_0(%arg0: i32) -> (i32, i32, i32, i32) {
    %c0_i32 = arith.constant 0 : i32
    %c0_i32_0 = arith.constant 0 : i32
    %c0_i32_1 = arith.constant 0 : i32
    %c0_i32_2 = arith.constant 0 : i32
    return %arg0, %c0_i32, %c0_i32_0, %c0_i32_1 : i32, i32, i32, i32
  }
  func.func @transform_1(%arg0: i32) -> (i32, i32) {
    %c0_i32 = arith.constant 0 : i32
    %c0_i32_0 = arith.constant 0 : i32
    %c0_i32_1 = arith.constant 0 : i32
    return %c0_i32, %c0_i32_0 : i32, i32
  }
  func.func @transform_2(%arg0: i32) -> (i32, i32) {
    %c0_i32 = arith.constant 0 : i32
    %c0_i32_0 = arith.constant 0 : i32
    %c0_i32_1 = arith.constant 0 : i32
    return %c0_i32, %c0_i32_0 : i32, i32
  }
  func.func @transform_3(%arg0: i32) -> (i32, i32) {
    %c0_i32 = arith.constant 0 : i32
    %c0_i32_0 = arith.constant 0 : i32
    %c0_i32_1 = arith.constant 0 : i32
    return %c0_i32, %c0_i32_0 : i32, i32
  }
  func.func @transform_4(%arg0: i32) -> (i32, i32) {
    %c0_i32 = arith.constant 0 : i32
    %c0_i32_0 = arith.constant 0 : i32
    %c0_i32_1 = arith.constant 0 : i32
    return %c0_i32, %c0_i32_0 : i32, i32
  }
  func.func @transform_5(%arg0: i32) -> (i32, i32) {
    %c0_i32 = arith.constant 0 : i32
    %c0_i32_0 = arith.constant 0 : i32
    %c0_i32_1 = arith.constant 0 : i32
    return %c0_i32, %c0_i32_0 : i32, i32
  }
  func.func @transform_6(%arg0: i32) -> (i32, i32) {
    %c0_i32 = arith.constant 0 : i32
    %c0_i32_0 = arith.constant 0 : i32
    %c0_i32_1 = arith.constant 0 : i32
    return %c0_i32, %c0_i32_0 : i32, i32
  }
  func.func @transform_7(%arg0: i32) -> (i32, i32, i32, i32) {
    %c0_i32 = arith.constant 0 : i32
    %c0_i32_0 = arith.constant 0 : i32
    %c0_i32_1 = arith.constant 0 : i32
    %c0_i32_2 = arith.constant 0 : i32
    return %arg0, %c0_i32, %c0_i32_0, %c0_i32_1 : i32, i32, i32, i32
  }
}

</mosaic_0001>

<llo_original>
// kernel: tpu_custom_call.1
$region0: #{tpu_custom_call.1}
  #allocation0 [shape = 'u32[]', space=smem, size = 0x4, offset = 0x4, fixed_abs, tag = 'smem constant byte address 0x4 - core index']
  #allocation1 [shape = 'u32[72,128]{1,0:T(1,128)}', space=vmem, size = 0x9000, scoped, tag = 'internal scratch']
  %s0 = inlined_call_operand.vmem [shape: f32[2,64,16,16], index: 0, kind: input, shape index: {}, may-alias: {0,7}]
  %s1 = inlined_call_operand.vmem [shape: f32[8,64], index: 1, kind: input, shape index: {}]
  %s2 = inlined_call_operand.vmem [shape: f32[8,1], index: 2, kind: input, shape index: {}]
  %s3 = inlined_call_operand.vmem [shape: f32[64,8], index: 3, kind: input, shape index: {}]
  %s4 = inlined_call_operand.vmem [shape: f32[64,1], index: 4, kind: input, shape index: {}]
  %s5 = inlined_call_operand.vmem [shape: f32[64,8], index: 5, kind: input, shape index: {}]
  %s6 = inlined_call_operand.vmem [shape: f32[64,1], index: 6, kind: input, shape index: {}]
  %s7 = inlined_call_operand.vmem [shape: f32[2,64,16,16], index: 7, kind: output, shape index: {}, may-alias: {0,7}]
  %s8 = sld [smem:[#allocation0]]
  $region61: #{tpu_custom_call.1} parent=0
    _
  %s10 = ssub.s32 1, %s8
  %s11 = scalar_select 0, %s10, %s8
  loop: start=0, step=1, limit=4
  $region2: #{tpu_custom_call.1} parent=0 // loop_pre_header
    _
  $region3: #{tpu_custom_call.1} parent=0 // loop_header
    %s13 = sphi 0, %s17
    %p14 = scmp.ge.s32.totalorder %s13, 4
    %s23 = sphi 0, %s25
    %s26 = sphi 0, %s23
    %s27 = sphi 0, %s26
    %s43 = sphi 0, %s27
    %s47 = sphi 0, %s47
    %s49 = sphi 0, %s47
    %s50 = sphi 0, %s49
    %s64 = sphi 0, %s50
    %s68 = sphi 0, %s68
    %s70 = sphi 0, %s68
    %s71 = sphi 0, %s70
    %s85 = sphi 0, %s71
    %s89 = sphi 0, %s89
    %s91 = sphi 0, %s89
    %s92 = sphi 0, %s91
    %s106 = sphi 0, %s92
    %s110 = sphi 0, %s110
    %s112 = sphi 0, %s110
    %s113 = sphi 0, %s112
    %s127 = sphi 0, %s113
    %s131 = sphi 0, %s131
    %s133 = sphi 0, %s131
    %s134 = sphi 0, %s133
    %s148 = sphi 0, %s134
    %s152 = sphi 0, %s152
    %s154 = sphi 0, %s152
    %s155 = sphi 0, %s154
    %s169 = sphi 0, %s155
    %s175 = sphi 0, %s177
    %s178 = sphi 0, %s175
    %s179 = sphi 0, %s178
    %s195 = sphi 0, %s179
  $region4: #{tpu_custom_call.1} parent=0 // loop_header_branch
    %16 = sbr.rel (%p14) target = $region8
  $region5: #{tpu_custom_call.1} parent=0 // loop_body
    %s18 = ssub.s32 %s13, 1
    %s19 = ssub.s32 %s13, 2
    %s20 = sadd.s32 %s13, 1
    %s21 = ssub.s32 %s13, %s20
    %p22 = scmp.eq.s32.totalorder %s21, 0
    %s24 = sadd.s32 %s23, 1
    %s25 = scalar_select %p22, %s23, %s24
    %p28 = pneg %p22
    %p29 = scmp.eq.s32.totalorder %s13, 1
    %p30 = por %p28, %p29
    %p31 = scmp.ne.s32.totalorder %s23, %s26
    %p32 = scmp.eq.s32.totalorder %s13, 0
    %p33 = por %p31, %p32
    %p34 = scmp.ne.s32.totalorder %s23, %s26
    %p35 = scmp.eq.s32.totalorder %s18, 1
    %p36 = por %p34, %p35
    %p37 = scmp.ne.s32.totalorder %s26, %s27
    %p38 = scmp.eq.s32.totalorder %s18, 0
    %p39 = por %p37, %p38
    %p40 = scmp.ne.s32.totalorder %s26, %s27
    %p41 = scmp.eq.s32.totalorder %s19, 1
    %p42 = por %p40, %p41
    %p44 = scmp.ne.s32.totalorder %s27, %s43
    %p45 = scmp.eq.s32.totalorder %s19, 0
    %p46 = por %p44, %p45
    %s48 = sadd.s32 %s47, 1
    %p51 = scmp.eq.s32.totalorder %s13, 1
    %p52 = scmp.ne.s32.totalorder %s47, %s49
    %p53 = scmp.eq.s32.totalorder %s13, 0
    %p54 = por %p52, %p53
    %p55 = scmp.ne.s32.totalorder %s47, %s49
    %p56 = scmp.eq.s32.totalorder %s18, 1
    %p57 = por %p55, %p56
    %p58 = scmp.ne.s32.totalorder %s49, %s50
    %p59 = scmp.eq.s32.totalorder %s18, 0
    %p60 = por %p58, %p59
    %p61 = scmp.ne.s32.totalorder %s49, %s50
    %p62 = scmp.eq.s32.totalorder %s19, 1
    %p63 = por %p61, %p62
    %p65 = scmp.ne.s32.totalorder %s50, %s64
    %p66 = scmp.eq.s32.totalorder %s19, 0
    %p67 = por %p65, %p66
    %s69 = sadd.s32 %s68, 1
    %p72 = scmp.eq.s32.totalorder %s13, 1
    %p73 = scmp.ne.s32.totalorder %s68, %s70
    %p74 = scmp.eq.s32.totalorder %s13, 0
    %p75 = por %p73, %p74
    %p76 = scmp.ne.s32.totalorder %s68, %s70
    %p77 = scmp.eq.s32.totalorder %s18, 1
    %p78 = por %p76, %p77
    %p79 = scmp.ne.s32.totalorder %s70, %s71
    %p80 = scmp.eq.s32.totalorder %s18, 0
    %p81 = por %p79, %p80
    %p82 = scmp.ne.s32.totalorder %s70, %s71
    %p83 = scmp.eq.s32.totalorder %s19, 1
    %p84 = por %p82, %p83
    %p86 = scmp.ne.s32.totalorder %s71, %s85
    %p87 = scmp.eq.s32.totalorder %s19, 0
    %p88 = por %p86, %p87
    %s90 = sadd.s32 %s89, 1
    %p93 = scmp.eq.s32.totalorder %s13, 1
    %p94 = scmp.ne.s32.totalorder %s89, %s91
    %p95 = scmp.eq.s32.totalorder %s13, 0
    %p96 = por %p94, %p95
    %p97 = scmp.ne.s32.totalorder %s89, %s91
    %p98 = scmp.eq.s32.totalorder %s18, 1
    %p99 = por %p97, %p98
    %p100 = scmp.ne.s32.totalorder %s91, %s92
    %p101 = scmp.eq.s32.totalorder %s18, 0
    %p102 = por %p100, %p101
    %p103 = scmp.ne.s32.totalorder %s91, %s92
    %p104 = scmp.eq.s32.totalorder %s19, 1
    %p105 = por %p103, %p104
    %p107 = scmp.ne.s32.totalorder %s92, %s106
    %p108 = scmp.eq.s32.totalorder %s19, 0
    %p109 = por %p107, %p108
    %s111 = sadd.s32 %s110, 1
    %p114 = scmp.eq.s32.totalorder %s13, 1
    %p115 = scmp.ne.s32.totalorder %s110, %s112
    %p116 = scmp.eq.s32.totalorder %s13, 0
    %p117 = por %p115, %p116
    %p118 = scmp.ne.s32.totalorder %s110, %s112
    %p119 = scmp.eq.s32.totalorder %s18, 1
    %p120 = por %p118, %p119
    %p121 = scmp.ne.s32.totalorder %s112, %s113
    %p122 = scmp.eq.s32.totalorder %s18, 0
    %p123 = por %p121, %p122
    %p124 = scmp.ne.s32.totalorder %s112, %s113
    %p125 = scmp.eq.s32.totalorder %s19, 1
    %p126 = por %p124, %p125
    %p128 = scmp.ne.s32.totalorder %s113, %s127
    %p129 = scmp.eq.s32.totalorder %s19, 0
    %p130 = por %p128, %p129
    %s132 = sadd.s32 %s131, 1
    %p135 = scmp.eq.s32.totalorder %s13, 1
    %p136 = scmp.ne.s32.totalorder %s131, %s133
    %p137 = scmp.eq.s32.totalorder %s13, 0
    %p138 = por %p136, %p137
    %p139 = scmp.ne.s32.totalorder %s131, %s133
    %p140 = scmp.eq.s32.totalorder %s18, 1
    %p141 = por %p139, %p140
    %p142 = scmp.ne.s32.totalorder %s133, %s134
    %p143 = scmp.eq.s32.totalorder %s18, 0
    %p144 = por %p142, %p143
    %p145 = scmp.ne.s32.totalorder %s133, %s134
    %p146 = scmp.eq.s32.totalorder %s19, 1
    %p147 = por %p145, %p146
    %p149 = scmp.ne.s32.totalorder %s134, %s148
    %p150 = scmp.eq.s32.totalorder %s19, 0
    %p151 = por %p149, %p150
    %s153 = sadd.s32 %s152, 1
    %p156 = scmp.eq.s32.totalorder %s13, 1
    %p157 = scmp.ne.s32.totalorder %s152, %s154
    %p158 = scmp.eq.s32.totalorder %s13, 0
    %p159 = por %p157, %p158
    %p160 = scmp.ne.s32.totalorder %s152, %s154
    %p161 = scmp.eq.s32.totalorder %s18, 1
    %p162 = por %p160, %p161
    %p163 = scmp.ne.s32.totalorder %s154, %s155
    %p164 = scmp.eq.s32.totalorder %s18, 0
    %p165 = por %p163, %p164
    %p166 = scmp.ne.s32.totalorder %s154, %s155
    %p167 = scmp.eq.s32.totalorder %s19, 1
    %p168 = por %p166, %p167
    %p170 = scmp.ne.s32.totalorder %s155, %s169
    %p171 = scmp.eq.s32.totalorder %s19, 0
    %p172 = por %p170, %p171
    %s173 = ssub.s32 %s13, %s20
    %p174 = scmp.eq.s32.totalorder %s173, 0
    %s176 = sadd.s32 %s175, 1
    %s177 = scalar_select %p174, %s175, %s176
    %p180 = pneg %p174
    %p181 = scmp.eq.s32.totalorder %s13, 1
    %p182 = por %p180, %p181
    %p183 = scmp.ne.s32.totalorder %s175, %s178
    %p184 = scmp.eq.s32.totalorder %s13, 0
    %p185 = por %p183, %p184
    %p186 = scmp.ne.s32.totalorder %s175, %s178
    %p187 = scmp.eq.s32.totalorder %s18, 1
    %p188 = por %p186, %p187
    %p189 = scmp.ne.s32.totalorder %s178, %s179
    %p190 = scmp.eq.s32.totalorder %s18, 0
    %p191 = por %p189, %p190
    %p192 = scmp.ne.s32.totalorder %s178, %s179
    %p193 = scmp.eq.s32.totalorder %s19, 1
    %p194 = por %p192, %p193
    %p196 = scmp.ne.s32.totalorder %s179, %s195
    %p197 = scmp.eq.s32.totalorder %s19, 0
    %p198 = por %p196, %p197
    %p199 = scmp.le.s32.totalorder 1, %s13
    %p200 = scmp.lt.s32.totalorder %s13, 3
    %p201 = pnand %p199, %p200
    %p202 = pneg %p201
    // Predicated region
    $region9: #{tpu_custom_call.1} parent=5 // pred_check
      _
    $region10: #{tpu_custom_call.1} parent=5 // pred_check_branch
      %204 = sbr.rel (%p201) target = $region12
    $region11: #{tpu_custom_call.1} parent=5 // pred_region
      %s205 = ssub.s32 %s13, 1
      // Predicated region
      $region13: #{tpu_custom_call.1} parent=11 // pred_check
        %p206 = pneg %p60
      $region14: #{tpu_custom_call.1} parent=11 // pred_check_branch
        %208 = sbr.rel (%p206) target = $region16
      $region15: #{tpu_custom_call.1} parent=11 // pred_region
        _
      $region16: #{tpu_custom_call.1} parent=11 // pred_fallthru
        _
      // Predicated region
      $region17: #{tpu_custom_call.1} parent=11 // pred_check
        %p209 = pneg %p81
      $region18: #{tpu_custom_call.1} parent=11 // pred_check_branch
        %211 = sbr.rel (%p209) target = $region20
      $region19: #{tpu_custom_call.1} parent=11 // pred_region
        _
      $region20: #{tpu_custom_call.1} parent=11 // pred_fallthru
        _
      // Predicated region
      $region21: #{tpu_custom_call.1} parent=11 // pred_check
        %p212 = pneg %p102
      $region22: #{tpu_custom_call.1} parent=11 // pred_check_branch
        %214 = sbr.rel (%p212) target = $region24
      $region23: #{tpu_custom_call.1} parent=11 // pred_region
        _
      $region24: #{tpu_custom_call.1} parent=11 // pred_fallthru
        _
      // Predicated region
      $region25: #{tpu_custom_call.1} parent=11 // pred_check
        %p215 = pneg %p123
      $region26: #{tpu_custom_call.1} parent=11 // pred_check_branch
        %217 = sbr.rel (%p215) target = $region28
      $region27: #{tpu_custom_call.1} parent=11 // pred_region
        _
      $region28: #{tpu_custom_call.1} parent=11 // pred_fallthru
        _
      // Predicated region
      $region29: #{tpu_custom_call.1} parent=11 // pred_check
        %p218 = pneg %p144
      $region30: #{tpu_custom_call.1} parent=11 // pred_check_branch
        %220 = sbr.rel (%p218) target = $region32
      $region31: #{tpu_custom_call.1} parent=11 // pred_region
        _
      $region32: #{tpu_custom_call.1} parent=11 // pred_fallthru
        _
      // Predicated region
      $region33: #{tpu_custom_call.1} parent=11 // pred_check
        %p221 = pneg %p165
      $region34: #{tpu_custom_call.1} parent=11 // pred_check_branch
        %223 = sbr.rel (%p221) target = $region36
      $region35: #{tpu_custom_call.1} parent=11 // pred_region
        _
      $region36: #{tpu_custom_call.1} parent=11 // pred_fallthru
        _
    $region12: #{tpu_custom_call.1} parent=5 // pred_fallthru
      _
    %p224 = scmp.lt.s32.totalorder %s13, 2
    // Predicated region
    $region37: #{tpu_custom_call.1} parent=5 // pred_check
      %p225 = pneg %p224
    $region38: #{tpu_custom_call.1} parent=5 // pred_check_branch
      %227 = sbr.rel (%p225) target = $region40
    $region39: #{tpu_custom_call.1} parent=5 // pred_region
      // Predicated region
      $region41: #{tpu_custom_call.1} parent=39 // pred_check
        %p228 = pneg %p33
      $region42: #{tpu_custom_call.1} parent=39 // pred_check_branch
        %230 = sbr.rel (%p228) target = $region44
      $region43: #{tpu_custom_call.1} parent=39 // pred_region
        %p231 = scmp.lt.s32.totalorder %s13, 1
        %s232 = scalar_select %p231, %s13, 1
        %s233 = smul.addr %s232, 128
        %s234 = smul.addr %s233, 8
        %s235 = scalar_lea.vmem %s0, %s234
      $region44: #{tpu_custom_call.1} parent=39 // pred_fallthru
        _
    $region40: #{tpu_custom_call.1} parent=5 // pred_fallthru
      _
    %p236 = scmp.le.s32.totalorder 1, %s13
    %p237 = scmp.lt.s32.totalorder %s13, 3
    %p238 = pnand %p236, %p237
    %p239 = pneg %p238
    // Predicated region
    $region45: #{tpu_custom_call.1} parent=5 // pred_check
      _
    $region46: #{tpu_custom_call.1} parent=5 // pred_check_branch
      %241 = sbr.rel (%p238) target = $region48
    $region47: #{tpu_custom_call.1} parent=5 // pred_region
      %s242 = ssub.s32 %s13, 1
      %p243 = scmp.lt.s32.totalorder %s18, 1
      %s244 = scalar_select %p243, %s18, 1
      %s245 = smul.addr %s244, 128
      %s246 = smul.addr %s245, 8
      %s247 = scalar_lea.vmem %s0, %s246
      %p248 = pneg %p39
      %p249 = pneg %p36
      %p250 = pneg %p60
      %p251 = pneg %p57
      %p252 = pneg %p81
      %p253 = pneg %p78
      %p254 = pneg %p102
      %p255 = pneg %p99
      %p256 = pneg %p123
      %p257 = pneg %p120
      %p258 = pneg %p144
      %p259 = pneg %p141
      %p260 = pneg %p165
      %p261 = pneg %p162
      %p262 = pneg %p191
      %p263 = pneg %p188
      %p264 = scmp.lt.s32.totalorder %s18, 1
      %s265 = scalar_select %p264, %s18, 1
      %s266 = smul.addr %s265, 128
      %s267 = smul.addr %s266, 8
      %s268 = scalar_lea.vmem %s7, %s267
      %p269 = scmp.lt.s32.totalorder %s18, 1
      %s270 = scalar_select %p269, %s18, 1
      %s271 = smul.addr %s270, 128
      %s272 = smul.addr %s271, 8
      %s273 = scalar_lea.vmem %s0, %s272
      %p274 = scmp.lt.s32.totalorder %s18, 1
      %s275 = scalar_select %p274, %s18, 1
      %s276 = smul.addr %s275, 128
      %s277 = smul.addr %s276, 8
      %s278 = scalar_lea.vmem %s7, %s277
      %v279 = vld [vmem:[%s273] sm:$0xff]
      %v280 = vld [vmem:[%s273 + $0x8] sm:$0xff]
      %v281 = vld [vmem:[%s273 + $0x10] sm:$0xff]
      %v282 = vld [vmem:[%s273 + $0x18] sm:$0xff]
      %v283 = vld [vmem:[%s273 + $0x20] sm:$0xff]
      %v284 = vld [vmem:[%s273 + $0x28] sm:$0xff]
      %v285 = vld [vmem:[%s273 + $0x30] sm:$0xff]
      %v286 = vld [vmem:[%s273 + $0x38] sm:$0xff]
      %v287 = vld [vmem:[%s273 + $0x40] sm:$0xff]
      %v288 = vld [vmem:[%s273 + $0x48] sm:$0xff]
      %v289 = vld [vmem:[%s273 + $0x50] sm:$0xff]
      %v290 = vld [vmem:[%s273 + $0x58] sm:$0xff]
      %v291 = vld [vmem:[%s273 + $0x60] sm:$0xff]
      %v292 = vld [vmem:[%s273 + $0x68] sm:$0xff]
      %v293 = vld [vmem:[%s273 + $0x70] sm:$0xff]
      %v294 = vld [vmem:[%s273 + $0x78] sm:$0xff]
      %v295 = vld [vmem:[%s273 + $0x80] sm:$0xff]
      %v296 = vld [vmem:[%s273 + $0x88] sm:$0xff]
      %v297 = vld [vmem:[%s273 + $0x90] sm:$0xff]
      %v298 = vld [vmem:[%s273 + $0x98] sm:$0xff]
      %v299 = vld [vmem:[%s273 + $0xa0] sm:$0xff]
      %v300 = vld [vmem:[%s273 + $0xa8] sm:$0xff]
      %v301 = vld [vmem:[%s273 + $0xb0] sm:$0xff]
      %v302 = vld [vmem:[%s273 + $0xb8] sm:$0xff]
      %v303 = vld [vmem:[%s273 + $0xc0] sm:$0xff]
      %v304 = vld [vmem:[%s273 + $0xc8] sm:$0xff]
      %v305 = vld [vmem:[%s273 + $0xd0] sm:$0xff]
      %v306 = vld [vmem:[%s273 + $0xd8] sm:$0xff]
      %v307 = vld [vmem:[%s273 + $0xe0] sm:$0xff]
      %v308 = vld [vmem:[%s273 + $0xe8] sm:$0xff]
      %v309 = vld [vmem:[%s273 + $0xf0] sm:$0xff]
      %v310 = vld [vmem:[%s273 + $0xf8] sm:$0xff]
      %v311 = vld [vmem:[%s273 + $0x100] sm:$0xff]
      %v312 = vld [vmem:[%s273 + $0x108] sm:$0xff]
      %v313 = vld [vmem:[%s273 + $0x110] sm:$0xff]
      %v314 = vld [vmem:[%s273 + $0x118] sm:$0xff]
      %v315 = vld [vmem:[%s273 + $0x120] sm:$0xff]
      %v316 = vld [vmem:[%s273 + $0x128] sm:$0xff]
      %v317 = vld [vmem:[%s273 + $0x130] sm:$0xff]
      %v318 = vld [vmem:[%s273 + $0x138] sm:$0xff]
      %v319 = vld [vmem:[%s273 + $0x140] sm:$0xff]
      %v320 = vld [vmem:[%s273 + $0x148] sm:$0xff]
      %v321 = vld [vmem:[%s273 + $0x150] sm:$0xff]
      %v322 = vld [vmem:[%s273 + $0x158] sm:$0xff]
      %v323 = vld [vmem:[%s273 + $0x160] sm:$0xff]
      %v324 = vld [vmem:[%s273 + $0x168] sm:$0xff]
      %v325 = vld [vmem:[%s273 + $0x170] sm:$0xff]
      %v326 = vld [vmem:[%s273 + $0x178] sm:$0xff]
      %v327 = vld [vmem:[%s273 + $0x180] sm:$0xff]
      %v328 = vld [vmem:[%s273 + $0x188] sm:$0xff]
      %v329 = vld [vmem:[%s273 + $0x190] sm:$0xff]
      %v330 = vld [vmem:[%s273 + $0x198] sm:$0xff]
      %v331 = vld [vmem:[%s273 + $0x1a0] sm:$0xff]
      %v332 = vld [vmem:[%s273 + $0x1a8] sm:$0xff]
      %v333 = vld [vmem:[%s273 + $0x1b0] sm:$0xff]
      %v334 = vld [vmem:[%s273 + $0x1b8] sm:$0xff]
      %v335 = vld [vmem:[%s273 + $0x1c0] sm:$0xff]
      %v336 = vld [vmem:[%s273 + $0x1c8] sm:$0xff]
      %v337 = vld [vmem:[%s273 + $0x1d0] sm:$0xff]
      %v338 = vld [vmem:[%s273 + $0x1d8] sm:$0xff]
      %v339 = vld [vmem:[%s273 + $0x1e0] sm:$0xff]
      %v340 = vld [vmem:[%s273 + $0x1e8] sm:$0xff]
      %v341 = vld [vmem:[%s273 + $0x1f0] sm:$0xff]
      %v342 = vld [vmem:[%s273 + $0x1f8] sm:$0xff]
      %v343 = vld [vmem:[%s273 + $0x200] sm:$0xff]
      %v344 = vld [vmem:[%s273 + $0x208] sm:$0xff]
      %v345 = vld [vmem:[%s273 + $0x210] sm:$0xff]
      %v346 = vld [vmem:[%s273 + $0x218] sm:$0xff]
      %v347 = vld [vmem:[%s273 + $0x220] sm:$0xff]
      %v348 = vld [vmem:[%s273 + $0x228] sm:$0xff]
      %v349 = vld [vmem:[%s273 + $0x230] sm:$0xff]
      %v350 = vld [vmem:[%s273 + $0x238] sm:$0xff]
      %v351 = vld [vmem:[%s273 + $0x240] sm:$0xff]
      %v352 = vld [vmem:[%s273 + $0x248] sm:$0xff]
      %v353 = vld [vmem:[%s273 + $0x250] sm:$0xff]
      %v354 = vld [vmem:[%s273 + $0x258] sm:$0xff]
      %v355 = vld [vmem:[%s273 + $0x260] sm:$0xff]
      %v356 = vld [vmem:[%s273 + $0x268] sm:$0xff]
      %v357 = vld [vmem:[%s273 + $0x270] sm:$0xff]
      %v358 = vld [vmem:[%s273 + $0x278] sm:$0xff]
      %v359 = vld [vmem:[%s273 + $0x280] sm:$0xff]
      %v360 = vld [vmem:[%s273 + $0x288] sm:$0xff]
      %v361 = vld [vmem:[%s273 + $0x290] sm:$0xff]
      %v362 = vld [vmem:[%s273 + $0x298] sm:$0xff]
      %v363 = vld [vmem:[%s273 + $0x2a0] sm:$0xff]
      %v364 = vld [vmem:[%s273 + $0x2a8] sm:$0xff]
      %v365 = vld [vmem:[%s273 + $0x2b0] sm:$0xff]
      %v366 = vld [vmem:[%s273 + $0x2b8] sm:$0xff]
      %v367 = vld [vmem:[%s273 + $0x2c0] sm:$0xff]
      %v368 = vld [vmem:[%s273 + $0x2c8] sm:$0xff]
      %v369 = vld [vmem:[%s273 + $0x2d0] sm:$0xff]
      %v370 = vld [vmem:[%s273 + $0x2d8] sm:$0xff]
      %v371 = vld [vmem:[%s273 + $0x2e0] sm:$0xff]
      %v372 = vld [vmem:[%s273 + $0x2e8] sm:$0xff]
      %v373 = vld [vmem:[%s273 + $0x2f0] sm:$0xff]
      %v374 = vld [vmem:[%s273 + $0x2f8] sm:$0xff]
      %v375 = vld [vmem:[%s273 + $0x300] sm:$0xff]
      %v376 = vld [vmem:[%s273 + $0x308] sm:$0xff]
      %v377 = vld [vmem:[%s273 + $0x310] sm:$0xff]
      %v378 = vld [vmem:[%s273 + $0x318] sm:$0xff]
      %v379 = vld [vmem:[%s273 + $0x320] sm:$0xff]
      %v380 = vld [vmem:[%s273 + $0x328] sm:$0xff]
      %v381 = vld [vmem:[%s273 + $0x330] sm:$0xff]
      %v382 = vld [vmem:[%s273 + $0x338] sm:$0xff]
      %v383 = vld [vmem:[%s273 + $0x340] sm:$0xff]
      %v384 = vld [vmem:[%s273 + $0x348] sm:$0xff]
      %v385 = vld [vmem:[%s273 + $0x350] sm:$0xff]
      %v386 = vld [vmem:[%s273 + $0x358] sm:$0xff]
      %v387 = vld [vmem:[%s273 + $0x360] sm:$0xff]
      %v388 = vld [vmem:[%s273 + $0x368] sm:$0xff]
      %v389 = vld [vmem:[%s273 + $0x370] sm:$0xff]
      %v390 = vld [vmem:[%s273 + $0x378] sm:$0xff]
      %v391 = vld [vmem:[%s273 + $0x380] sm:$0xff]
      %v392 = vld [vmem:[%s273 + $0x388] sm:$0xff]
      %v393 = vld [vmem:[%s273 + $0x390] sm:$0xff]
      %v394 = vld [vmem:[%s273 + $0x398] sm:$0xff]
      %v395 = vld [vmem:[%s273 + $0x3a0] sm:$0xff]
      %v396 = vld [vmem:[%s273 + $0x3a8] sm:$0xff]
      %v397 = vld [vmem:[%s273 + $0x3b0] sm:$0xff]
      %v398 = vld [vmem:[%s273 + $0x3b8] sm:$0xff]
      %v399 = vld [vmem:[%s273 + $0x3c0] sm:$0xff]
      %v400 = vld [vmem:[%s273 + $0x3c8] sm:$0xff]
      %v401 = vld [vmem:[%s273 + $0x3d0] sm:$0xff]
      %v402 = vld [vmem:[%s273 + $0x3d8] sm:$0xff]
      %v403 = vld [vmem:[%s273 + $0x3e0] sm:$0xff]
      %v404 = vld [vmem:[%s273 + $0x3e8] sm:$0xff]
      %v405 = vld [vmem:[%s273 + $0x3f0] sm:$0xff]
      %v406 = vld [vmem:[%s273 + $0x3f8] sm:$0xff]
      %vm407 = vcmask 130048
      %v408 = vsel %vm407, %v279, 0.0
      %409 = vadd.xlane.f32.xlu0 %v408
      %v410 = vpop.xlane.xlu0 %409
      %v411 = vsel %vm407, %v280, 0.0
      %412 = vadd.xlane.f32.xlu0 %v411
      %v413 = vpop.xlane.xlu0 %412
      %v414 = vsel %vm407, %v281, 0.0
      %415 = vadd.xlane.f32.xlu0 %v414
      %v416 = vpop.xlane.xlu0 %415
      %v417 = vsel %vm407, %v282, 0.0
      %418 = vadd.xlane.f32.xlu0 %v417
      %v419 = vpop.xlane.xlu0 %418
      %v420 = vsel %vm407, %v283, 0.0
      %421 = vadd.xlane.f32.xlu0 %v420
      %v422 = vpop.xlane.xlu0 %421
      %v423 = vsel %vm407, %v284, 0.0
      %424 = vadd.xlane.f32.xlu0 %v423
      %v425 = vpop.xlane.xlu0 %424
      %v426 = vsel %vm407, %v285, 0.0
      %427 = vadd.xlane.f32.xlu0 %v426
      %v428 = vpop.xlane.xlu0 %427
      %v429 = vsel %vm407, %v286, 0.0
      %430 = vadd.xlane.f32.xlu0 %v429
      %v431 = vpop.xlane.xlu0 %430
      %v432 = vsel %vm407, %v287, 0.0
      %433 = vadd.xlane.f32.xlu0 %v432
      %v434 = vpop.xlane.xlu0 %433
      %v435 = vsel %vm407, %v288, 0.0
      %436 = vadd.xlane.f32.xlu0 %v435
      %v437 = vpop.xlane.xlu0 %436
      %v438 = vsel %vm407, %v289, 0.0
      %439 = vadd.xlane.f32.xlu0 %v438
      %v440 = vpop.xlane.xlu0 %439
      %v441 = vsel %vm407, %v290, 0.0
      %442 = vadd.xlane.f32.xlu0 %v441
      %v443 = vpop.xlane.xlu0 %442
      %v444 = vsel %vm407, %v291, 0.0
      %445 = vadd.xlane.f32.xlu0 %v444
      %v446 = vpop.xlane.xlu0 %445
      %v447 = vsel %vm407, %v292, 0.0
      %448 = vadd.xlane.f32.xlu0 %v447
      %v449 = vpop.xlane.xlu0 %448
      %v450 = vsel %vm407, %v293, 0.0
      %451 = vadd.xlane.f32.xlu0 %v450
      %v452 = vpop.xlane.xlu0 %451
      %v453 = vsel %vm407, %v294, 0.0
      %454 = vadd.xlane.f32.xlu0 %v453
      %v455 = vpop.xlane.xlu0 %454
      %v456 = vsel %vm407, %v295, 0.0
      %457 = vadd.xlane.f32.xlu0 %v456
      %v458 = vpop.xlane.xlu0 %457
      %v459 = vsel %vm407, %v296, 0.0
      %460 = vadd.xlane.f32.xlu0 %v459
      %v461 = vpop.xlane.xlu0 %460
      %v462 = vsel %vm407, %v297, 0.0
      %463 = vadd.xlane.f32.xlu0 %v462
      %v464 = vpop.xlane.xlu0 %463
      %v465 = vsel %vm407, %v298, 0.0
      %466 = vadd.xlane.f32.xlu0 %v465
      %v467 = vpop.xlane.xlu0 %466
      %v468 = vsel %vm407, %v299, 0.0
      %469 = vadd.xlane.f32.xlu0 %v468
      %v470 = vpop.xlane.xlu0 %469
      %v471 = vsel %vm407, %v300, 0.0
      %472 = vadd.xlane.f32.xlu0 %v471
      %v473 = vpop.xlane.xlu0 %472
      %v474 = vsel %vm407, %v301, 0.0
      %475 = vadd.xlane.f32.xlu0 %v474
      %v476 = vpop.xlane.xlu0 %475
      %v477 = vsel %vm407, %v302, 0.0
      %478 = vadd.xlane.f32.xlu0 %v477
      %v479 = vpop.xlane.xlu0 %478
      %v480 = vsel %vm407, %v303, 0.0
      %481 = vadd.xlane.f32.xlu0 %v480
      %v482 = vpop.xlane.xlu0 %481
      %v483 = vsel %vm407, %v304, 0.0
      %484 = vadd.xlane.f32.xlu0 %v483
      %v485 = vpop.xlane.xlu0 %484
      %v486 = vsel %vm407, %v305, 0.0
      %487 = vadd.xlane.f32.xlu0 %v486
      %v488 = vpop.xlane.xlu0 %487
      %v489 = vsel %vm407, %v306, 0.0
      %490 = vadd.xlane.f32.xlu0 %v489
      %v491 = vpop.xlane.xlu0 %490
      %v492 = vsel %vm407, %v307, 0.0
      %493 = vadd.xlane.f32.xlu0 %v492
      %v494 = vpop.xlane.xlu0 %493
      %v495 = vsel %vm407, %v308, 0.0
      %496 = vadd.xlane.f32.xlu0 %v495
      %v497 = vpop.xlane.xlu0 %496
      %v498 = vsel %vm407, %v309, 0.0
      %499 = vadd.xlane.f32.xlu0 %v498
      %v500 = vpop.xlane.xlu0 %499
      %v501 = vsel %vm407, %v310, 0.0
      %502 = vadd.xlane.f32.xlu0 %v501
      %v503 = vpop.xlane.xlu0 %502
      %v504 = vsel %vm407, %v311, 0.0
      %505 = vadd.xlane.f32.xlu0 %v504
      %v506 = vpop.xlane.xlu0 %505
      %v507 = vsel %vm407, %v312, 0.0
      %508 = vadd.xlane.f32.xlu0 %v507
      %v509 = vpop.xlane.xlu0 %508
      %v510 = vsel %vm407, %v313, 0.0
      %511 = vadd.xlane.f32.xlu0 %v510
      %v512 = vpop.xlane.xlu0 %511
      %v513 = vsel %vm407, %v314, 0.0
      %514 = vadd.xlane.f32.xlu0 %v513
      %v515 = vpop.xlane.xlu0 %514
      %v516 = vsel %vm407, %v315, 0.0
      %517 = vadd.xlane.f32.xlu0 %v516
      %v518 = vpop.xlane.xlu0 %517
      %v519 = vsel %vm407, %v316, 0.0
      %520 = vadd.xlane.f32.xlu0 %v519
      %v521 = vpop.xlane.xlu0 %520
      %v522 = vsel %vm407, %v317, 0.0
      %523 = vadd.xlane.f32.xlu0 %v522
      %v524 = vpop.xlane.xlu0 %523
      %v525 = vsel %vm407, %v318, 0.0
      %526 = vadd.xlane.f32.xlu0 %v525
      %v527 = vpop.xlane.xlu0 %526
      %v528 = vsel %vm407, %v319, 0.0
      %529 = vadd.xlane.f32.xlu0 %v528
      %v530 = vpop.xlane.xlu0 %529
      %v531 = vsel %vm407, %v320, 0.0
      %532 = vadd.xlane.f32.xlu0 %v531
      %v533 = vpop.xlane.xlu0 %532
      %v534 = vsel %vm407, %v321, 0.0
      %535 = vadd.xlane.f32.xlu0 %v534
      %v536 = vpop.xlane.xlu0 %535
      %v537 = vsel %vm407, %v322, 0.0
      %538 = vadd.xlane.f32.xlu0 %v537
      %v539 = vpop.xlane.xlu0 %538
      %v540 = vsel %vm407, %v323, 0.0
      %541 = vadd.xlane.f32.xlu0 %v540
      %v542 = vpop.xlane.xlu0 %541
      %v543 = vsel %vm407, %v324, 0.0
      %544 = vadd.xlane.f32.xlu0 %v543
      %v545 = vpop.xlane.xlu0 %544
      %v546 = vsel %vm407, %v325, 0.0
      %547 = vadd.xlane.f32.xlu0 %v546
      %v548 = vpop.xlane.xlu0 %547
      %v549 = vsel %vm407, %v326, 0.0
      %550 = vadd.xlane.f32.xlu0 %v549
      %v551 = vpop.xlane.xlu0 %550
      %v552 = vsel %vm407, %v327, 0.0
      %553 = vadd.xlane.f32.xlu0 %v552
      %v554 = vpop.xlane.xlu0 %553
      %v555 = vsel %vm407, %v328, 0.0
      %556 = vadd.xlane.f32.xlu0 %v555
      %v557 = vpop.xlane.xlu0 %556
      %v558 = vsel %vm407, %v329, 0.0
      %559 = vadd.xlane.f32.xlu0 %v558
      %v560 = vpop.xlane.xlu0 %559
      %v561 = vsel %vm407, %v330, 0.0
      %562 = vadd.xlane.f32.xlu0 %v561
      %v563 = vpop.xlane.xlu0 %562
      %v564 = vsel %vm407, %v331, 0.0
      %565 = vadd.xlane.f32.xlu0 %v564
      %v566 = vpop.xlane.xlu0 %565
      %v567 = vsel %vm407, %v332, 0.0
      %568 = vadd.xlane.f32.xlu0 %v567
      %v569 = vpop.xlane.xlu0 %568
      %v570 = vsel %vm407, %v333, 0.0
      %571 = vadd.xlane.f32.xlu0 %v570
      %v572 = vpop.xlane.xlu0 %571
      %v573 = vsel %vm407, %v334, 0.0
      %574 = vadd.xlane.f32.xlu0 %v573
      %v575 = vpop.xlane.xlu0 %574
      %v576 = vsel %vm407, %v335, 0.0
      %577 = vadd.xlane.f32.xlu0 %v576
      %v578 = vpop.xlane.xlu0 %577
      %v579 = vsel %vm407, %v336, 0.0
      %580 = vadd.xlane.f32.xlu0 %v579
      %v581 = vpop.xlane.xlu0 %580
      %v582 = vsel %vm407, %v337, 0.0
      %583 = vadd.xlane.f32.xlu0 %v582
      %v584 = vpop.xlane.xlu0 %583
      %v585 = vsel %vm407, %v338, 0.0
      %586 = vadd.xlane.f32.xlu0 %v585
      %v587 = vpop.xlane.xlu0 %586
      %v588 = vsel %vm407, %v339, 0.0
      %589 = vadd.xlane.f32.xlu0 %v588
      %v590 = vpop.xlane.xlu0 %589
      %v591 = vsel %vm407, %v340, 0.0
      %592 = vadd.xlane.f32.xlu0 %v591
      %v593 = vpop.xlane.xlu0 %592
      %v594 = vsel %vm407, %v341, 0.0
      %595 = vadd.xlane.f32.xlu0 %v594
      %v596 = vpop.xlane.xlu0 %595
      %v597 = vsel %vm407, %v342, 0.0
      %598 = vadd.xlane.f32.xlu0 %v597
      %v599 = vpop.xlane.xlu0 %598
      %v600 = vsel %vm407, %v343, 0.0
      %601 = vadd.xlane.f32.xlu0 %v600
      %v602 = vpop.xlane.xlu0 %601
      %v603 = vsel %vm407, %v344, 0.0
      %604 = vadd.xlane.f32.xlu0 %v603
      %v605 = vpop.xlane.xlu0 %604
      %v606 = vsel %vm407, %v345, 0.0
      %607 = vadd.xlane.f32.xlu0 %v606
      %v608 = vpop.xlane.xlu0 %607
      %v609 = vsel %vm407, %v346, 0.0
      %610 = vadd.xlane.f32.xlu0 %v609
      %v611 = vpop.xlane.xlu0 %610
      %v612 = vsel %vm407, %v347, 0.0
      %613 = vadd.xlane.f32.xlu0 %v612
      %v614 = vpop.xlane.xlu0 %613
      %v615 = vsel %vm407, %v348, 0.0
      %616 = vadd.xlane.f32.xlu0 %v615
      %v617 = vpop.xlane.xlu0 %616
      %v618 = vsel %vm407, %v349, 0.0
      %619 = vadd.xlane.f32.xlu0 %v618
      %v620 = vpop.xlane.xlu0 %619
      %v621 = vsel %vm407, %v350, 0.0
      %622 = vadd.xlane.f32.xlu0 %v621
      %v623 = vpop.xlane.xlu0 %622
      %v624 = vsel %vm407, %v351, 0.0
      %625 = vadd.xlane.f32.xlu0 %v624
      %v626 = vpop.xlane.xlu0 %625
      %v627 = vsel %vm407, %v352, 0.0
      %628 = vadd.xlane.f32.xlu0 %v627
      %v629 = vpop.xlane.xlu0 %628
      %v630 = vsel %vm407, %v353, 0.0
      %631 = vadd.xlane.f32.xlu0 %v630
      %v632 = vpop.xlane.xlu0 %631
      %v633 = vsel %vm407, %v354, 0.0
      %634 = vadd.xlane.f32.xlu0 %v633
      %v635 = vpop.xlane.xlu0 %634
      %v636 = vsel %vm407, %v355, 0.0
      %637 = vadd.xlane.f32.xlu0 %v636
      %v638 = vpop.xlane.xlu0 %637
      %v639 = vsel %vm407, %v356, 0.0
      %640 = vadd.xlane.f32.xlu0 %v639
      %v641 = vpop.xlane.xlu0 %640
      %v642 = vsel %vm407, %v357, 0.0
      %643 = vadd.xlane.f32.xlu0 %v642
      %v644 = vpop.xlane.xlu0 %643
      %v645 = vsel %vm407, %v358, 0.0
      %646 = vadd.xlane.f32.xlu0 %v645
      %v647 = vpop.xlane.xlu0 %646
      %v648 = vsel %vm407, %v359, 0.0
      %649 = vadd.xlane.f32.xlu0 %v648
      %v650 = vpop.xlane.xlu0 %649
      %v651 = vsel %vm407, %v360, 0.0
      %652 = vadd.xlane.f32.xlu0 %v651
      %v653 = vpop.xlane.xlu0 %652
      %v654 = vsel %vm407, %v361, 0.0
      %655 = vadd.xlane.f32.xlu0 %v654
      %v656 = vpop.xlane.xlu0 %655
      %v657 = vsel %vm407, %v362, 0.0
      %658 = vadd.xlane.f32.xlu0 %v657
      %v659 = vpop.xlane.xlu0 %658
      %v660 = vsel %vm407, %v363, 0.0
      %661 = vadd.xlane.f32.xlu0 %v660
      %v662 = vpop.xlane.xlu0 %661
      %v663 = vsel %vm407, %v364, 0.0
      %664 = vadd.xlane.f32.xlu0 %v663
      %v665 = vpop.xlane.xlu0 %664
      %v666 = vsel %vm407, %v365, 0.0
      %667 = vadd.xlane.f32.xlu0 %v666
      %v668 = vpop.xlane.xlu0 %667
      %v669 = vsel %vm407, %v366, 0.0
      %670 = vadd.xlane.f32.xlu0 %v669
      %v671 = vpop.xlane.xlu0 %670
      %v672 = vsel %vm407, %v367, 0.0
      %673 = vadd.xlane.f32.xlu0 %v672
      %v674 = vpop.xlane.xlu0 %673
      %v675 = vsel %vm407, %v368, 0.0
      %676 = vadd.xlane.f32.xlu0 %v675
      %v677 = vpop.xlane.xlu0 %676
      %v678 = vsel %vm407, %v369, 0.0
      %679 = vadd.xlane.f32.xlu0 %v678
      %v680 = vpop.xlane.xlu0 %679
      %v681 = vsel %vm407, %v370, 0.0
      %682 = vadd.xlane.f32.xlu0 %v681
      %v683 = vpop.xlane.xlu0 %682
      %v684 = vsel %vm407, %v371, 0.0
      %685 = vadd.xlane.f32.xlu0 %v684
      %v686 = vpop.xlane.xlu0 %685
      %v687 = vsel %vm407, %v372, 0.0
      %688 = vadd.xlane.f32.xlu0 %v687
      %v689 = vpop.xlane.xlu0 %688
      %v690 = vsel %vm407, %v373, 0.0
      %691 = vadd.xlane.f32.xlu0 %v690
      %v692 = vpop.xlane.xlu0 %691
      %v693 = vsel %vm407, %v374, 0.0
      %694 = vadd.xlane.f32.xlu0 %v693
      %v695 = vpop.xlane.xlu0 %694
      %v696 = vsel %vm407, %v375, 0.0
      %697 = vadd.xlane.f32.xlu0 %v696
      %v698 = vpop.xlane.xlu0 %697
      %v699 = vsel %vm407, %v376, 0.0
      %700 = vadd.xlane.f32.xlu0 %v699
      %v701 = vpop.xlane.xlu0 %700
      %v702 = vsel %vm407, %v377, 0.0
      %703 = vadd.xlane.f32.xlu0 %v702
      %v704 = vpop.xlane.xlu0 %703
      %v705 = vsel %vm407, %v378, 0.0
      %706 = vadd.xlane.f32.xlu0 %v705
      %v707 = vpop.xlane.xlu0 %706
      %v708 = vsel %vm407, %v379, 0.0
      %709 = vadd.xlane.f32.xlu0 %v708
      %v710 = vpop.xlane.xlu0 %709
      %v711 = vsel %vm407, %v380, 0.0
      %712 = vadd.xlane.f32.xlu0 %v711
      %v713 = vpop.xlane.xlu0 %712
      %v714 = vsel %vm407, %v381, 0.0
      %715 = vadd.xlane.f32.xlu0 %v714
      %v716 = vpop.xlane.xlu0 %715
      %v717 = vsel %vm407, %v382, 0.0
      %718 = vadd.xlane.f32.xlu0 %v717
      %v719 = vpop.xlane.xlu0 %718
      %v720 = vsel %vm407, %v383, 0.0
      %721 = vadd.xlane.f32.xlu0 %v720
      %v722 = vpop.xlane.xlu0 %721
      %v723 = vsel %vm407, %v384, 0.0
      %724 = vadd.xlane.f32.xlu0 %v723
      %v725 = vpop.xlane.xlu0 %724
      %v726 = vsel %vm407, %v385, 0.0
      %727 = vadd.xlane.f32.xlu0 %v726
      %v728 = vpop.xlane.xlu0 %727
      %v729 = vsel %vm407, %v386, 0.0
      %730 = vadd.xlane.f32.xlu0 %v729
      %v731 = vpop.xlane.xlu0 %730
      %v732 = vsel %vm407, %v387, 0.0
      %733 = vadd.xlane.f32.xlu0 %v732
      %v734 = vpop.xlane.xlu0 %733
      %v735 = vsel %vm407, %v388, 0.0
      %736 = vadd.xlane.f32.xlu0 %v735
      %v737 = vpop.xlane.xlu0 %736
      %v738 = vsel %vm407, %v389, 0.0
      %739 = vadd.xlane.f32.xlu0 %v738
      %v740 = vpop.xlane.xlu0 %739
      %v741 = vsel %vm407, %v390, 0.0
      %742 = vadd.xlane.f32.xlu0 %v741
      %v743 = vpop.xlane.xlu0 %742
      %v744 = vsel %vm407, %v391, 0.0
      %745 = vadd.xlane.f32.xlu0 %v744
      %v746 = vpop.xlane.xlu0 %745
      %v747 = vsel %vm407, %v392, 0.0
      %748 = vadd.xlane.f32.xlu0 %v747
      %v749 = vpop.xlane.xlu0 %748
      %v750 = vsel %vm407, %v393, 0.0
      %751 = vadd.xlane.f32.xlu0 %v750
      %v752 = vpop.xlane.xlu0 %751
      %v753 = vsel %vm407, %v394, 0.0
      %754 = vadd.xlane.f32.xlu0 %v753
      %v755 = vpop.xlane.xlu0 %754
      %v756 = vsel %vm407, %v395, 0.0
      %757 = vadd.xlane.f32.xlu0 %v756
      %v758 = vpop.xlane.xlu0 %757
      %v759 = vsel %vm407, %v396, 0.0
      %760 = vadd.xlane.f32.xlu0 %v759
      %v761 = vpop.xlane.xlu0 %760
      %v762 = vsel %vm407, %v397, 0.0
      %763 = vadd.xlane.f32.xlu0 %v762
      %v764 = vpop.xlane.xlu0 %763
      %v765 = vsel %vm407, %v398, 0.0
      %766 = vadd.xlane.f32.xlu0 %v765
      %v767 = vpop.xlane.xlu0 %766
      %v768 = vsel %vm407, %v399, 0.0
      %769 = vadd.xlane.f32.xlu0 %v768
      %v770 = vpop.xlane.xlu0 %769
      %v771 = vsel %vm407, %v400, 0.0
      %772 = vadd.xlane.f32.xlu0 %v771
      %v773 = vpop.xlane.xlu0 %772
      %v774 = vsel %vm407, %v401, 0.0
      %775 = vadd.xlane.f32.xlu0 %v774
      %v776 = vpop.xlane.xlu0 %775
      %v777 = vsel %vm407, %v402, 0.0
      %778 = vadd.xlane.f32.xlu0 %v777
      %v779 = vpop.xlane.xlu0 %778
      %v780 = vsel %vm407, %v403, 0.0
      %781 = vadd.xlane.f32.xlu0 %v780
      %v782 = vpop.xlane.xlu0 %781
      %v783 = vsel %vm407, %v404, 0.0
      %784 = vadd.xlane.f32.xlu0 %v783
      %v785 = vpop.xlane.xlu0 %784
      %v786 = vsel %vm407, %v405, 0.0
      %787 = vadd.xlane.f32.xlu0 %v786
      %v788 = vpop.xlane.xlu0 %787
      %v789 = vsel %vm407, %v406, 0.0
      %790 = vadd.xlane.f32.xlu0 %v789
      %v791 = vpop.xlane.xlu0 %790
      %v792 = vrcp.pop 16.0
      %v793 = vmul.f32 16.0, %v792
      %v794 = vsub.f32 1.0, %v793
      %v795 = vmul.f32 %v792, %v794
      %v796 = vadd.f32 %v792, %v795
      %vm797 = vweird.f32 %v792
      %v798 = vsel %vm797, %v792, %v796
      %v799 = vmul.f32 %v410, %v798
      %v800 = vmul.f32 %v413, %v798
      %v801 = vmul.f32 %v416, %v798
      %v802 = vmul.f32 %v419, %v798
      %v803 = vmul.f32 %v422, %v798
      %v804 = vmul.f32 %v425, %v798
      %v805 = vmul.f32 %v428, %v798
      %v806 = vmul.f32 %v431, %v798
      %v807 = vmul.f32 %v434, %v798
      %v808 = vmul.f32 %v437, %v798
      %v809 = vmul.f32 %v440, %v798
      %v810 = vmul.f32 %v443, %v798
      %v811 = vmul.f32 %v446, %v798
      %v812 = vmul.f32 %v449, %v798
      %v813 = vmul.f32 %v452, %v798
      %v814 = vmul.f32 %v455, %v798
      %v815 = vmul.f32 %v458, %v798
      %v816 = vmul.f32 %v461, %v798
      %v817 = vmul.f32 %v464, %v798
      %v818 = vmul.f32 %v467, %v798
      %v819 = vmul.f32 %v470, %v798
      %v820 = vmul.f32 %v473, %v798
      %v821 = vmul.f32 %v476, %v798
      %v822 = vmul.f32 %v479, %v798
      %v823 = vmul.f32 %v482, %v798
      %v824 = vmul.f32 %v485, %v798
      %v825 = vmul.f32 %v488, %v798
      %v826 = vmul.f32 %v491, %v798
      %v827 = vmul.f32 %v494, %v798
      %v828 = vmul.f32 %v497, %v798
      %v829 = vmul.f32 %v500, %v798
      %v830 = vmul.f32 %v503, %v798
      %v831 = vmul.f32 %v506, %v798
      %v832 = vmul.f32 %v509, %v798
      %v833 = vmul.f32 %v512, %v798
      %v834 = vmul.f32 %v515, %v798
      %v835 = vmul.f32 %v518, %v798
      %v836 = vmul.f32 %v521, %v798
      %v837 = vmul.f32 %v524, %v798
      %v838 = vmul.f32 %v527, %v798
      %v839 = vmul.f32 %v530, %v798
      %v840 = vmul.f32 %v533, %v798
      %v841 = vmul.f32 %v536, %v798
      %v842 = vmul.f32 %v539, %v798
      %v843 = vmul.f32 %v542, %v798
      %v844 = vmul.f32 %v545, %v798
      %v845 = vmul.f32 %v548, %v798
      %v846 = vmul.f32 %v551, %v798
      %v847 = vmul.f32 %v554, %v798
      %v848 = vmul.f32 %v557, %v798
      %v849 = vmul.f32 %v560, %v798
      %v850 = vmul.f32 %v563, %v798
      %v851 = vmul.f32 %v566, %v798
      %v852 = vmul.f32 %v569, %v798
      %v853 = vmul.f32 %v572, %v798
      %v854 = vmul.f32 %v575, %v798
      %v855 = vmul.f32 %v578, %v798
      %v856 = vmul.f32 %v581, %v798
      %v857 = vmul.f32 %v584, %v798
      %v858 = vmul.f32 %v587, %v798
      %v859 = vmul.f32 %v590, %v798
      %v860 = vmul.f32 %v593, %v798
      %v861 = vmul.f32 %v596, %v798
      %v862 = vmul.f32 %v599, %v798
      %v863 = vmul.f32 %v602, %v798
      %v864 = vmul.f32 %v605, %v798
      %v865 = vmul.f32 %v608, %v798
      %v866 = vmul.f32 %v611, %v798
      %v867 = vmul.f32 %v614, %v798
      %v868 = vmul.f32 %v617, %v798
      %v869 = vmul.f32 %v620, %v798
      %v870 = vmul.f32 %v623, %v798
      %v871 = vmul.f32 %v626, %v798
      %v872 = vmul.f32 %v629, %v798
      %v873 = vmul.f32 %v632, %v798
      %v874 = vmul.f32 %v635, %v798
      %v875 = vmul.f32 %v638, %v798
      %v876 = vmul.f32 %v641, %v798
      %v877 = vmul.f32 %v644, %v798
      %v878 = vmul.f32 %v647, %v798
      %v879 = vmul.f32 %v650, %v798
      %v880 = vmul.f32 %v653, %v798
      %v881 = vmul.f32 %v656, %v798
      %v882 = vmul.f32 %v659, %v798
      %v883 = vmul.f32 %v662, %v798
      %v884 = vmul.f32 %v665, %v798
      %v885 = vmul.f32 %v668, %v798
      %v886 = vmul.f32 %v671, %v798
      %v887 = vmul.f32 %v674, %v798
      %v888 = vmul.f32 %v677, %v798
      %v889 = vmul.f32 %v680, %v798
      %v890 = vmul.f32 %v683, %v798
      %v891 = vmul.f32 %v686, %v798
      %v892 = vmul.f32 %v689, %v798
      %v893 = vmul.f32 %v692, %v798
      %v894 = vmul.f32 %v695, %v798
      %v895 = vmul.f32 %v698, %v798
      %v896 = vmul.f32 %v701, %v798
      %v897 = vmul.f32 %v704, %v798
      %v898 = vmul.f32 %v707, %v798
      %v899 = vmul.f32 %v710, %v798
      %v900 = vmul.f32 %v713, %v798
      %v901 = vmul.f32 %v716, %v798
      %v902 = vmul.f32 %v719, %v798
      %v903 = vmul.f32 %v722, %v798
      %v904 = vmul.f32 %v725, %v798
      %v905 = vmul.f32 %v728, %v798
      %v906 = vmul.f32 %v731, %v798
      %v907 = vmul.f32 %v734, %v798
      %v908 = vmul.f32 %v737, %v798
      %v909 = vmul.f32 %v740, %v798
      %v910 = vmul.f32 %v743, %v798
      %v911 = vmul.f32 %v746, %v798
      %v912 = vmul.f32 %v749, %v798
      %v913 = vmul.f32 %v752, %v798
      %v914 = vmul.f32 %v755, %v798
      %v915 = vmul.f32 %v758, %v798
      %v916 = vmul.f32 %v761, %v798
      %v917 = vmul.f32 %v764, %v798
      %v918 = vmul.f32 %v767, %v798
      %v919 = vmul.f32 %v770, %v798
      %v920 = vmul.f32 %v773, %v798
      %v921 = vmul.f32 %v776, %v798
      %v922 = vmul.f32 %v779, %v798
      %v923 = vmul.f32 %v782, %v798
      %v924 = vmul.f32 %v785, %v798
      %v925 = vmul.f32 %v788, %v798
      %v926 = vmul.f32 %v791, %v798
      %v927 = vadd.f32 %v408, %v411
      %v928 = vrot.slane %v927, 4
      %v929 = vadd.f32 %v927, %v928
      %v930 = vrot.slane %v929, 2
      %v931 = vadd.f32 %v929, %v930
      %v932 = vrot.slane %v931, 1
      %v933 = vadd.f32 %v931, %v932
      %v934 = vadd.f32 %v414, %v417
      %v935 = vrot.slane %v934, 4
      %v936 = vadd.f32 %v934, %v935
      %v937 = vrot.slane %v936, 2
      %v938 = vadd.f32 %v936, %v937
      %v939 = vrot.slane %v938, 1
      %v940 = vadd.f32 %v938, %v939
      %v941 = vadd.f32 %v420, %v423
      %v942 = vrot.slane %v941, 4
      %v943 = vadd.f32 %v941, %v942
      %v944 = vrot.slane %v943, 2
      %v945 = vadd.f32 %v943, %v944
      %v946 = vrot.slane %v945, 1
      %v947 = vadd.f32 %v945, %v946
      %v948 = vadd.f32 %v426, %v429
      %v949 = vrot.slane %v948, 4
      %v950 = vadd.f32 %v948, %v949
      %v951 = vrot.slane %v950, 2
      %v952 = vadd.f32 %v950, %v951
      %v953 = vrot.slane %v952, 1
      %v954 = vadd.f32 %v952, %v953
      %v955 = vadd.f32 %v432, %v435
      %v956 = vrot.slane %v955, 4
      %v957 = vadd.f32 %v955, %v956
      %v958 = vrot.slane %v957, 2
      %v959 = vadd.f32 %v957, %v958
      %v960 = vrot.slane %v959, 1
      %v961 = vadd.f32 %v959, %v960
      %v962 = vadd.f32 %v438, %v441
      %v963 = vrot.slane %v962, 4
      %v964 = vadd.f32 %v962, %v963
      %v965 = vrot.slane %v964, 2
      %v966 = vadd.f32 %v964, %v965
      %v967 = vrot.slane %v966, 1
      %v968 = vadd.f32 %v966, %v967
      %v969 = vadd.f32 %v444, %v447
      %v970 = vrot.slane %v969, 4
      %v971 = vadd.f32 %v969, %v970
      %v972 = vrot.slane %v971, 2
      %v973 = vadd.f32 %v971, %v972
      %v974 = vrot.slane %v973, 1
      %v975 = vadd.f32 %v973, %v974
      %v976 = vadd.f32 %v450, %v453
      %v977 = vrot.slane %v976, 4
      %v978 = vadd.f32 %v976, %v977
      %v979 = vrot.slane %v978, 2
      %v980 = vadd.f32 %v978, %v979
      %v981 = vrot.slane %v980, 1
      %v982 = vadd.f32 %v980, %v981
      %v983 = vadd.f32 %v456, %v459
      %v984 = vrot.slane %v983, 4
      %v985 = vadd.f32 %v983, %v984
      %v986 = vrot.slane %v985, 2
      %v987 = vadd.f32 %v985, %v986
      %v988 = vrot.slane %v987, 1
      %v989 = vadd.f32 %v987, %v988
      %v990 = vadd.f32 %v462, %v465
      %v991 = vrot.slane %v990, 4
      %v992 = vadd.f32 %v990, %v991
      %v993 = vrot.slane %v992, 2
      %v994 = vadd.f32 %v992, %v993
      %v995 = vrot.slane %v994, 1
      %v996 = vadd.f32 %v994, %v995
      %v997 = vadd.f32 %v468, %v471
      %v998 = vrot.slane %v997, 4
      %v999 = vadd.f32 %v997, %v998
      %v1000 = vrot.slane %v999, 2
      %v1001 = vadd.f32 %v999, %v1000
      %v1002 = vrot.slane %v1001, 1
      %v1003 = vadd.f32 %v1001, %v1002
      %v1004 = vadd.f32 %v474, %v477
      %v1005 = vrot.slane %v1004, 4
      %v1006 = vadd.f32 %v1004, %v1005
      %v1007 = vrot.slane %v1006, 2
      %v1008 = vadd.f32 %v1006, %v1007
      %v1009 = vrot.slane %v1008, 1
      %v1010 = vadd.f32 %v1008, %v1009
      %v1011 = vadd.f32 %v480, %v483
      %v1012 = vrot.slane %v1011, 4
      %v1013 = vadd.f32 %v1011, %v1012
      %v1014 = vrot.slane %v1013, 2
      %v1015 = vadd.f32 %v1013, %v1014
      %v1016 = vrot.slane %v1015, 1
      %v1017 = vadd.f32 %v1015, %v1016
      %v1018 = vadd.f32 %v486, %v489
      %v1019 = vrot.slane %v1018, 4
      %v1020 = vadd.f32 %v1018, %v1019
      %v1021 = vrot.slane %v1020, 2
      %v1022 = vadd.f32 %v1020, %v1021
      %v1023 = vrot.slane %v1022, 1
      %v1024 = vadd.f32 %v1022, %v1023
      %v1025 = vadd.f32 %v492, %v495
      %v1026 = vrot.slane %v1025, 4
      %v1027 = vadd.f32 %v1025, %v1026
      %v1028 = vrot.slane %v1027, 2
      %v1029 = vadd.f32 %v1027, %v1028
      %v1030 = vrot.slane %v1029, 1
      %v1031 = vadd.f32 %v1029, %v1030
      %v1032 = vadd.f32 %v498, %v501
      %v1033 = vrot.slane %v1032, 4
      %v1034 = vadd.f32 %v1032, %v1033
      %v1035 = vrot.slane %v1034, 2
      %v1036 = vadd.f32 %v1034, %v1035
      %v1037 = vrot.slane %v1036, 1
      %v1038 = vadd.f32 %v1036, %v1037
      %v1039 = vadd.f32 %v504, %v507
      %v1040 = vrot.slane %v1039, 4
      %v1041 = vadd.f32 %v1039, %v1040
      %v1042 = vrot.slane %v1041, 2
      %v1043 = vadd.f32 %v1041, %v1042
      %v1044 = vrot.slane %v1043, 1
      %v1045 = vadd.f32 %v1043, %v1044
      %v1046 = vadd.f32 %v510, %v513
      %v1047 = vrot.slane %v1046, 4
      %v1048 = vadd.f32 %v1046, %v1047
      %v1049 = vrot.slane %v1048, 2
      %v1050 = vadd.f32 %v1048, %v1049
      %v1051 = vrot.slane %v1050, 1
      %v1052 = vadd.f32 %v1050, %v1051
      %v1053 = vadd.f32 %v516, %v519
      %v1054 = vrot.slane %v1053, 4
      %v1055 = vadd.f32 %v1053, %v1054
      %v1056 = vrot.slane %v1055, 2
      %v1057 = vadd.f32 %v1055, %v1056
      %v1058 = vrot.slane %v1057, 1
      %v1059 = vadd.f32 %v1057, %v1058
      %v1060 = vadd.f32 %v522, %v525
      %v1061 = vrot.slane %v1060, 4
      %v1062 = vadd.f32 %v1060, %v1061
      %v1063 = vrot.slane %v1062, 2
      %v1064 = vadd.f32 %v1062, %v1063
      %v1065 = vrot.slane %v1064, 1
      %v1066 = vadd.f32 %v1064, %v1065
      %v1067 = vadd.f32 %v528, %v531
      %v1068 = vrot.slane %v1067, 4
      %v1069 = vadd.f32 %v1067, %v1068
      %v1070 = vrot.slane %v1069, 2
      %v1071 = vadd.f32 %v1069, %v1070
      %v1072 = vrot.slane %v1071, 1
      %v1073 = vadd.f32 %v1071, %v1072
      %v1074 = vadd.f32 %v534, %v537
      %v1075 = vrot.slane %v1074, 4
      %v1076 = vadd.f32 %v1074, %v1075
      %v1077 = vrot.slane %v1076, 2
      %v1078 = vadd.f32 %v1076, %v1077
      %v1079 = vrot.slane %v1078, 1
      %v1080 = vadd.f32 %v1078, %v1079
      %v1081 = vadd.f32 %v540, %v543
      %v1082 = vrot.slane %v1081, 4
      %v1083 = vadd.f32 %v1081, %v1082
      %v1084 = vrot.slane %v1083, 2
      %v1085 = vadd.f32 %v1083, %v1084
      %v1086 = vrot.slane %v1085, 1
      %v1087 = vadd.f32 %v1085, %v1086
      %v1088 = vadd.f32 %v546, %v549
      %v1089 = vrot.slane %v1088, 4
      %v1090 = vadd.f32 %v1088, %v1089
      %v1091 = vrot.slane %v1090, 2
      %v1092 = vadd.f32 %v1090, %v1091
      %v1093 = vrot.slane %v1092, 1
      %v1094 = vadd.f32 %v1092, %v1093
      %v1095 = vadd.f32 %v552, %v555
      %v1096 = vrot.slane %v1095, 4
      %v1097 = vadd.f32 %v1095, %v1096
      %v1098 = vrot.slane %v1097, 2
      %v1099 = vadd.f32 %v1097, %v1098
      %v1100 = vrot.slane %v1099, 1
      %v1101 = vadd.f32 %v1099, %v1100
      %v1102 = vadd.f32 %v558, %v561
      %v1103 = vrot.slane %v1102, 4
      %v1104 = vadd.f32 %v1102, %v1103
      %v1105 = vrot.slane %v1104, 2
      %v1106 = vadd.f32 %v1104, %v1105
      %v1107 = vrot.slane %v1106, 1
      %v1108 = vadd.f32 %v1106, %v1107
      %v1109 = vadd.f32 %v564, %v567
      %v1110 = vrot.slane %v1109, 4
      %v1111 = vadd.f32 %v1109, %v1110
      %v1112 = vrot.slane %v1111, 2
      %v1113 = vadd.f32 %v1111, %v1112
      %v1114 = vrot.slane %v1113, 1
      %v1115 = vadd.f32 %v1113, %v1114
      %v1116 = vadd.f32 %v570, %v573
      %v1117 = vrot.slane %v1116, 4
      %v1118 = vadd.f32 %v1116, %v1117
      %v1119 = vrot.slane %v1118, 2
      %v1120 = vadd.f32 %v1118, %v1119
      %v1121 = vrot.slane %v1120, 1
      %v1122 = vadd.f32 %v1120, %v1121
      %v1123 = vadd.f32 %v576, %v579
      %v1124 = vrot.slane %v1123, 4
      %v1125 = vadd.f32 %v1123, %v1124
      %v1126 = vrot.slane %v1125, 2
      %v1127 = vadd.f32 %v1125, %v1126
      %v1128 = vrot.slane %v1127, 1
      %v1129 = vadd.f32 %v1127, %v1128
      %v1130 = vadd.f32 %v582, %v585
      %v1131 = vrot.slane %v1130, 4
      %v1132 = vadd.f32 %v1130, %v1131
      %v1133 = vrot.slane %v1132, 2
      %v1134 = vadd.f32 %v1132, %v1133
      %v1135 = vrot.slane %v1134, 1
      %v1136 = vadd.f32 %v1134, %v1135
      %v1137 = vadd.f32 %v588, %v591
      %v1138 = vrot.slane %v1137, 4
      %v1139 = vadd.f32 %v1137, %v1138
      %v1140 = vrot.slane %v1139, 2
      %v1141 = vadd.f32 %v1139, %v1140
      %v1142 = vrot.slane %v1141, 1
      %v1143 = vadd.f32 %v1141, %v1142
      %v1144 = vadd.f32 %v594, %v597
      %v1145 = vrot.slane %v1144, 4
      %v1146 = vadd.f32 %v1144, %v1145
      %v1147 = vrot.slane %v1146, 2
      %v1148 = vadd.f32 %v1146, %v1147
      %v1149 = vrot.slane %v1148, 1
      %v1150 = vadd.f32 %v1148, %v1149
      %v1151 = vadd.f32 %v600, %v603
      %v1152 = vrot.slane %v1151, 4
      %v1153 = vadd.f32 %v1151, %v1152
      %v1154 = vrot.slane %v1153, 2
      %v1155 = vadd.f32 %v1153, %v1154
      %v1156 = vrot.slane %v1155, 1
      %v1157 = vadd.f32 %v1155, %v1156
      %v1158 = vadd.f32 %v606, %v609
      %v1159 = vrot.slane %v1158, 4
      %v1160 = vadd.f32 %v1158, %v1159
      %v1161 = vrot.slane %v1160, 2
      %v1162 = vadd.f32 %v1160, %v1161
      %v1163 = vrot.slane %v1162, 1
      %v1164 = vadd.f32 %v1162, %v1163
      %v1165 = vadd.f32 %v612, %v615
      %v1166 = vrot.slane %v1165, 4
      %v1167 = vadd.f32 %v1165, %v1166
      %v1168 = vrot.slane %v1167, 2
      %v1169 = vadd.f32 %v1167, %v1168
      %v1170 = vrot.slane %v1169, 1
      %v1171 = vadd.f32 %v1169, %v1170
      %v1172 = vadd.f32 %v618, %v621
      %v1173 = vrot.slane %v1172, 4
      %v1174 = vadd.f32 %v1172, %v1173
      %v1175 = vrot.slane %v1174, 2
      %v1176 = vadd.f32 %v1174, %v1175
      %v1177 = vrot.slane %v1176, 1
      %v1178 = vadd.f32 %v1176, %v1177
      %v1179 = vadd.f32 %v624, %v627
      %v1180 = vrot.slane %v1179, 4
      %v1181 = vadd.f32 %v1179, %v1180
      %v1182 = vrot.slane %v1181, 2
      %v1183 = vadd.f32 %v1181, %v1182
      %v1184 = vrot.slane %v1183, 1
      %v1185 = vadd.f32 %v1183, %v1184
      %v1186 = vadd.f32 %v630, %v633
      %v1187 = vrot.slane %v1186, 4
      %v1188 = vadd.f32 %v1186, %v1187
      %v1189 = vrot.slane %v1188, 2
      %v1190 = vadd.f32 %v1188, %v1189
      %v1191 = vrot.slane %v1190, 1
      %v1192 = vadd.f32 %v1190, %v1191
      %v1193 = vadd.f32 %v636, %v639
      %v1194 = vrot.slane %v1193, 4
      %v1195 = vadd.f32 %v1193, %v1194
      %v1196 = vrot.slane %v1195, 2
      %v1197 = vadd.f32 %v1195, %v1196
      %v1198 = vrot.slane %v1197, 1
      %v1199 = vadd.f32 %v1197, %v1198
      %v1200 = vadd.f32 %v642, %v645
      %v1201 = vrot.slane %v1200, 4
      %v1202 = vadd.f32 %v1200, %v1201
      %v1203 = vrot.slane %v1202, 2
      %v1204 = vadd.f32 %v1202, %v1203
      %v1205 = vrot.slane %v1204, 1
      %v1206 = vadd.f32 %v1204, %v1205
      %v1207 = vadd.f32 %v648, %v651
      %v1208 = vrot.slane %v1207, 4
      %v1209 = vadd.f32 %v1207, %v1208
      %v1210 = vrot.slane %v1209, 2
      %v1211 = vadd.f32 %v1209, %v1210
      %v1212 = vrot.slane %v1211, 1
      %v1213 = vadd.f32 %v1211, %v1212
      %v1214 = vadd.f32 %v654, %v657
      %v1215 = vrot.slane %v1214, 4
      %v1216 = vadd.f32 %v1214, %v1215
      %v1217 = vrot.slane %v1216, 2
      %v1218 = vadd.f32 %v1216, %v1217
      %v1219 = vrot.slane %v1218, 1
      %v1220 = vadd.f32 %v1218, %v1219
      %v1221 = vadd.f32 %v660, %v663
      %v1222 = vrot.slane %v1221, 4
      %v1223 = vadd.f32 %v1221, %v1222
      %v1224 = vrot.slane %v1223, 2
      %v1225 = vadd.f32 %v1223, %v1224
      %v1226 = vrot.slane %v1225, 1
      %v1227 = vadd.f32 %v1225, %v1226
      %v1228 = vadd.f32 %v666, %v669
      %v1229 = vrot.slane %v1228, 4
      %v1230 = vadd.f32 %v1228, %v1229
      %v1231 = vrot.slane %v1230, 2
      %v1232 = vadd.f32 %v1230, %v1231
      %v1233 = vrot.slane %v1232, 1
      %v1234 = vadd.f32 %v1232, %v1233
      %v1235 = vadd.f32 %v672, %v675
      %v1236 = vrot.slane %v1235, 4
      %v1237 = vadd.f32 %v1235, %v1236
      %v1238 = vrot.slane %v1237, 2
      %v1239 = vadd.f32 %v1237, %v1238
      %v1240 = vrot.slane %v1239, 1
      %v1241 = vadd.f32 %v1239, %v1240
      %v1242 = vadd.f32 %v678, %v681
      %v1243 = vrot.slane %v1242, 4
      %v1244 = vadd.f32 %v1242, %v1243
      %v1245 = vrot.slane %v1244, 2
      %v1246 = vadd.f32 %v1244, %v1245
      %v1247 = vrot.slane %v1246, 1
      %v1248 = vadd.f32 %v1246, %v1247
      %v1249 = vadd.f32 %v684, %v687
      %v1250 = vrot.slane %v1249, 4
      %v1251 = vadd.f32 %v1249, %v1250
      %v1252 = vrot.slane %v1251, 2
      %v1253 = vadd.f32 %v1251, %v1252
      %v1254 = vrot.slane %v1253, 1
      %v1255 = vadd.f32 %v1253, %v1254
      %v1256 = vadd.f32 %v690, %v693
      %v1257 = vrot.slane %v1256, 4
      %v1258 = vadd.f32 %v1256, %v1257
      %v1259 = vrot.slane %v1258, 2
      %v1260 = vadd.f32 %v1258, %v1259
      %v1261 = vrot.slane %v1260, 1
      %v1262 = vadd.f32 %v1260, %v1261
      %v1263 = vadd.f32 %v696, %v699
      %v1264 = vrot.slane %v1263, 4
      %v1265 = vadd.f32 %v1263, %v1264
      %v1266 = vrot.slane %v1265, 2
      %v1267 = vadd.f32 %v1265, %v1266
      %v1268 = vrot.slane %v1267, 1
      %v1269 = vadd.f32 %v1267, %v1268
      %v1270 = vadd.f32 %v702, %v705
      %v1271 = vrot.slane %v1270, 4
      %v1272 = vadd.f32 %v1270, %v1271
      %v1273 = vrot.slane %v1272, 2
      %v1274 = vadd.f32 %v1272, %v1273
      %v1275 = vrot.slane %v1274, 1
      %v1276 = vadd.f32 %v1274, %v1275
      %v1277 = vadd.f32 %v708, %v711
      %v1278 = vrot.slane %v1277, 4
      %v1279 = vadd.f32 %v1277, %v1278
      %v1280 = vrot.slane %v1279, 2
      %v1281 = vadd.f32 %v1279, %v1280
      %v1282 = vrot.slane %v1281, 1
      %v1283 = vadd.f32 %v1281, %v1282
      %v1284 = vadd.f32 %v714, %v717
      %v1285 = vrot.slane %v1284, 4
      %v1286 = vadd.f32 %v1284, %v1285
      %v1287 = vrot.slane %v1286, 2
      %v1288 = vadd.f32 %v1286, %v1287
      %v1289 = vrot.slane %v1288, 1
      %v1290 = vadd.f32 %v1288, %v1289
      %v1291 = vadd.f32 %v720, %v723
      %v1292 = vrot.slane %v1291, 4
      %v1293 = vadd.f32 %v1291, %v1292
      %v1294 = vrot.slane %v1293, 2
      %v1295 = vadd.f32 %v1293, %v1294
      %v1296 = vrot.slane %v1295, 1
      %v1297 = vadd.f32 %v1295, %v1296
      %v1298 = vadd.f32 %v726, %v729
      %v1299 = vrot.slane %v1298, 4
      %v1300 = vadd.f32 %v1298, %v1299
      %v1301 = vrot.slane %v1300, 2
      %v1302 = vadd.f32 %v1300, %v1301
      %v1303 = vrot.slane %v1302, 1
      %v1304 = vadd.f32 %v1302, %v1303
      %v1305 = vadd.f32 %v732, %v735
      %v1306 = vrot.slane %v1305, 4
      %v1307 = vadd.f32 %v1305, %v1306
      %v1308 = vrot.slane %v1307, 2
      %v1309 = vadd.f32 %v1307, %v1308
      %v1310 = vrot.slane %v1309, 1
      %v1311 = vadd.f32 %v1309, %v1310
      %v1312 = vadd.f32 %v738, %v741
      %v1313 = vrot.slane %v1312, 4
      %v1314 = vadd.f32 %v1312, %v1313
      %v1315 = vrot.slane %v1314, 2
      %v1316 = vadd.f32 %v1314, %v1315
      %v1317 = vrot.slane %v1316, 1
      %v1318 = vadd.f32 %v1316, %v1317
      %v1319 = vadd.f32 %v744, %v747
      %v1320 = vrot.slane %v1319, 4
      %v1321 = vadd.f32 %v1319, %v1320
      %v1322 = vrot.slane %v1321, 2
      %v1323 = vadd.f32 %v1321, %v1322
      %v1324 = vrot.slane %v1323, 1
      %v1325 = vadd.f32 %v1323, %v1324
      %v1326 = vadd.f32 %v750, %v753
      %v1327 = vrot.slane %v1326, 4
      %v1328 = vadd.f32 %v1326, %v1327
      %v1329 = vrot.slane %v1328, 2
      %v1330 = vadd.f32 %v1328, %v1329
      %v1331 = vrot.slane %v1330, 1
      %v1332 = vadd.f32 %v1330, %v1331
      %v1333 = vadd.f32 %v756, %v759
      %v1334 = vrot.slane %v1333, 4
      %v1335 = vadd.f32 %v1333, %v1334
      %v1336 = vrot.slane %v1335, 2
      %v1337 = vadd.f32 %v1335, %v1336
      %v1338 = vrot.slane %v1337, 1
      %v1339 = vadd.f32 %v1337, %v1338
      %v1340 = vadd.f32 %v762, %v765
      %v1341 = vrot.slane %v1340, 4
      %v1342 = vadd.f32 %v1340, %v1341
      %v1343 = vrot.slane %v1342, 2
      %v1344 = vadd.f32 %v1342, %v1343
      %v1345 = vrot.slane %v1344, 1
      %v1346 = vadd.f32 %v1344, %v1345
      %v1347 = vadd.f32 %v768, %v771
      %v1348 = vrot.slane %v1347, 4
      %v1349 = vadd.f32 %v1347, %v1348
      %v1350 = vrot.slane %v1349, 2
      %v1351 = vadd.f32 %v1349, %v1350
      %v1352 = vrot.slane %v1351, 1
      %v1353 = vadd.f32 %v1351, %v1352
      %v1354 = vadd.f32 %v774, %v777
      %v1355 = vrot.slane %v1354, 4
      %v1356 = vadd.f32 %v1354, %v1355
      %v1357 = vrot.slane %v1356, 2
      %v1358 = vadd.f32 %v1356, %v1357
      %v1359 = vrot.slane %v1358, 1
      %v1360 = vadd.f32 %v1358, %v1359
      %v1361 = vadd.f32 %v780, %v783
      %v1362 = vrot.slane %v1361, 4
      %v1363 = vadd.f32 %v1361, %v1362
      %v1364 = vrot.slane %v1363, 2
      %v1365 = vadd.f32 %v1363, %v1364
      %v1366 = vrot.slane %v1365, 1
      %v1367 = vadd.f32 %v1365, %v1366
      %v1368 = vadd.f32 %v786, %v789
      %v1369 = vrot.slane %v1368, 4
      %v1370 = vadd.f32 %v1368, %v1369
      %v1371 = vrot.slane %v1370, 2
      %v1372 = vadd.f32 %v1370, %v1371
      %v1373 = vrot.slane %v1372, 1
      %v1374 = vadd.f32 %v1372, %v1373
      %v1375 = vmul.f32 %v933, %v798
      %v1376 = vmul.f32 %v940, %v798
      %v1377 = vmul.f32 %v947, %v798
      %v1378 = vmul.f32 %v954, %v798
      %v1379 = vmul.f32 %v961, %v798
      %v1380 = vmul.f32 %v968, %v798
      %v1381 = vmul.f32 %v975, %v798
      %v1382 = vmul.f32 %v982, %v798
      %v1383 = vmul.f32 %v989, %v798
      %v1384 = vmul.f32 %v996, %v798
      %v1385 = vmul.f32 %v1003, %v798
      %v1386 = vmul.f32 %v1010, %v798
      %v1387 = vmul.f32 %v1017, %v798
      %v1388 = vmul.f32 %v1024, %v798
      %v1389 = vmul.f32 %v1031, %v798
      %v1390 = vmul.f32 %v1038, %v798
      %v1391 = vmul.f32 %v1045, %v798
      %v1392 = vmul.f32 %v1052, %v798
      %v1393 = vmul.f32 %v1059, %v798
      %v1394 = vmul.f32 %v1066, %v798
      %v1395 = vmul.f32 %v1073, %v798
      %v1396 = vmul.f32 %v1080, %v798
      %v1397 = vmul.f32 %v1087, %v798
      %v1398 = vmul.f32 %v1094, %v798
      %v1399 = vmul.f32 %v1101, %v798
      %v1400 = vmul.f32 %v1108, %v798
      %v1401 = vmul.f32 %v1115, %v798
      %v1402 = vmul.f32 %v1122, %v798
      %v1403 = vmul.f32 %v1129, %v798
      %v1404 = vmul.f32 %v1136, %v798
      %v1405 = vmul.f32 %v1143, %v798
      %v1406 = vmul.f32 %v1150, %v798
      %v1407 = vmul.f32 %v1157, %v798
      %v1408 = vmul.f32 %v1164, %v798
      %v1409 = vmul.f32 %v1171, %v798
      %v1410 = vmul.f32 %v1178, %v798
      %v1411 = vmul.f32 %v1185, %v798
      %v1412 = vmul.f32 %v1192, %v798
      %v1413 = vmul.f32 %v1199, %v798
      %v1414 = vmul.f32 %v1206, %v798
      %v1415 = vmul.f32 %v1213, %v798
      %v1416 = vmul.f32 %v1220, %v798
      %v1417 = vmul.f32 %v1227, %v798
      %v1418 = vmul.f32 %v1234, %v798
      %v1419 = vmul.f32 %v1241, %v798
      %v1420 = vmul.f32 %v1248, %v798
      %v1421 = vmul.f32 %v1255, %v798
      %v1422 = vmul.f32 %v1262, %v798
      %v1423 = vmul.f32 %v1269, %v798
      %v1424 = vmul.f32 %v1276, %v798
      %v1425 = vmul.f32 %v1283, %v798
      %v1426 = vmul.f32 %v1290, %v798
      %v1427 = vmul.f32 %v1297, %v798
      %v1428 = vmul.f32 %v1304, %v798
      %v1429 = vmul.f32 %v1311, %v798
      %v1430 = vmul.f32 %v1318, %v798
      %v1431 = vmul.f32 %v1325, %v798
      %v1432 = vmul.f32 %v1332, %v798
      %v1433 = vmul.f32 %v1339, %v798
      %v1434 = vmul.f32 %v1346, %v798
      %v1435 = vmul.f32 %v1353, %v798
      %v1436 = vmul.f32 %v1360, %v798
      %v1437 = vmul.f32 %v1367, %v798
      %v1438 = vmul.f32 %v1374, %v798
      %v1439 = vld [vmem:[%s1] sm:$0xff]
      %v1440 = vld [vmem:[%s2] sm:$0xff]
      %1442 = vset.pattern.permute.xlu0 0
      %1443 = vperm.xlu0 %1442, %v1440
      %v1444 = vpop.permute.xlu0 %1443
      %v1574 = vlaneseq
      %v1575 = vand.u32 %v1574, 127
      %v1576 = vperm.slane %v799, %v1575
      %v1577 = vadd.s32 %v1575, 4294967288
      %v1578 = vperm.slane %v800, %v1577
      %vm1579 = vcmask 130112
      %v1580 = vsel %vm1579, %v1578, %v1576
      %v1581 = vperm.slane %v801, %v1575
      %v1582 = vperm.slane %v802, %v1577
      %v1583 = vsel %vm1579, %v1582, %v1581
      %v1584 = vperm.slane %v803, %v1575
      %v1585 = vperm.slane %v804, %v1577
      %v1586 = vsel %vm1579, %v1585, %v1584
      %v1587 = vperm.slane %v805, %v1575
      %v1588 = vperm.slane %v806, %v1577
      %v1589 = vsel %vm1579, %v1588, %v1587
      %v1590 = vperm.slane %v807, %v1575
      %v1591 = vperm.slane %v808, %v1577
      %v1592 = vsel %vm1579, %v1591, %v1590
      %v1593 = vperm.slane %v809, %v1575
      %v1594 = vperm.slane %v810, %v1577
      %v1595 = vsel %vm1579, %v1594, %v1593
      %v1596 = vperm.slane %v811, %v1575
      %v1597 = vperm.slane %v812, %v1577
      %v1598 = vsel %vm1579, %v1597, %v1596
      %v1599 = vperm.slane %v813, %v1575
      %v1600 = vperm.slane %v814, %v1577
      %v1601 = vsel %vm1579, %v1600, %v1599
      %v1602 = vperm.slane %v815, %v1575
      %v1603 = vperm.slane %v816, %v1577
      %v1604 = vsel %vm1579, %v1603, %v1602
      %v1605 = vperm.slane %v817, %v1575
      %v1606 = vperm.slane %v818, %v1577
      %v1607 = vsel %vm1579, %v1606, %v1605
      %v1608 = vperm.slane %v819, %v1575
      %v1609 = vperm.slane %v820, %v1577
      %v1610 = vsel %vm1579, %v1609, %v1608
      %v1611 = vperm.slane %v821, %v1575
      %v1612 = vperm.slane %v822, %v1577
      %v1613 = vsel %vm1579, %v1612, %v1611
      %v1614 = vperm.slane %v823, %v1575
      %v1615 = vperm.slane %v824, %v1577
      %v1616 = vsel %vm1579, %v1615, %v1614
      %v1617 = vperm.slane %v825, %v1575
      %v1618 = vperm.slane %v826, %v1577
      %v1619 = vsel %vm1579, %v1618, %v1617
      %v1620 = vperm.slane %v827, %v1575
      %v1621 = vperm.slane %v828, %v1577
      %v1622 = vsel %vm1579, %v1621, %v1620
      %v1623 = vperm.slane %v829, %v1575
      %v1624 = vperm.slane %v830, %v1577
      %v1625 = vsel %vm1579, %v1624, %v1623
      %v1626 = vperm.slane %v831, %v1575
      %v1627 = vperm.slane %v832, %v1577
      %v1628 = vsel %vm1579, %v1627, %v1626
      %v1629 = vperm.slane %v833, %v1575
      %v1630 = vperm.slane %v834, %v1577
      %v1631 = vsel %vm1579, %v1630, %v1629
      %v1632 = vperm.slane %v835, %v1575
      %v1633 = vperm.slane %v836, %v1577
      %v1634 = vsel %vm1579, %v1633, %v1632
      %v1635 = vperm.slane %v837, %v1575
      %v1636 = vperm.slane %v838, %v1577
      %v1637 = vsel %vm1579, %v1636, %v1635
      %v1638 = vperm.slane %v839, %v1575
      %v1639 = vperm.slane %v840, %v1577
      %v1640 = vsel %vm1579, %v1639, %v1638
      %v1641 = vperm.slane %v841, %v1575
      %v1642 = vperm.slane %v842, %v1577
      %v1643 = vsel %vm1579, %v1642, %v1641
      %v1644 = vperm.slane %v843, %v1575
      %v1645 = vperm.slane %v844, %v1577
      %v1646 = vsel %vm1579, %v1645, %v1644
      %v1647 = vperm.slane %v845, %v1575
      %v1648 = vperm.slane %v846, %v1577
      %v1649 = vsel %vm1579, %v1648, %v1647
      %v1650 = vperm.slane %v847, %v1575
      %v1651 = vperm.slane %v848, %v1577
      %v1652 = vsel %vm1579, %v1651, %v1650
      %v1653 = vperm.slane %v849, %v1575
      %v1654 = vperm.slane %v850, %v1577
      %v1655 = vsel %vm1579, %v1654, %v1653
      %v1656 = vperm.slane %v851, %v1575
      %v1657 = vperm.slane %v852, %v1577
      %v1658 = vsel %vm1579, %v1657, %v1656
      %v1659 = vperm.slane %v853, %v1575
      %v1660 = vperm.slane %v854, %v1577
      %v1661 = vsel %vm1579, %v1660, %v1659
      %v1662 = vperm.slane %v855, %v1575
      %v1663 = vperm.slane %v856, %v1577
      %v1664 = vsel %vm1579, %v1663, %v1662
      %v1665 = vperm.slane %v857, %v1575
      %v1666 = vperm.slane %v858, %v1577
      %v1667 = vsel %vm1579, %v1666, %v1665
      %v1668 = vperm.slane %v859, %v1575
      %v1669 = vperm.slane %v860, %v1577
      %v1670 = vsel %vm1579, %v1669, %v1668
      %v1671 = vperm.slane %v861, %v1575
      %v1672 = vperm.slane %v862, %v1577
      %v1673 = vsel %vm1579, %v1672, %v1671
      %v1674 = vperm.slane %v863, %v1575
      %v1675 = vperm.slane %v864, %v1577
      %v1676 = vsel %vm1579, %v1675, %v1674
      %v1677 = vperm.slane %v865, %v1575
      %v1678 = vperm.slane %v866, %v1577
      %v1679 = vsel %vm1579, %v1678, %v1677
      %v1680 = vperm.slane %v867, %v1575
      %v1681 = vperm.slane %v868, %v1577
      %v1682 = vsel %vm1579, %v1681, %v1680
      %v1683 = vperm.slane %v869, %v1575
      %v1684 = vperm.slane %v870, %v1577
      %v1685 = vsel %vm1579, %v1684, %v1683
      %v1686 = vperm.slane %v871, %v1575
      %v1687 = vperm.slane %v872, %v1577
      %v1688 = vsel %vm1579, %v1687, %v1686
      %v1689 = vperm.slane %v873, %v1575
      %v1690 = vperm.slane %v874, %v1577
      %v1691 = vsel %vm1579, %v1690, %v1689
      %v1692 = vperm.slane %v875, %v1575
      %v1693 = vperm.slane %v876, %v1577
      %v1694 = vsel %vm1579, %v1693, %v1692
      %v1695 = vperm.slane %v877, %v1575
      %v1696 = vperm.slane %v878, %v1577
      %v1697 = vsel %vm1579, %v1696, %v1695
      %v1698 = vperm.slane %v879, %v1575
      %v1699 = vperm.slane %v880, %v1577
      %v1700 = vsel %vm1579, %v1699, %v1698
      %v1701 = vperm.slane %v881, %v1575
      %v1702 = vperm.slane %v882, %v1577
      %v1703 = vsel %vm1579, %v1702, %v1701
      %v1704 = vperm.slane %v883, %v1575
      %v1705 = vperm.slane %v884, %v1577
      %v1706 = vsel %vm1579, %v1705, %v1704
      %v1707 = vperm.slane %v885, %v1575
      %v1708 = vperm.slane %v886, %v1577
      %v1709 = vsel %vm1579, %v1708, %v1707
      %v1710 = vperm.slane %v887, %v1575
      %v1711 = vperm.slane %v888, %v1577
      %v1712 = vsel %vm1579, %v1711, %v1710
      %v1713 = vperm.slane %v889, %v1575
      %v1714 = vperm.slane %v890, %v1577
      %v1715 = vsel %vm1579, %v1714, %v1713
      %v1716 = vperm.slane %v891, %v1575
      %v1717 = vperm.slane %v892, %v1577
      %v1718 = vsel %vm1579, %v1717, %v1716
      %v1719 = vperm.slane %v893, %v1575
      %v1720 = vperm.slane %v894, %v1577
      %v1721 = vsel %vm1579, %v1720, %v1719
      %v1722 = vperm.slane %v895, %v1575
      %v1723 = vperm.slane %v896, %v1577
      %v1724 = vsel %vm1579, %v1723, %v1722
      %v1725 = vperm.slane %v897, %v1575
      %v1726 = vperm.slane %v898, %v1577
      %v1727 = vsel %vm1579, %v1726, %v1725
      %v1728 = vperm.slane %v899, %v1575
      %v1729 = vperm.slane %v900, %v1577
      %v1730 = vsel %vm1579, %v1729, %v1728
      %v1731 = vperm.slane %v901, %v1575
      %v1732 = vperm.slane %v902, %v1577
      %v1733 = vsel %vm1579, %v1732, %v1731
      %v1734 = vperm.slane %v903, %v1575
      %v1735 = vperm.slane %v904, %v1577
      %v1736 = vsel %vm1579, %v1735, %v1734
      %v1737 = vperm.slane %v905, %v1575
      %v1738 = vperm.slane %v906, %v1577
      %v1739 = vsel %vm1579, %v1738, %v1737
      %v1740 = vperm.slane %v907, %v1575
      %v1741 = vperm.slane %v908, %v1577
      %v1742 = vsel %vm1579, %v1741, %v1740
      %v1743 = vperm.slane %v909, %v1575
      %v1744 = vperm.slane %v910, %v1577
      %v1745 = vsel %vm1579, %v1744, %v1743
      %v1746 = vperm.slane %v911, %v1575
      %v1747 = vperm.slane %v912, %v1577
      %v1748 = vsel %vm1579, %v1747, %v1746
      %v1749 = vperm.slane %v913, %v1575
      %v1750 = vperm.slane %v914, %v1577
      %v1751 = vsel %vm1579, %v1750, %v1749
      %v1752 = vperm.slane %v915, %v1575
      %v1753 = vperm.slane %v916, %v1577
      %v1754 = vsel %vm1579, %v1753, %v1752
      %v1755 = vperm.slane %v917, %v1575
      %v1756 = vperm.slane %v918, %v1577
      %v1757 = vsel %vm1579, %v1756, %v1755
      %v1758 = vperm.slane %v919, %v1575
      %v1759 = vperm.slane %v920, %v1577
      %v1760 = vsel %vm1579, %v1759, %v1758
      %v1761 = vperm.slane %v921, %v1575
      %v1762 = vperm.slane %v922, %v1577
      %v1763 = vsel %vm1579, %v1762, %v1761
      %v1764 = vperm.slane %v923, %v1575
      %v1765 = vperm.slane %v924, %v1577
      %v1766 = vsel %vm1579, %v1765, %v1764
      %v1767 = vperm.slane %v925, %v1575
      %v1768 = vperm.slane %v926, %v1577
      %v1769 = vsel %vm1579, %v1768, %v1767
      %vm1770 = vcmask 1041409
      %v1771 = vsel %vm1770, %v1583, %v1580
      %vm1772 = vcmask 1042434
      %v1773 = vsel %vm1772, %v1586, %v1771
      %vm1774 = vcmask 1043459
      %v1775 = vsel %vm1774, %v1589, %v1773
      %vm1776 = vcmask 1044484
      %v1777 = vsel %vm1776, %v1592, %v1775
      %vm1778 = vcmask 1045509
      %v1779 = vsel %vm1778, %v1595, %v1777
      %vm1780 = vcmask 1046534
      %v1781 = vsel %vm1780, %v1598, %v1779
      %vm1782 = vcmask 1047559
      %v1783 = vsel %vm1782, %v1601, %v1781
      %v1784 = vsel %vm1770, %v1607, %v1604
      %v1785 = vsel %vm1772, %v1610, %v1784
      %v1786 = vsel %vm1774, %v1613, %v1785
      %v1787 = vsel %vm1776, %v1616, %v1786
      %v1788 = vsel %vm1778, %v1619, %v1787
      %v1789 = vsel %vm1780, %v1622, %v1788
      %v1790 = vsel %vm1782, %v1625, %v1789
      %v1791 = vsel %vm1770, %v1631, %v1628
      %v1792 = vsel %vm1772, %v1634, %v1791
      %v1793 = vsel %vm1774, %v1637, %v1792
      %v1794 = vsel %vm1776, %v1640, %v1793
      %v1795 = vsel %vm1778, %v1643, %v1794
      %v1796 = vsel %vm1780, %v1646, %v1795
      %v1797 = vsel %vm1782, %v1649, %v1796
      %v1798 = vsel %vm1770, %v1655, %v1652
      %v1799 = vsel %vm1772, %v1658, %v1798
      %v1800 = vsel %vm1774, %v1661, %v1799
      %v1801 = vsel %vm1776, %v1664, %v1800
      %v1802 = vsel %vm1778, %v1667, %v1801
      %v1803 = vsel %vm1780, %v1670, %v1802
      %v1804 = vsel %vm1782, %v1673, %v1803
      %v1805 = vsel %vm1770, %v1679, %v1676
      %v1806 = vsel %vm1772, %v1682, %v1805
      %v1807 = vsel %vm1774, %v1685, %v1806
      %v1808 = vsel %vm1776, %v1688, %v1807
      %v1809 = vsel %vm1778, %v1691, %v1808
      %v1810 = vsel %vm1780, %v1694, %v1809
      %v1811 = vsel %vm1782, %v1697, %v1810
      %v1812 = vsel %vm1770, %v1703, %v1700
      %v1813 = vsel %vm1772, %v1706, %v1812
      %v1814 = vsel %vm1774, %v1709, %v1813
      %v1815 = vsel %vm1776, %v1712, %v1814
      %v1816 = vsel %vm1778, %v1715, %v1815
      %v1817 = vsel %vm1780, %v1718, %v1816
      %v1818 = vsel %vm1782, %v1721, %v1817
      %v1819 = vsel %vm1770, %v1727, %v1724
      %v1820 = vsel %vm1772, %v1730, %v1819
      %v1821 = vsel %vm1774, %v1733, %v1820
      %v1822 = vsel %vm1776, %v1736, %v1821
      %v1823 = vsel %vm1778, %v1739, %v1822
      %v1824 = vsel %vm1780, %v1742, %v1823
      %v1825 = vsel %vm1782, %v1745, %v1824
      %v1826 = vsel %vm1770, %v1751, %v1748
      %v1827 = vsel %vm1772, %v1754, %v1826
      %v1828 = vsel %vm1774, %v1757, %v1827
      %v1829 = vsel %vm1776, %v1760, %v1828
      %v1830 = vsel %vm1778, %v1763, %v1829
      %v1831 = vsel %vm1780, %v1766, %v1830
      %v1832 = vsel %vm1782, %v1769, %v1831
      %vm1841 = vcmask 523264
      %v1843 = vsel %vm1841, %v1439, 0
      %1845 = vmatpush.msra.mxu0 0.0
      %1846 = vmatpush.msra.mxu0 0.0
      %1847 = vmatpush.msra.mxu0 0.0
      %1848 = vmatpush.msra.mxu0 0.0
      %1849 = vmatpush.msra.mxu0 0.0
      %1850 = vmatpush.msra.mxu0 0.0
      %1851 = vmatpush.msra.mxu0 0.0
      %1852 = vmatpush.msra.mxu0 0.0
      %1853 = vmatpush.msra.mxu0 %v1832
      %1854 = vmatpush.msra.mxu0 %v1825
      %1855 = vmatpush.msra.mxu0 %v1818
      %1856 = vmatpush.msra.mxu0 %v1811
      %1857 = vmatpush.msra.mxu0 %v1804
      %1858 = vmatpush.msra.mxu0 %v1797
      %1859 = vmatpush.msra.mxu0 %v1790
      %1860 = vmatpush.msra.mxu0 %v1783
      %1861 = vmatmul.f32.gmra.mxu0 %v1843
      %v1862 = vpop.f32.mrf.mxu0
      %v1863 = vadd.f32 %v1444, %v1862
      %1864 = vdwg.mxu0
      %v1865 = vadd.f32 %v1863, 3.0
      %v1866 = vmax.f32 %v1865, 0.0
      %v1867 = vmin.f32 %v1866, 6.0
      %v1868 = vmul.f32 %v1863, %v1867
      %v1869 = vmul.f32 %v1868, 0.16666667
      %v1870 = vld [vmem:[%s3] sm:$0xff]
      %v1871 = vld [vmem:[%s3 + $0x8] sm:$0xff]
      %v1872 = vld [vmem:[%s3 + $0x10] sm:$0xff]
      %v1873 = vld [vmem:[%s3 + $0x18] sm:$0xff]
      %v1874 = vld [vmem:[%s3 + $0x20] sm:$0xff]
      %v1875 = vld [vmem:[%s3 + $0x28] sm:$0xff]
      %v1876 = vld [vmem:[%s3 + $0x30] sm:$0xff]
      %v1877 = vld [vmem:[%s3 + $0x38] sm:$0xff]
      %v1878 = vld [vmem:[%s4] sm:$0xff]
      %v1879 = vld [vmem:[%s4 + $0x8] sm:$0xff]
      %v1880 = vld [vmem:[%s4 + $0x10] sm:$0xff]
      %v1881 = vld [vmem:[%s4 + $0x18] sm:$0xff]
      %v1882 = vld [vmem:[%s4 + $0x20] sm:$0xff]
      %v1883 = vld [vmem:[%s4 + $0x28] sm:$0xff]
      %v1884 = vld [vmem:[%s4 + $0x30] sm:$0xff]
      %v1885 = vld [vmem:[%s4 + $0x38] sm:$0xff]
      %1887 = vset.pattern.permute.xlu0 0
      %1888 = vperm.xlu0 %1887, %v1878
      %v1889 = vpop.permute.xlu0 %1888
      %1892 = vset.pattern.permute.xlu0 0
      %1893 = vperm.xlu0 %1892, %v1879
      %v1894 = vpop.permute.xlu0 %1893
      %1897 = vset.pattern.permute.xlu0 0
      %1898 = vperm.xlu0 %1897, %v1880
      %v1899 = vpop.permute.xlu0 %1898
      %1902 = vset.pattern.permute.xlu0 0
      %1903 = vperm.xlu0 %1902, %v1881
      %v1904 = vpop.permute.xlu0 %1903
      %1907 = vset.pattern.permute.xlu0 0
      %1908 = vperm.xlu0 %1907, %v1882
      %v1909 = vpop.permute.xlu0 %1908
      %1912 = vset.pattern.permute.xlu0 0
      %1913 = vperm.xlu0 %1912, %v1883
      %v1914 = vpop.permute.xlu0 %1913
      %1917 = vset.pattern.permute.xlu0 0
      %1918 = vperm.xlu0 %1917, %v1884
      %v1919 = vpop.permute.xlu0 %1918
      %1922 = vset.pattern.permute.xlu0 0
      %1923 = vperm.xlu0 %1922, %v1885
      %v1924 = vpop.permute.xlu0 %1923
      %vm1926 = vcmask 64512
      %v1928 = vsel %vm1926, %v1870, 0
      %v1931 = vsel %vm1926, %v1871, 0
      %v1934 = vsel %vm1926, %v1872, 0
      %v1937 = vsel %vm1926, %v1873, 0
      %v1940 = vsel %vm1926, %v1874, 0
      %v1943 = vsel %vm1926, %v1875, 0
      %v1946 = vsel %vm1926, %v1876, 0
      %v1949 = vsel %vm1926, %v1877, 0
      %1951 = vmatpush.msra.mxu0 0.0
      %1952 = vmatpush.msra.mxu0 0.0
      %1953 = vmatpush.msra.mxu0 0.0
      %1954 = vmatpush.msra.mxu0 0.0
      %1955 = vmatpush.msra.mxu0 0.0
      %1956 = vmatpush.msra.mxu0 0.0
      %1957 = vmatpush.msra.mxu0 0.0
      %1958 = vmatpush.msra.mxu0 0.0
      %1959 = vmatpush.msra.mxu0 0.0
      %1960 = vmatpush.msra.mxu0 0.0
      %1961 = vmatpush.msra.mxu0 0.0
      %1962 = vmatpush.msra.mxu0 0.0
      %1963 = vmatpush.msra.mxu0 0.0
      %1964 = vmatpush.msra.mxu0 0.0
      %1965 = vmatpush.msra.mxu0 0.0
      %1966 = vmatpush.msra.mxu0 %v1869
      %1967 = vmatmul.f32.gmra.mxu0 %v1928
      %v1968 = vpop.f32.mrf.mxu0
      %v1969 = vadd.f32 %v1889, %v1968
      %1970 = vmatmul.f32.gmra.mxu0 %v1931
      %v1971 = vpop.f32.mrf.mxu0
      %v1972 = vadd.f32 %v1894, %v1971
      %1973 = vmatmul.f32.gmra.mxu0 %v1934
      %v1974 = vpop.f32.mrf.mxu0
      %v1975 = vadd.f32 %v1899, %v1974
      %1976 = vmatmul.f32.gmra.mxu0 %v1937
      %v1977 = vpop.f32.mrf.mxu0
      %v1978 = vadd.f32 %v1904, %v1977
      %1979 = vmatmul.f32.gmra.mxu0 %v1940
      %v1980 = vpop.f32.mrf.mxu0
      %v1981 = vadd.f32 %v1909, %v1980
      %1982 = vmatmul.f32.gmra.mxu0 %v1943
      %v1983 = vpop.f32.mrf.mxu0
      %v1984 = vadd.f32 %v1914, %v1983
      %1985 = vmatmul.f32.gmra.mxu0 %v1946
      %v1986 = vpop.f32.mrf.mxu0
      %v1987 = vadd.f32 %v1919, %v1986
      %1988 = vmatmul.f32.gmra.mxu0 %v1949
      %v1989 = vpop.f32.mrf.mxu0
      %v1990 = vadd.f32 %v1924, %v1989
      %1991 = vdwg.mxu0
      %v1992 = vxor.u32 %v1969, 2147483648
      %v1993 = vxor.u32 %v1972, 2147483648
      %v1994 = vxor.u32 %v1975, 2147483648
      %v1995 = vxor.u32 %v1978, 2147483648
      %v1996 = vxor.u32 %v1981, 2147483648
      %v1997 = vxor.u32 %v1984, 2147483648
      %v1998 = vxor.u32 %v1987, 2147483648
      %v1999 = vxor.u32 %v1990, 2147483648
      %v2000 = vmul.f32 %v1992, 1.442695
      %v2001 = vpow.pop %v2000
      %v2002 = vmul.f32 %v1993, 1.442695
      %v2003 = vpow.pop %v2002
      %v2004 = vmul.f32 %v1994, 1.442695
      %v2005 = vpow.pop %v2004
      %v2006 = vmul.f32 %v1995, 1.442695
      %v2007 = vpow.pop %v2006
      %v2008 = vmul.f32 %v1996, 1.442695
      %v2009 = vpow.pop %v2008
      %v2010 = vmul.f32 %v1997, 1.442695
      %v2011 = vpow.pop %v2010
      %v2012 = vmul.f32 %v1998, 1.442695
      %v2013 = vpow.pop %v2012
      %v2014 = vmul.f32 %v1999, 1.442695
      %v2015 = vpow.pop %v2014
      %v2016 = vadd.f32 %v2001, 1.0
      %v2017 = vadd.f32 %v2003, 1.0
      %v2018 = vadd.f32 %v2005, 1.0
      %v2019 = vadd.f32 %v2007, 1.0
      %v2020 = vadd.f32 %v2009, 1.0
      %v2021 = vadd.f32 %v2011, 1.0
      %v2022 = vadd.f32 %v2013, 1.0
      %v2023 = vadd.f32 %v2015, 1.0
      %v2024 = vrcp.pop %v2016
      %v2025 = vmul.f32 %v2016, %v2024
      %v2026 = vsub.f32 1.0, %v2025
      %v2027 = vmul.f32 %v2024, %v2026
      %v2028 = vadd.f32 %v2024, %v2027
      %vm2029 = vweird.f32 %v2016
      %vm2030 = vweird.f32 %v2024
      %vm2031 = vmor %vm2029, %vm2030
      %v2032 = vsel %vm2031, %v2024, %v2028
      %v2033 = vand.u32 2147483647, %v2016
      %vm2034 = vcmp.eq.f32.partialorder %v2033, 8.507059e+37
      %v2035 = vand.u32 %v2016, 2147483648
      %v2036 = vor.u32 1.1754944e-38, %v2035
      %v2037 = vsel %vm2034, %v2036, %v2032
      %v2038 = vmul.f32 1.0, %v2037
      %v2039 = vrcp.pop %v2017
      %v2040 = vmul.f32 %v2017, %v2039
      %v2041 = vsub.f32 1.0, %v2040
      %v2042 = vmul.f32 %v2039, %v2041
      %v2043 = vadd.f32 %v2039, %v2042
      %vm2044 = vweird.f32 %v2017
      %vm2045 = vweird.f32 %v2039
      %vm2046 = vmor %vm2044, %vm2045
      %v2047 = vsel %vm2046, %v2039, %v2043
      %v2048 = vand.u32 2147483647, %v2017
      %vm2049 = vcmp.eq.f32.partialorder %v2048, 8.507059e+37
      %v2050 = vand.u32 %v2017, 2147483648
      %v2051 = vor.u32 1.1754944e-38, %v2050
      %v2052 = vsel %vm2049, %v2051, %v2047
      %v2053 = vmul.f32 1.0, %v2052
      %v2054 = vrcp.pop %v2018
      %v2055 = vmul.f32 %v2018, %v2054
      %v2056 = vsub.f32 1.0, %v2055
      %v2057 = vmul.f32 %v2054, %v2056
      %v2058 = vadd.f32 %v2054, %v2057
      %vm2059 = vweird.f32 %v2018
      %vm2060 = vweird.f32 %v2054
      %vm2061 = vmor %vm2059, %vm2060
      %v2062 = vsel %vm2061, %v2054, %v2058
      %v2063 = vand.u32 2147483647, %v2018
      %vm2064 = vcmp.eq.f32.partialorder %v2063, 8.507059e+37
      %v2065 = vand.u32 %v2018, 2147483648
      %v2066 = vor.u32 1.1754944e-38, %v2065
      %v2067 = vsel %vm2064, %v2066, %v2062
      %v2068 = vmul.f32 1.0, %v2067
      %v2069 = vrcp.pop %v2019
      %v2070 = vmul.f32 %v2019, %v2069
      %v2071 = vsub.f32 1.0, %v2070
      %v2072 = vmul.f32 %v2069, %v2071
      %v2073 = vadd.f32 %v2069, %v2072
      %vm2074 = vweird.f32 %v2019
      %vm2075 = vweird.f32 %v2069
      %vm2076 = vmor %vm2074, %vm2075
      %v2077 = vsel %vm2076, %v2069, %v2073
      %v2078 = vand.u32 2147483647, %v2019
      %vm2079 = vcmp.eq.f32.partialorder %v2078, 8.507059e+37
      %v2080 = vand.u32 %v2019, 2147483648
      %v2081 = vor.u32 1.1754944e-38, %v2080
      %v2082 = vsel %vm2079, %v2081, %v2077
      %v2083 = vmul.f32 1.0, %v2082
      %v2084 = vrcp.pop %v2020
      %v2085 = vmul.f32 %v2020, %v2084
      %v2086 = vsub.f32 1.0, %v2085
      %v2087 = vmul.f32 %v2084, %v2086
      %v2088 = vadd.f32 %v2084, %v2087
      %vm2089 = vweird.f32 %v2020
      %vm2090 = vweird.f32 %v2084
      %vm2091 = vmor %vm2089, %vm2090
      %v2092 = vsel %vm2091, %v2084, %v2088
      %v2093 = vand.u32 2147483647, %v2020
      %vm2094 = vcmp.eq.f32.partialorder %v2093, 8.507059e+37
      %v2095 = vand.u32 %v2020, 2147483648
      %v2096 = vor.u32 1.1754944e-38, %v2095
      %v2097 = vsel %vm2094, %v2096, %v2092
      %v2098 = vmul.f32 1.0, %v2097
      %v2099 = vrcp.pop %v2021
      %v2100 = vmul.f32 %v2021, %v2099
      %v2101 = vsub.f32 1.0, %v2100
      %v2102 = vmul.f32 %v2099, %v2101
      %v2103 = vadd.f32 %v2099, %v2102
      %vm2104 = vweird.f32 %v2021
      %vm2105 = vweird.f32 %v2099
      %vm2106 = vmor %vm2104, %vm2105
      %v2107 = vsel %vm2106, %v2099, %v2103
      %v2108 = vand.u32 2147483647, %v2021
      %vm2109 = vcmp.eq.f32.partialorder %v2108, 8.507059e+37
      %v2110 = vand.u32 %v2021, 2147483648
      %v2111 = vor.u32 1.1754944e-38, %v2110
      %v2112 = vsel %vm2109, %v2111, %v2107
      %v2113 = vmul.f32 1.0, %v2112
      %v2114 = vrcp.pop %v2022
      %v2115 = vmul.f32 %v2022, %v2114
      %v2116 = vsub.f32 1.0, %v2115
      %v2117 = vmul.f32 %v2114, %v2116
      %v2118 = vadd.f32 %v2114, %v2117
      %vm2119 = vweird.f32 %v2022
      %vm2120 = vweird.f32 %v2114
      %vm2121 = vmor %vm2119, %vm2120
      %v2122 = vsel %vm2121, %v2114, %v2118
      %v2123 = vand.u32 2147483647, %v2022
      %vm2124 = vcmp.eq.f32.partialorder %v2123, 8.507059e+37
      %v2125 = vand.u32 %v2022, 2147483648
      %v2126 = vor.u32 1.1754944e-38, %v2125
      %v2127 = vsel %vm2124, %v2126, %v2122
      %v2128 = vmul.f32 1.0, %v2127
      %v2129 = vrcp.pop %v2023
      %v2130 = vmul.f32 %v2023, %v2129
      %v2131 = vsub.f32 1.0, %v2130
      %v2132 = vmul.f32 %v2129, %v2131
      %v2133 = vadd.f32 %v2129, %v2132
      %vm2134 = vweird.f32 %v2023
      %vm2135 = vweird.f32 %v2129
      %vm2136 = vmor %vm2134, %vm2135
      %v2137 = vsel %vm2136, %v2129, %v2133
      %v2138 = vand.u32 2147483647, %v2023
      %vm2139 = vcmp.eq.f32.partialorder %v2138, 8.507059e+37
      %v2140 = vand.u32 %v2023, 2147483648
      %v2141 = vor.u32 1.1754944e-38, %v2140
      %v2142 = vsel %vm2139, %v2141, %v2137
      %v2143 = vmul.f32 1.0, %v2142
      %v2208 = vsel %vm1770, %v1376, %v1375
      %v2209 = vsel %vm1772, %v1377, %v2208
      %v2210 = vsel %vm1774, %v1378, %v2209
      %v2211 = vsel %vm1776, %v1379, %v2210
      %v2212 = vsel %vm1778, %v1380, %v2211
      %v2213 = vsel %vm1780, %v1381, %v2212
      %v2214 = vsel %vm1782, %v1382, %v2213
      %v2215 = vsel %vm1770, %v1384, %v1383
      %v2216 = vsel %vm1772, %v1385, %v2215
      %v2217 = vsel %vm1774, %v1386, %v2216
      %v2218 = vsel %vm1776, %v1387, %v2217
      %v2219 = vsel %vm1778, %v1388, %v2218
      %v2220 = vsel %vm1780, %v1389, %v2219
      %v2221 = vsel %vm1782, %v1390, %v2220
      %v2222 = vsel %vm1770, %v1392, %v1391
      %v2223 = vsel %vm1772, %v1393, %v2222
      %v2224 = vsel %vm1774, %v1394, %v2223
      %v2225 = vsel %vm1776, %v1395, %v2224
      %v2226 = vsel %vm1778, %v1396, %v2225
      %v2227 = vsel %vm1780, %v1397, %v2226
      %v2228 = vsel %vm1782, %v1398, %v2227
      %v2229 = vsel %vm1770, %v1400, %v1399
      %v2230 = vsel %vm1772, %v1401, %v2229
      %v2231 = vsel %vm1774, %v1402, %v2230
      %v2232 = vsel %vm1776, %v1403, %v2231
      %v2233 = vsel %vm1778, %v1404, %v2232
      %v2234 = vsel %vm1780, %v1405, %v2233
      %v2235 = vsel %vm1782, %v1406, %v2234
      %v2236 = vsel %vm1770, %v1408, %v1407
      %v2237 = vsel %vm1772, %v1409, %v2236
      %v2238 = vsel %vm1774, %v1410, %v2237
      %v2239 = vsel %vm1776, %v1411, %v2238
      %v2240 = vsel %vm1778, %v1412, %v2239
      %v2241 = vsel %vm1780, %v1413, %v2240
      %v2242 = vsel %vm1782, %v1414, %v2241
      %v2243 = vsel %vm1770, %v1416, %v1415
      %v2244 = vsel %vm1772, %v1417, %v2243
      %v2245 = vsel %vm1774, %v1418, %v2244
      %v2246 = vsel %vm1776, %v1419, %v2245
      %v2247 = vsel %vm1778, %v1420, %v2246
      %v2248 = vsel %vm1780, %v1421, %v2247
      %v2249 = vsel %vm1782, %v1422, %v2248
      %v2250 = vsel %vm1770, %v1424, %v1423
      %v2251 = vsel %vm1772, %v1425, %v2250
      %v2252 = vsel %vm1774, %v1426, %v2251
      %v2253 = vsel %vm1776, %v1427, %v2252
      %v2254 = vsel %vm1778, %v1428, %v2253
      %v2255 = vsel %vm1780, %v1429, %v2254
      %v2256 = vsel %vm1782, %v1430, %v2255
      %v2257 = vsel %vm1770, %v1432, %v1431
      %v2258 = vsel %vm1772, %v1433, %v2257
      %v2259 = vsel %vm1774, %v1434, %v2258
      %v2260 = vsel %vm1776, %v1435, %v2259
      %v2261 = vsel %vm1778, %v1436, %v2260
      %v2262 = vsel %vm1780, %v1437, %v2261
      %v2263 = vsel %vm1782, %v1438, %v2262
      %2272 = vmatpush.msra.mxu0 0.0
      %2273 = vmatpush.msra.mxu0 0.0
      %2274 = vmatpush.msra.mxu0 0.0
      %2275 = vmatpush.msra.mxu0 0.0
      %2276 = vmatpush.msra.mxu0 0.0
      %2277 = vmatpush.msra.mxu0 0.0
      %2278 = vmatpush.msra.mxu0 0.0
      %2279 = vmatpush.msra.mxu0 0.0
      %2280 = vmatpush.msra.mxu0 %v2263
      %2281 = vmatpush.msra.mxu0 %v2256
      %2282 = vmatpush.msra.mxu0 %v2249
      %2283 = vmatpush.msra.mxu0 %v2242
      %2284 = vmatpush.msra.mxu0 %v2235
      %2285 = vmatpush.msra.mxu0 %v2228
      %2286 = vmatpush.msra.mxu0 %v2221
      %2287 = vmatpush.msra.mxu0 %v2214
      %2288 = vmatmul.f32.gmra.mxu0 %v1843
      %v2289 = vpop.f32.mrf.mxu0
      %v2290 = vadd.f32 %v1444, %v2289
      %2291 = vdwg.mxu0
      %v2292 = vadd.f32 %v2290, 3.0
      %v2293 = vmax.f32 %v2292, 0.0
      %v2294 = vmin.f32 %v2293, 6.0
      %v2295 = vmul.f32 %v2290, %v2294
      %v2296 = vmul.f32 %v2295, 0.16666667
      %v2297 = vld [vmem:[%s5] sm:$0xff]
      %v2298 = vld [vmem:[%s5 + $0x8] sm:$0xff]
      %v2299 = vld [vmem:[%s5 + $0x10] sm:$0xff]
      %v2300 = vld [vmem:[%s5 + $0x18] sm:$0xff]
      %v2301 = vld [vmem:[%s5 + $0x20] sm:$0xff]
      %v2302 = vld [vmem:[%s5 + $0x28] sm:$0xff]
      %v2303 = vld [vmem:[%s5 + $0x30] sm:$0xff]
      %v2304 = vld [vmem:[%s5 + $0x38] sm:$0xff]
      %v2305 = vld [vmem:[%s6] sm:$0xff]
      %v2306 = vld [vmem:[%s6 + $0x8] sm:$0xff]
      %v2307 = vld [vmem:[%s6 + $0x10] sm:$0xff]
      %v2308 = vld [vmem:[%s6 + $0x18] sm:$0xff]
      %v2309 = vld [vmem:[%s6 + $0x20] sm:$0xff]
      %v2310 = vld [vmem:[%s6 + $0x28] sm:$0xff]
      %v2311 = vld [vmem:[%s6 + $0x30] sm:$0xff]
      %v2312 = vld [vmem:[%s6 + $0x38] sm:$0xff]
      %2314 = vset.pattern.permute.xlu0 0
      %2315 = vperm.xlu0 %2314, %v2305
      %v2316 = vpop.permute.xlu0 %2315
      %2319 = vset.pattern.permute.xlu0 0
      %2320 = vperm.xlu0 %2319, %v2306
      %v2321 = vpop.permute.xlu0 %2320
      %2324 = vset.pattern.permute.xlu0 0
      %2325 = vperm.xlu0 %2324, %v2307
      %v2326 = vpop.permute.xlu0 %2325
      %2329 = vset.pattern.permute.xlu0 0
      %2330 = vperm.xlu0 %2329, %v2308
      %v2331 = vpop.permute.xlu0 %2330
      %2334 = vset.pattern.permute.xlu0 0
      %2335 = vperm.xlu0 %2334, %v2309
      %v2336 = vpop.permute.xlu0 %2335
      %2339 = vset.pattern.permute.xlu0 0
      %2340 = vperm.xlu0 %2339, %v2310
      %v2341 = vpop.permute.xlu0 %2340
      %2344 = vset.pattern.permute.xlu0 0
      %2345 = vperm.xlu0 %2344, %v2311
      %v2346 = vpop.permute.xlu0 %2345
      %2349 = vset.pattern.permute.xlu0 0
      %2350 = vperm.xlu0 %2349, %v2312
      %v2351 = vpop.permute.xlu0 %2350
      %v2354 = vsel %vm1926, %v2297, 0
      %v2357 = vsel %vm1926, %v2298, 0
      %v2360 = vsel %vm1926, %v2299, 0
      %v2363 = vsel %vm1926, %v2300, 0
      %v2366 = vsel %vm1926, %v2301, 0
      %v2369 = vsel %vm1926, %v2302, 0
      %v2372 = vsel %vm1926, %v2303, 0
      %v2375 = vsel %vm1926, %v2304, 0
      %2377 = vmatpush.msra.mxu0 0.0
      %2378 = vmatpush.msra.mxu0 0.0
      %2379 = vmatpush.msra.mxu0 0.0
      %2380 = vmatpush.msra.mxu0 0.0
      %2381 = vmatpush.msra.mxu0 0.0
      %2382 = vmatpush.msra.mxu0 0.0
      %2383 = vmatpush.msra.mxu0 0.0
      %2384 = vmatpush.msra.mxu0 0.0
      %2385 = vmatpush.msra.mxu0 0.0
      %2386 = vmatpush.msra.mxu0 0.0
      %2387 = vmatpush.msra.mxu0 0.0
      %2388 = vmatpush.msra.mxu0 0.0
      %2389 = vmatpush.msra.mxu0 0.0
      %2390 = vmatpush.msra.mxu0 0.0
      %2391 = vmatpush.msra.mxu0 0.0
      %2392 = vmatpush.msra.mxu0 %v2296
      %2393 = vmatmul.f32.gmra.mxu0 %v2354
      %v2394 = vpop.f32.mrf.mxu0
      %v2395 = vadd.f32 %v2316, %v2394
      %2396 = vmatmul.f32.gmra.mxu0 %v2357
      %v2397 = vpop.f32.mrf.mxu0
      %v2398 = vadd.f32 %v2321, %v2397
      %2399 = vmatmul.f32.gmra.mxu0 %v2360
      %v2400 = vpop.f32.mrf.mxu0
      %v2401 = vadd.f32 %v2326, %v2400
      %2402 = vmatmul.f32.gmra.mxu0 %v2363
      %v2403 = vpop.f32.mrf.mxu0
      %v2404 = vadd.f32 %v2331, %v2403
      %2405 = vmatmul.f32.gmra.mxu0 %v2366
      %v2406 = vpop.f32.mrf.mxu0
      %v2407 = vadd.f32 %v2336, %v2406
      %2408 = vmatmul.f32.gmra.mxu0 %v2369
      %v2409 = vpop.f32.mrf.mxu0
      %v2410 = vadd.f32 %v2341, %v2409
      %2411 = vmatmul.f32.gmra.mxu0 %v2372
      %v2412 = vpop.f32.mrf.mxu0
      %v2413 = vadd.f32 %v2346, %v2412
      %2414 = vmatmul.f32.gmra.mxu0 %v2375
      %v2415 = vpop.f32.mrf.mxu0
      %v2416 = vadd.f32 %v2351, %v2415
      %2417 = vdwg.mxu0
      %v2418 = vxor.u32 %v2395, 2147483648
      %v2419 = vxor.u32 %v2398, 2147483648
      %v2420 = vxor.u32 %v2401, 2147483648
      %v2421 = vxor.u32 %v2404, 2147483648
      %v2422 = vxor.u32 %v2407, 2147483648
      %v2423 = vxor.u32 %v2410, 2147483648
      %v2424 = vxor.u32 %v2413, 2147483648
      %v2425 = vxor.u32 %v2416, 2147483648
      %v2426 = vmul.f32 %v2418, 1.442695
      %v2427 = vpow.pop %v2426
      %v2428 = vmul.f32 %v2419, 1.442695
      %v2429 = vpow.pop %v2428
      %v2430 = vmul.f32 %v2420, 1.442695
      %v2431 = vpow.pop %v2430
      %v2432 = vmul.f32 %v2421, 1.442695
      %v2433 = vpow.pop %v2432
      %v2434 = vmul.f32 %v2422, 1.442695
      %v2435 = vpow.pop %v2434
      %v2436 = vmul.f32 %v2423, 1.442695
      %v2437 = vpow.pop %v2436
      %v2438 = vmul.f32 %v2424, 1.442695
      %v2439 = vpow.pop %v2438
      %v2440 = vmul.f32 %v2425, 1.442695
      %v2441 = vpow.pop %v2440
      %v2442 = vadd.f32 %v2427, 1.0
      %v2443 = vadd.f32 %v2429, 1.0
      %v2444 = vadd.f32 %v2431, 1.0
      %v2445 = vadd.f32 %v2433, 1.0
      %v2446 = vadd.f32 %v2435, 1.0
      %v2447 = vadd.f32 %v2437, 1.0
      %v2448 = vadd.f32 %v2439, 1.0
      %v2449 = vadd.f32 %v2441, 1.0
      %v2450 = vrcp.pop %v2442
      %v2451 = vmul.f32 %v2442, %v2450
      %v2452 = vsub.f32 1.0, %v2451
      %v2453 = vmul.f32 %v2450, %v2452
      %v2454 = vadd.f32 %v2450, %v2453
      %vm2455 = vweird.f32 %v2442
      %vm2456 = vweird.f32 %v2450
      %vm2457 = vmor %vm2455, %vm2456
      %v2458 = vsel %vm2457, %v2450, %v2454
      %v2459 = vand.u32 2147483647, %v2442
      %vm2460 = vcmp.eq.f32.partialorder %v2459, 8.507059e+37
      %v2461 = vand.u32 %v2442, 2147483648
      %v2462 = vor.u32 1.1754944e-38, %v2461
      %v2463 = vsel %vm2460, %v2462, %v2458
      %v2464 = vmul.f32 1.0, %v2463
      %v2465 = vrcp.pop %v2443
      %v2466 = vmul.f32 %v2443, %v2465
      %v2467 = vsub.f32 1.0, %v2466
      %v2468 = vmul.f32 %v2465, %v2467
      %v2469 = vadd.f32 %v2465, %v2468
      %vm2470 = vweird.f32 %v2443
      %vm2471 = vweird.f32 %v2465
      %vm2472 = vmor %vm2470, %vm2471
      %v2473 = vsel %vm2472, %v2465, %v2469
      %v2474 = vand.u32 2147483647, %v2443
      %vm2475 = vcmp.eq.f32.partialorder %v2474, 8.507059e+37
      %v2476 = vand.u32 %v2443, 2147483648
      %v2477 = vor.u32 1.1754944e-38, %v2476
      %v2478 = vsel %vm2475, %v2477, %v2473
      %v2479 = vmul.f32 1.0, %v2478
      %v2480 = vrcp.pop %v2444
      %v2481 = vmul.f32 %v2444, %v2480
      %v2482 = vsub.f32 1.0, %v2481
      %v2483 = vmul.f32 %v2480, %v2482
      %v2484 = vadd.f32 %v2480, %v2483
      %vm2485 = vweird.f32 %v2444
      %vm2486 = vweird.f32 %v2480
      %vm2487 = vmor %vm2485, %vm2486
      %v2488 = vsel %vm2487, %v2480, %v2484
      %v2489 = vand.u32 2147483647, %v2444
      %vm2490 = vcmp.eq.f32.partialorder %v2489, 8.507059e+37
      %v2491 = vand.u32 %v2444, 2147483648
      %v2492 = vor.u32 1.1754944e-38, %v2491
      %v2493 = vsel %vm2490, %v2492, %v2488
      %v2494 = vmul.f32 1.0, %v2493
      %v2495 = vrcp.pop %v2445
      %v2496 = vmul.f32 %v2445, %v2495
      %v2497 = vsub.f32 1.0, %v2496
      %v2498 = vmul.f32 %v2495, %v2497
      %v2499 = vadd.f32 %v2495, %v2498
      %vm2500 = vweird.f32 %v2445
      %vm2501 = vweird.f32 %v2495
      %vm2502 = vmor %vm2500, %vm2501
      %v2503 = vsel %vm2502, %v2495, %v2499
      %v2504 = vand.u32 2147483647, %v2445
      %vm2505 = vcmp.eq.f32.partialorder %v2504, 8.507059e+37
      %v2506 = vand.u32 %v2445, 2147483648
      %v2507 = vor.u32 1.1754944e-38, %v2506
      %v2508 = vsel %vm2505, %v2507, %v2503
      %v2509 = vmul.f32 1.0, %v2508
      %v2510 = vrcp.pop %v2446
      %v2511 = vmul.f32 %v2446, %v2510
      %v2512 = vsub.f32 1.0, %v2511
      %v2513 = vmul.f32 %v2510, %v2512
      %v2514 = vadd.f32 %v2510, %v2513
      %vm2515 = vweird.f32 %v2446
      %vm2516 = vweird.f32 %v2510
      %vm2517 = vmor %vm2515, %vm2516
      %v2518 = vsel %vm2517, %v2510, %v2514
      %v2519 = vand.u32 2147483647, %v2446
      %vm2520 = vcmp.eq.f32.partialorder %v2519, 8.507059e+37
      %v2521 = vand.u32 %v2446, 2147483648
      %v2522 = vor.u32 1.1754944e-38, %v2521
      %v2523 = vsel %vm2520, %v2522, %v2518
      %v2524 = vmul.f32 1.0, %v2523
      %v2525 = vrcp.pop %v2447
      %v2526 = vmul.f32 %v2447, %v2525
      %v2527 = vsub.f32 1.0, %v2526
      %v2528 = vmul.f32 %v2525, %v2527
      %v2529 = vadd.f32 %v2525, %v2528
      %vm2530 = vweird.f32 %v2447
      %vm2531 = vweird.f32 %v2525
      %vm2532 = vmor %vm2530, %vm2531
      %v2533 = vsel %vm2532, %v2525, %v2529
      %v2534 = vand.u32 2147483647, %v2447
      %vm2535 = vcmp.eq.f32.partialorder %v2534, 8.507059e+37
      %v2536 = vand.u32 %v2447, 2147483648
      %v2537 = vor.u32 1.1754944e-38, %v2536
      %v2538 = vsel %vm2535, %v2537, %v2533
      %v2539 = vmul.f32 1.0, %v2538
      %v2540 = vrcp.pop %v2448
      %v2541 = vmul.f32 %v2448, %v2540
      %v2542 = vsub.f32 1.0, %v2541
      %v2543 = vmul.f32 %v2540, %v2542
      %v2544 = vadd.f32 %v2540, %v2543
      %vm2545 = vweird.f32 %v2448
      %vm2546 = vweird.f32 %v2540
      %vm2547 = vmor %vm2545, %vm2546
      %v2548 = vsel %vm2547, %v2540, %v2544
      %v2549 = vand.u32 2147483647, %v2448
      %vm2550 = vcmp.eq.f32.partialorder %v2549, 8.507059e+37
      %v2551 = vand.u32 %v2448, 2147483648
      %v2552 = vor.u32 1.1754944e-38, %v2551
      %v2553 = vsel %vm2550, %v2552, %v2548
      %v2554 = vmul.f32 1.0, %v2553
      %v2555 = vrcp.pop %v2449
      %v2556 = vmul.f32 %v2449, %v2555
      %v2557 = vsub.f32 1.0, %v2556
      %v2558 = vmul.f32 %v2555, %v2557
      %v2559 = vadd.f32 %v2555, %v2558
      %vm2560 = vweird.f32 %v2449
      %vm2561 = vweird.f32 %v2555
      %vm2562 = vmor %vm2560, %vm2561
      %v2563 = vsel %vm2562, %v2555, %v2559
      %v2564 = vand.u32 2147483647, %v2449
      %vm2565 = vcmp.eq.f32.partialorder %v2564, 8.507059e+37
      %v2566 = vand.u32 %v2449, 2147483648
      %v2567 = vor.u32 1.1754944e-38, %v2566
      %v2568 = vsel %vm2565, %v2567, %v2563
      %v2569 = vmul.f32 1.0, %v2568
      %v2570 = vperm.slane %v2038, 0
      %v2571 = vlaneseq
      %v2572 = vshrl.u32 %v2571, 7
      %2574 = vset.pattern.permute.xlu0 %v2572
      %2575 = vperm.xlu0 %2574, %v2570
      %v2576 = vpop.permute.xlu0 %2575
      %v2577 = vlaneseq
      %v2578 = vshrl.u32 %v2577, 7
      %v2579 = vadd.s32 %v2578, 8
      %2580 = vset.pattern.permute.xlu0 %v2579
      %2581 = vperm.xlu0 %2580, %v2570
      %v2582 = vpop.permute.xlu0 %2581
      %v2583 = vperm.slane %v2038, 1
      %v2584 = vlaneseq
      %v2585 = vshrl.u32 %v2584, 7
      %2587 = vset.pattern.permute.xlu0 %v2585
      %2588 = vperm.xlu0 %2587, %v2583
      %v2589 = vpop.permute.xlu0 %2588
      %v2590 = vlaneseq
      %v2591 = vshrl.u32 %v2590, 7
      %v2592 = vadd.s32 %v2591, 8
      %2593 = vset.pattern.permute.xlu0 %v2592
      %2594 = vperm.xlu0 %2593, %v2583
      %v2595 = vpop.permute.xlu0 %2594
      %v2596 = vperm.slane %v2038, 2
      %v2597 = vlaneseq
      %v2598 = vshrl.u32 %v2597, 7
      %2600 = vset.pattern.permute.xlu0 %v2598
      %2601 = vperm.xlu0 %2600, %v2596
      %v2602 = vpop.permute.xlu0 %2601
      %v2603 = vlaneseq
      %v2604 = vshrl.u32 %v2603, 7
      %v2605 = vadd.s32 %v2604, 8
      %2606 = vset.pattern.permute.xlu0 %v2605
      %2607 = vperm.xlu0 %2606, %v2596
      %v2608 = vpop.permute.xlu0 %2607
      %v2609 = vperm.slane %v2038, 3
      %v2610 = vlaneseq
      %v2611 = vshrl.u32 %v2610, 7
      %2613 = vset.pattern.permute.xlu0 %v2611
      %2614 = vperm.xlu0 %2613, %v2609
      %v2615 = vpop.permute.xlu0 %2614
      %v2616 = vlaneseq
      %v2617 = vshrl.u32 %v2616, 7
      %v2618 = vadd.s32 %v2617, 8
      %2619 = vset.pattern.permute.xlu0 %v2618
      %2620 = vperm.xlu0 %2619, %v2609
      %v2621 = vpop.permute.xlu0 %2620
      %v2622 = vperm.slane %v2038, 4
      %v2623 = vlaneseq
      %v2624 = vshrl.u32 %v2623, 7
      %2626 = vset.pattern.permute.xlu0 %v2624
      %2627 = vperm.xlu0 %2626, %v2622
      %v2628 = vpop.permute.xlu0 %2627
      %v2629 = vlaneseq
      %v2630 = vshrl.u32 %v2629, 7
      %v2631 = vadd.s32 %v2630, 8
      %2632 = vset.pattern.permute.xlu0 %v2631
      %2633 = vperm.xlu0 %2632, %v2622
      %v2634 = vpop.permute.xlu0 %2633
      %v2635 = vperm.slane %v2038, 5
      %v2636 = vlaneseq
      %v2637 = vshrl.u32 %v2636, 7
      %2639 = vset.pattern.permute.xlu0 %v2637
      %2640 = vperm.xlu0 %2639, %v2635
      %v2641 = vpop.permute.xlu0 %2640
      %v2642 = vlaneseq
      %v2643 = vshrl.u32 %v2642, 7
      %v2644 = vadd.s32 %v2643, 8
      %2645 = vset.pattern.permute.xlu0 %v2644
      %2646 = vperm.xlu0 %2645, %v2635
      %v2647 = vpop.permute.xlu0 %2646
      %v2648 = vperm.slane %v2038, 6
      %v2649 = vlaneseq
      %v2650 = vshrl.u32 %v2649, 7
      %2652 = vset.pattern.permute.xlu0 %v2650
      %2653 = vperm.xlu0 %2652, %v2648
      %v2654 = vpop.permute.xlu0 %2653
      %v2655 = vlaneseq
      %v2656 = vshrl.u32 %v2655, 7
      %v2657 = vadd.s32 %v2656, 8
      %2658 = vset.pattern.permute.xlu0 %v2657
      %2659 = vperm.xlu0 %2658, %v2648
      %v2660 = vpop.permute.xlu0 %2659
      %v2661 = vperm.slane %v2038, 7
      %v2662 = vlaneseq
      %v2663 = vshrl.u32 %v2662, 7
      %2665 = vset.pattern.permute.xlu0 %v2663
      %2666 = vperm.xlu0 %2665, %v2661
      %v2667 = vpop.permute.xlu0 %2666
      %v2668 = vlaneseq
      %v2669 = vshrl.u32 %v2668, 7
      %v2670 = vadd.s32 %v2669, 8
      %2671 = vset.pattern.permute.xlu0 %v2670
      %2672 = vperm.xlu0 %2671, %v2661
      %v2673 = vpop.permute.xlu0 %2672
      %v2674 = vperm.slane %v2053, 0
      %v2675 = vlaneseq
      %v2676 = vshrl.u32 %v2675, 7
      %2678 = vset.pattern.permute.xlu0 %v2676
      %2679 = vperm.xlu0 %2678, %v2674
      %v2680 = vpop.permute.xlu0 %2679
      %v2681 = vlaneseq
      %v2682 = vshrl.u32 %v2681, 7
      %v2683 = vadd.s32 %v2682, 8
      %2684 = vset.pattern.permute.xlu0 %v2683
      %2685 = vperm.xlu0 %2684, %v2674
      %v2686 = vpop.permute.xlu0 %2685
      %v2687 = vperm.slane %v2053, 1
      %v2688 = vlaneseq
      %v2689 = vshrl.u32 %v2688, 7
      %2691 = vset.pattern.permute.xlu0 %v2689
      %2692 = vperm.xlu0 %2691, %v2687
      %v2693 = vpop.permute.xlu0 %2692
      %v2694 = vlaneseq
      %v2695 = vshrl.u32 %v2694, 7
      %v2696 = vadd.s32 %v2695, 8
      %2697 = vset.pattern.permute.xlu0 %v2696
      %2698 = vperm.xlu0 %2697, %v2687
      %v2699 = vpop.permute.xlu0 %2698
      %v2700 = vperm.slane %v2053, 2
      %v2701 = vlaneseq
      %v2702 = vshrl.u32 %v2701, 7
      %2704 = vset.pattern.permute.xlu0 %v2702
      %2705 = vperm.xlu0 %2704, %v2700
      %v2706 = vpop.permute.xlu0 %2705
      %v2707 = vlaneseq
      %v2708 = vshrl.u32 %v2707, 7
      %v2709 = vadd.s32 %v2708, 8
      %2710 = vset.pattern.permute.xlu0 %v2709
      %2711 = vperm.xlu0 %2710, %v2700
      %v2712 = vpop.permute.xlu0 %2711
      %v2713 = vperm.slane %v2053, 3
      %v2714 = vlaneseq
      %v2715 = vshrl.u32 %v2714, 7
      %2717 = vset.pattern.permute.xlu0 %v2715
      %2718 = vperm.xlu0 %2717, %v2713
      %v2719 = vpop.permute.xlu0 %2718
      %v2720 = vlaneseq
      %v2721 = vshrl.u32 %v2720, 7
      %v2722 = vadd.s32 %v2721, 8
      %2723 = vset.pattern.permute.xlu0 %v2722
      %2724 = vperm.xlu0 %2723, %v2713
      %v2725 = vpop.permute.xlu0 %2724
      %v2726 = vperm.slane %v2053, 4
      %v2727 = vlaneseq
      %v2728 = vshrl.u32 %v2727, 7
      %2730 = vset.pattern.permute.xlu0 %v2728
      %2731 = vperm.xlu0 %2730, %v2726
      %v2732 = vpop.permute.xlu0 %2731
      %v2733 = vlaneseq
      %v2734 = vshrl.u32 %v2733, 7
      %v2735 = vadd.s32 %v2734, 8
      %2736 = vset.pattern.permute.xlu0 %v2735
      %2737 = vperm.xlu0 %2736, %v2726
      %v2738 = vpop.permute.xlu0 %2737
      %v2739 = vperm.slane %v2053, 5
      %v2740 = vlaneseq
      %v2741 = vshrl.u32 %v2740, 7
      %2743 = vset.pattern.permute.xlu0 %v2741
      %2744 = vperm.xlu0 %2743, %v2739
      %v2745 = vpop.permute.xlu0 %2744
      %v2746 = vlaneseq
      %v2747 = vshrl.u32 %v2746, 7
      %v2748 = vadd.s32 %v2747, 8
      %2749 = vset.pattern.permute.xlu0 %v2748
      %2750 = vperm.xlu0 %2749, %v2739
      %v2751 = vpop.permute.xlu0 %2750
      %v2752 = vperm.slane %v2053, 6
      %v2753 = vlaneseq
      %v2754 = vshrl.u32 %v2753, 7
      %2756 = vset.pattern.permute.xlu0 %v2754
      %2757 = vperm.xlu0 %2756, %v2752
      %v2758 = vpop.permute.xlu0 %2757
      %v2759 = vlaneseq
      %v2760 = vshrl.u32 %v2759, 7
      %v2761 = vadd.s32 %v2760, 8
      %2762 = vset.pattern.permute.xlu0 %v2761
      %2763 = vperm.xlu0 %2762, %v2752
      %v2764 = vpop.permute.xlu0 %2763
      %v2765 = vperm.slane %v2053, 7
      %v2766 = vlaneseq
      %v2767 = vshrl.u32 %v2766, 7
      %2769 = vset.pattern.permute.xlu0 %v2767
      %2770 = vperm.xlu0 %2769, %v2765
      %v2771 = vpop.permute.xlu0 %2770
      %v2772 = vlaneseq
      %v2773 = vshrl.u32 %v2772, 7
      %v2774 = vadd.s32 %v2773, 8
      %2775 = vset.pattern.permute.xlu0 %v2774
      %2776 = vperm.xlu0 %2775, %v2765
      %v2777 = vpop.permute.xlu0 %2776
      %v2778 = vperm.slane %v2068, 0
      %v2779 = vlaneseq
      %v2780 = vshrl.u32 %v2779, 7
      %2782 = vset.pattern.permute.xlu0 %v2780
      %2783 = vperm.xlu0 %2782, %v2778
      %v2784 = vpop.permute.xlu0 %2783
      %v2785 = vlaneseq
      %v2786 = vshrl.u32 %v2785, 7
      %v2787 = vadd.s32 %v2786, 8
      %2788 = vset.pattern.permute.xlu0 %v2787
      %2789 = vperm.xlu0 %2788, %v2778
      %v2790 = vpop.permute.xlu0 %2789
      %v2791 = vperm.slane %v2068, 1
      %v2792 = vlaneseq
      %v2793 = vshrl.u32 %v2792, 7
      %2795 = vset.pattern.permute.xlu0 %v2793
      %2796 = vperm.xlu0 %2795, %v2791
      %v2797 = vpop.permute.xlu0 %2796
      %v2798 = vlaneseq
      %v2799 = vshrl.u32 %v2798, 7
      %v2800 = vadd.s32 %v2799, 8
      %2801 = vset.pattern.permute.xlu0 %v2800
      %2802 = vperm.xlu0 %2801, %v2791
      %v2803 = vpop.permute.xlu0 %2802
      %v2804 = vperm.slane %v2068, 2
      %v2805 = vlaneseq
      %v2806 = vshrl.u32 %v2805, 7
      %2808 = vset.pattern.permute.xlu0 %v2806
      %2809 = vperm.xlu0 %2808, %v2804
      %v2810 = vpop.permute.xlu0 %2809
      %v2811 = vlaneseq
      %v2812 = vshrl.u32 %v2811, 7
      %v2813 = vadd.s32 %v2812, 8
      %2814 = vset.pattern.permute.xlu0 %v2813
      %2815 = vperm.xlu0 %2814, %v2804
      %v2816 = vpop.permute.xlu0 %2815
      %v2817 = vperm.slane %v2068, 3
      %v2818 = vlaneseq
      %v2819 = vshrl.u32 %v2818, 7
      %2821 = vset.pattern.permute.xlu0 %v2819
      %2822 = vperm.xlu0 %2821, %v2817
      %v2823 = vpop.permute.xlu0 %2822
      %v2824 = vlaneseq
      %v2825 = vshrl.u32 %v2824, 7
      %v2826 = vadd.s32 %v2825, 8
      %2827 = vset.pattern.permute.xlu0 %v2826
      %2828 = vperm.xlu0 %2827, %v2817
      %v2829 = vpop.permute.xlu0 %2828
      %v2830 = vperm.slane %v2068, 4
      %v2831 = vlaneseq
      %v2832 = vshrl.u32 %v2831, 7
      %2834 = vset.pattern.permute.xlu0 %v2832
      %2835 = vperm.xlu0 %2834, %v2830
      %v2836 = vpop.permute.xlu0 %2835
      %v2837 = vlaneseq
      %v2838 = vshrl.u32 %v2837, 7
      %v2839 = vadd.s32 %v2838, 8
      %2840 = vset.pattern.permute.xlu0 %v2839
      %2841 = vperm.xlu0 %2840, %v2830
      %v2842 = vpop.permute.xlu0 %2841
      %v2843 = vperm.slane %v2068, 5
      %v2844 = vlaneseq
      %v2845 = vshrl.u32 %v2844, 7
      %2847 = vset.pattern.permute.xlu0 %v2845
      %2848 = vperm.xlu0 %2847, %v2843
      %v2849 = vpop.permute.xlu0 %2848
      %v2850 = vlaneseq
      %v2851 = vshrl.u32 %v2850, 7
      %v2852 = vadd.s32 %v2851, 8
      %2853 = vset.pattern.permute.xlu0 %v2852
      %2854 = vperm.xlu0 %2853, %v2843
      %v2855 = vpop.permute.xlu0 %2854
      %v2856 = vperm.slane %v2068, 6
      %v2857 = vlaneseq
      %v2858 = vshrl.u32 %v2857, 7
      %2860 = vset.pattern.permute.xlu0 %v2858
      %2861 = vperm.xlu0 %2860, %v2856
      %v2862 = vpop.permute.xlu0 %2861
      %v2863 = vlaneseq
      %v2864 = vshrl.u32 %v2863, 7
      %v2865 = vadd.s32 %v2864, 8
      %2866 = vset.pattern.permute.xlu0 %v2865
      %2867 = vperm.xlu0 %2866, %v2856
      %v2868 = vpop.permute.xlu0 %2867
      %v2869 = vperm.slane %v2068, 7
      %v2870 = vlaneseq
      %v2871 = vshrl.u32 %v2870, 7
      %2873 = vset.pattern.permute.xlu0 %v2871
      %2874 = vperm.xlu0 %2873, %v2869
      %v2875 = vpop.permute.xlu0 %2874
      %v2876 = vlaneseq
      %v2877 = vshrl.u32 %v2876, 7
      %v2878 = vadd.s32 %v2877, 8
      %2879 = vset.pattern.permute.xlu0 %v2878
      %2880 = vperm.xlu0 %2879, %v2869
      %v2881 = vpop.permute.xlu0 %2880
      %v2882 = vperm.slane %v2083, 0
      %v2883 = vlaneseq
      %v2884 = vshrl.u32 %v2883, 7
      %2886 = vset.pattern.permute.xlu0 %v2884
      %2887 = vperm.xlu0 %2886, %v2882
      %v2888 = vpop.permute.xlu0 %2887
      %v2889 = vlaneseq
      %v2890 = vshrl.u32 %v2889, 7
      %v2891 = vadd.s32 %v2890, 8
      %2892 = vset.pattern.permute.xlu0 %v2891
      %2893 = vperm.xlu0 %2892, %v2882
      %v2894 = vpop.permute.xlu0 %2893
      %v2895 = vperm.slane %v2083, 1
      %v2896 = vlaneseq
      %v2897 = vshrl.u32 %v2896, 7
      %2899 = vset.pattern.permute.xlu0 %v2897
      %2900 = vperm.xlu0 %2899, %v2895
      %v2901 = vpop.permute.xlu0 %2900
      %v2902 = vlaneseq
      %v2903 = vshrl.u32 %v2902, 7
      %v2904 = vadd.s32 %v2903, 8
      %2905 = vset.pattern.permute.xlu0 %v2904
      %2906 = vperm.xlu0 %2905, %v2895
      %v2907 = vpop.permute.xlu0 %2906
      %v2908 = vperm.slane %v2083, 2
      %v2909 = vlaneseq
      %v2910 = vshrl.u32 %v2909, 7
      %2912 = vset.pattern.permute.xlu0 %v2910
      %2913 = vperm.xlu0 %2912, %v2908
      %v2914 = vpop.permute.xlu0 %2913
      %v2915 = vlaneseq
      %v2916 = vshrl.u32 %v2915, 7
      %v2917 = vadd.s32 %v2916, 8
      %2918 = vset.pattern.permute.xlu0 %v2917
      %2919 = vperm.xlu0 %2918, %v2908
      %v2920 = vpop.permute.xlu0 %2919
      %v2921 = vperm.slane %v2083, 3
      %v2922 = vlaneseq
      %v2923 = vshrl.u32 %v2922, 7
      %2925 = vset.pattern.permute.xlu0 %v2923
      %2926 = vperm.xlu0 %2925, %v2921
      %v2927 = vpop.permute.xlu0 %2926
      %v2928 = vlaneseq
      %v2929 = vshrl.u32 %v2928, 7
      %v2930 = vadd.s32 %v2929, 8
      %2931 = vset.pattern.permute.xlu0 %v2930
      %2932 = vperm.xlu0 %2931, %v2921
      %v2933 = vpop.permute.xlu0 %2932
      %v2934 = vperm.slane %v2083, 4
      %v2935 = vlaneseq
      %v2936 = vshrl.u32 %v2935, 7
      %2938 = vset.pattern.permute.xlu0 %v2936
      %2939 = vperm.xlu0 %2938, %v2934
      %v2940 = vpop.permute.xlu0 %2939
      %v2941 = vlaneseq
      %v2942 = vshrl.u32 %v2941, 7
      %v2943 = vadd.s32 %v2942, 8
      %2944 = vset.pattern.permute.xlu0 %v2943
      %2945 = vperm.xlu0 %2944, %v2934
      %v2946 = vpop.permute.xlu0 %2945
      %v2947 = vperm.slane %v2083, 5
      %v2948 = vlaneseq
      %v2949 = vshrl.u32 %v2948, 7
      %2951 = vset.pattern.permute.xlu0 %v2949
      %2952 = vperm.xlu0 %2951, %v2947
      %v2953 = vpop.permute.xlu0 %2952
      %v2954 = vlaneseq
      %v2955 = vshrl.u32 %v2954, 7
      %v2956 = vadd.s32 %v2955, 8
      %2957 = vset.pattern.permute.xlu0 %v2956
      %2958 = vperm.xlu0 %2957, %v2947
      %v2959 = vpop.permute.xlu0 %2958
      %v2960 = vperm.slane %v2083, 6
      %v2961 = vlaneseq
      %v2962 = vshrl.u32 %v2961, 7
      %2964 = vset.pattern.permute.xlu0 %v2962
      %2965 = vperm.xlu0 %2964, %v2960
      %v2966 = vpop.permute.xlu0 %2965
      %v2967 = vlaneseq
      %v2968 = vshrl.u32 %v2967, 7
      %v2969 = vadd.s32 %v2968, 8
      %2970 = vset.pattern.permute.xlu0 %v2969
      %2971 = vperm.xlu0 %2970, %v2960
      %v2972 = vpop.permute.xlu0 %2971
      %v2973 = vperm.slane %v2083, 7
      %v2974 = vlaneseq
      %v2975 = vshrl.u32 %v2974, 7
      %2977 = vset.pattern.permute.xlu0 %v2975
      %2978 = vperm.xlu0 %2977, %v2973
      %v2979 = vpop.permute.xlu0 %2978
      %v2980 = vlaneseq
      %v2981 = vshrl.u32 %v2980, 7
      %v2982 = vadd.s32 %v2981, 8
      %2983 = vset.pattern.permute.xlu0 %v2982
      %2984 = vperm.xlu0 %2983, %v2973
      %v2985 = vpop.permute.xlu0 %2984
      %v2986 = vperm.slane %v2098, 0
      %v2987 = vlaneseq
      %v2988 = vshrl.u32 %v2987, 7
      %2990 = vset.pattern.permute.xlu0 %v2988
      %2991 = vperm.xlu0 %2990, %v2986
      %v2992 = vpop.permute.xlu0 %2991
      %v2993 = vlaneseq
      %v2994 = vshrl.u32 %v2993, 7
      %v2995 = vadd.s32 %v2994, 8
      %2996 = vset.pattern.permute.xlu0 %v2995
      %2997 = vperm.xlu0 %2996, %v2986
      %v2998 = vpop.permute.xlu0 %2997
      %v2999 = vperm.slane %v2098, 1
      %v3000 = vlaneseq
      %v3001 = vshrl.u32 %v3000, 7
      %3003 = vset.pattern.permute.xlu0 %v3001
      %3004 = vperm.xlu0 %3003, %v2999
      %v3005 = vpop.permute.xlu0 %3004
      %v3006 = vlaneseq
      %v3007 = vshrl.u32 %v3006, 7
      %v3008 = vadd.s32 %v3007, 8
      %3009 = vset.pattern.permute.xlu0 %v3008
      %3010 = vperm.xlu0 %3009, %v2999
      %v3011 = vpop.permute.xlu0 %3010
      %v3012 = vperm.slane %v2098, 2
      %v3013 = vlaneseq
      %v3014 = vshrl.u32 %v3013, 7
      %3016 = vset.pattern.permute.xlu0 %v3014
      %3017 = vperm.xlu0 %3016, %v3012
      %v3018 = vpop.permute.xlu0 %3017
      %v3019 = vlaneseq
      %v3020 = vshrl.u32 %v3019, 7
      %v3021 = vadd.s32 %v3020, 8
      %3022 = vset.pattern.permute.xlu0 %v3021
      %3023 = vperm.xlu0 %3022, %v3012
      %v3024 = vpop.permute.xlu0 %3023
      %v3025 = vperm.slane %v2098, 3
      %v3026 = vlaneseq
      %v3027 = vshrl.u32 %v3026, 7
      %3029 = vset.pattern.permute.xlu0 %v3027
      %3030 = vperm.xlu0 %3029, %v3025
      %v3031 = vpop.permute.xlu0 %3030
      %v3032 = vlaneseq
      %v3033 = vshrl.u32 %v3032, 7
      %v3034 = vadd.s32 %v3033, 8
      %3035 = vset.pattern.permute.xlu0 %v3034
      %3036 = vperm.xlu0 %3035, %v3025
      %v3037 = vpop.permute.xlu0 %3036
      %v3038 = vperm.slane %v2098, 4
      %v3039 = vlaneseq
      %v3040 = vshrl.u32 %v3039, 7
      %3042 = vset.pattern.permute.xlu0 %v3040
      %3043 = vperm.xlu0 %3042, %v3038
      %v3044 = vpop.permute.xlu0 %3043
      %v3045 = vlaneseq
      %v3046 = vshrl.u32 %v3045, 7
      %v3047 = vadd.s32 %v3046, 8
      %3048 = vset.pattern.permute.xlu0 %v3047
      %3049 = vperm.xlu0 %3048, %v3038
      %v3050 = vpop.permute.xlu0 %3049
      %v3051 = vperm.slane %v2098, 5
      %v3052 = vlaneseq
      %v3053 = vshrl.u32 %v3052, 7
      %3055 = vset.pattern.permute.xlu0 %v3053
      %3056 = vperm.xlu0 %3055, %v3051
      %v3057 = vpop.permute.xlu0 %3056
      %v3058 = vlaneseq
      %v3059 = vshrl.u32 %v3058, 7
      %v3060 = vadd.s32 %v3059, 8
      %3061 = vset.pattern.permute.xlu0 %v3060
      %3062 = vperm.xlu0 %3061, %v3051
      %v3063 = vpop.permute.xlu0 %3062
      %v3064 = vperm.slane %v2098, 6
      %v3065 = vlaneseq
      %v3066 = vshrl.u32 %v3065, 7
      %3068 = vset.pattern.permute.xlu0 %v3066
      %3069 = vperm.xlu0 %3068, %v3064
      %v3070 = vpop.permute.xlu0 %3069
      %v3071 = vlaneseq
      %v3072 = vshrl.u32 %v3071, 7
      %v3073 = vadd.s32 %v3072, 8
      %3074 = vset.pattern.permute.xlu0 %v3073
      %3075 = vperm.xlu0 %3074, %v3064
      %v3076 = vpop.permute.xlu0 %3075
      %v3077 = vperm.slane %v2098, 7
      %v3078 = vlaneseq
      %v3079 = vshrl.u32 %v3078, 7
      %3081 = vset.pattern.permute.xlu0 %v3079
      %3082 = vperm.xlu0 %3081, %v3077
      %v3083 = vpop.permute.xlu0 %3082
      %v3084 = vlaneseq
      %v3085 = vshrl.u32 %v3084, 7
      %v3086 = vadd.s32 %v3085, 8
      %3087 = vset.pattern.permute.xlu0 %v3086
      %3088 = vperm.xlu0 %3087, %v3077
      %v3089 = vpop.permute.xlu0 %3088
      %v3090 = vperm.slane %v2113, 0
      %v3091 = vlaneseq
      %v3092 = vshrl.u32 %v3091, 7
      %3094 = vset.pattern.permute.xlu0 %v3092
      %3095 = vperm.xlu0 %3094, %v3090
      %v3096 = vpop.permute.xlu0 %3095
      %v3097 = vlaneseq
      %v3098 = vshrl.u32 %v3097, 7
      %v3099 = vadd.s32 %v3098, 8
      %3100 = vset.pattern.permute.xlu0 %v3099
      %3101 = vperm.xlu0 %3100, %v3090
      %v3102 = vpop.permute.xlu0 %3101
      %v3103 = vperm.slane %v2113, 1
      %v3104 = vlaneseq
      %v3105 = vshrl.u32 %v3104, 7
      %3107 = vset.pattern.permute.xlu0 %v3105
      %3108 = vperm.xlu0 %3107, %v3103
      %v3109 = vpop.permute.xlu0 %3108
      %v3110 = vlaneseq
      %v3111 = vshrl.u32 %v3110, 7
      %v3112 = vadd.s32 %v3111, 8
      %3113 = vset.pattern.permute.xlu0 %v3112
      %3114 = vperm.xlu0 %3113, %v3103
      %v3115 = vpop.permute.xlu0 %3114
      %v3116 = vperm.slane %v2113, 2
      %v3117 = vlaneseq
      %v3118 = vshrl.u32 %v3117, 7
      %3120 = vset.pattern.permute.xlu0 %v3118
      %3121 = vperm.xlu0 %3120, %v3116
      %v3122 = vpop.permute.xlu0 %3121
      %v3123 = vlaneseq
      %v3124 = vshrl.u32 %v3123, 7
      %v3125 = vadd.s32 %v3124, 8
      %3126 = vset.pattern.permute.xlu0 %v3125
      %3127 = vperm.xlu0 %3126, %v3116
      %v3128 = vpop.permute.xlu0 %3127
      %v3129 = vperm.slane %v2113, 3
      %v3130 = vlaneseq
      %v3131 = vshrl.u32 %v3130, 7
      %3133 = vset.pattern.permute.xlu0 %v3131
      %3134 = vperm.xlu0 %3133, %v3129
      %v3135 = vpop.permute.xlu0 %3134
      %v3136 = vlaneseq
      %v3137 = vshrl.u32 %v3136, 7
      %v3138 = vadd.s32 %v3137, 8
      %3139 = vset.pattern.permute.xlu0 %v3138
      %3140 = vperm.xlu0 %3139, %v3129
      %v3141 = vpop.permute.xlu0 %3140
      %v3142 = vperm.slane %v2113, 4
      %v3143 = vlaneseq
      %v3144 = vshrl.u32 %v3143, 7
      %3146 = vset.pattern.permute.xlu0 %v3144
      %3147 = vperm.xlu0 %3146, %v3142
      %v3148 = vpop.permute.xlu0 %3147
      %v3149 = vlaneseq
      %v3150 = vshrl.u32 %v3149, 7
      %v3151 = vadd.s32 %v3150, 8
      %3152 = vset.pattern.permute.xlu0 %v3151
      %3153 = vperm.xlu0 %3152, %v3142
      %v3154 = vpop.permute.xlu0 %3153
      %v3155 = vperm.slane %v2113, 5
      %v3156 = vlaneseq
      %v3157 = vshrl.u32 %v3156, 7
      %3159 = vset.pattern.permute.xlu0 %v3157
      %3160 = vperm.xlu0 %3159, %v3155
      %v3161 = vpop.permute.xlu0 %3160
      %v3162 = vlaneseq
      %v3163 = vshrl.u32 %v3162, 7
      %v3164 = vadd.s32 %v3163, 8
      %3165 = vset.pattern.permute.xlu0 %v3164
      %3166 = vperm.xlu0 %3165, %v3155
      %v3167 = vpop.permute.xlu0 %3166
      %v3168 = vperm.slane %v2113, 6
      %v3169 = vlaneseq
      %v3170 = vshrl.u32 %v3169, 7
      %3172 = vset.pattern.permute.xlu0 %v3170
      %3173 = vperm.xlu0 %3172, %v3168
      %v3174 = vpop.permute.xlu0 %3173
      %v3175 = vlaneseq
      %v3176 = vshrl.u32 %v3175, 7
      %v3177 = vadd.s32 %v3176, 8
      %3178 = vset.pattern.permute.xlu0 %v3177
      %3179 = vperm.xlu0 %3178, %v3168
      %v3180 = vpop.permute.xlu0 %3179
      %v3181 = vperm.slane %v2113, 7
      %v3182 = vlaneseq
      %v3183 = vshrl.u32 %v3182, 7
      %3185 = vset.pattern.permute.xlu0 %v3183
      %3186 = vperm.xlu0 %3185, %v3181
      %v3187 = vpop.permute.xlu0 %3186
      %v3188 = vlaneseq
      %v3189 = vshrl.u32 %v3188, 7
      %v3190 = vadd.s32 %v3189, 8
      %3191 = vset.pattern.permute.xlu0 %v3190
      %3192 = vperm.xlu0 %3191, %v3181
      %v3193 = vpop.permute.xlu0 %3192
      %v3194 = vperm.slane %v2128, 0
      %v3195 = vlaneseq
      %v3196 = vshrl.u32 %v3195, 7
      %3198 = vset.pattern.permute.xlu0 %v3196
      %3199 = vperm.xlu0 %3198, %v3194
      %v3200 = vpop.permute.xlu0 %3199
      %v3201 = vlaneseq
      %v3202 = vshrl.u32 %v3201, 7
      %v3203 = vadd.s32 %v3202, 8
      %3204 = vset.pattern.permute.xlu0 %v3203
      %3205 = vperm.xlu0 %3204, %v3194
      %v3206 = vpop.permute.xlu0 %3205
      %v3207 = vperm.slane %v2128, 1
      %v3208 = vlaneseq
      %v3209 = vshrl.u32 %v3208, 7
      %3211 = vset.pattern.permute.xlu0 %v3209
      %3212 = vperm.xlu0 %3211, %v3207
      %v3213 = vpop.permute.xlu0 %3212
      %v3214 = vlaneseq
      %v3215 = vshrl.u32 %v3214, 7
      %v3216 = vadd.s32 %v3215, 8
      %3217 = vset.pattern.permute.xlu0 %v3216
      %3218 = vperm.xlu0 %3217, %v3207
      %v3219 = vpop.permute.xlu0 %3218
      %v3220 = vperm.slane %v2128, 2
      %v3221 = vlaneseq
      %v3222 = vshrl.u32 %v3221, 7
      %3224 = vset.pattern.permute.xlu0 %v3222
      %3225 = vperm.xlu0 %3224, %v3220
      %v3226 = vpop.permute.xlu0 %3225
      %v3227 = vlaneseq
      %v3228 = vshrl.u32 %v3227, 7
      %v3229 = vadd.s32 %v3228, 8
      %3230 = vset.pattern.permute.xlu0 %v3229
      %3231 = vperm.xlu0 %3230, %v3220
      %v3232 = vpop.permute.xlu0 %3231
      %v3233 = vperm.slane %v2128, 3
      %v3234 = vlaneseq
      %v3235 = vshrl.u32 %v3234, 7
      %3237 = vset.pattern.permute.xlu0 %v3235
      %3238 = vperm.xlu0 %3237, %v3233
      %v3239 = vpop.permute.xlu0 %3238
      %v3240 = vlaneseq
      %v3241 = vshrl.u32 %v3240, 7
      %v3242 = vadd.s32 %v3241, 8
      %3243 = vset.pattern.permute.xlu0 %v3242
      %3244 = vperm.xlu0 %3243, %v3233
      %v3245 = vpop.permute.xlu0 %3244
      %v3246 = vperm.slane %v2128, 4
      %v3247 = vlaneseq
      %v3248 = vshrl.u32 %v3247, 7
      %3250 = vset.pattern.permute.xlu0 %v3248
      %3251 = vperm.xlu0 %3250, %v3246
      %v3252 = vpop.permute.xlu0 %3251
      %v3253 = vlaneseq
      %v3254 = vshrl.u32 %v3253, 7
      %v3255 = vadd.s32 %v3254, 8
      %3256 = vset.pattern.permute.xlu0 %v3255
      %3257 = vperm.xlu0 %3256, %v3246
      %v3258 = vpop.permute.xlu0 %3257
      %v3259 = vperm.slane %v2128, 5
      %v3260 = vlaneseq
      %v3261 = vshrl.u32 %v3260, 7
      %3263 = vset.pattern.permute.xlu0 %v3261
      %3264 = vperm.xlu0 %3263, %v3259
      %v3265 = vpop.permute.xlu0 %3264
      %v3266 = vlaneseq
      %v3267 = vshrl.u32 %v3266, 7
      %v3268 = vadd.s32 %v3267, 8
      %3269 = vset.pattern.permute.xlu0 %v3268
      %3270 = vperm.xlu0 %3269, %v3259
      %v3271 = vpop.permute.xlu0 %3270
      %v3272 = vperm.slane %v2128, 6
      %v3273 = vlaneseq
      %v3274 = vshrl.u32 %v3273, 7
      %3276 = vset.pattern.permute.xlu0 %v3274
      %3277 = vperm.xlu0 %3276, %v3272
      %v3278 = vpop.permute.xlu0 %3277
      %v3279 = vlaneseq
      %v3280 = vshrl.u32 %v3279, 7
      %v3281 = vadd.s32 %v3280, 8
      %3282 = vset.pattern.permute.xlu0 %v3281
      %3283 = vperm.xlu0 %3282, %v3272
      %v3284 = vpop.permute.xlu0 %3283
      %v3285 = vperm.slane %v2128, 7
      %v3286 = vlaneseq
      %v3287 = vshrl.u32 %v3286, 7
      %3289 = vset.pattern.permute.xlu0 %v3287
      %3290 = vperm.xlu0 %3289, %v3285
      %v3291 = vpop.permute.xlu0 %3290
      %v3292 = vlaneseq
      %v3293 = vshrl.u32 %v3292, 7
      %v3294 = vadd.s32 %v3293, 8
      %3295 = vset.pattern.permute.xlu0 %v3294
      %3296 = vperm.xlu0 %3295, %v3285
      %v3297 = vpop.permute.xlu0 %3296
      %v3298 = vperm.slane %v2143, 0
      %v3299 = vlaneseq
      %v3300 = vshrl.u32 %v3299, 7
      %3302 = vset.pattern.permute.xlu0 %v3300
      %3303 = vperm.xlu0 %3302, %v3298
      %v3304 = vpop.permute.xlu0 %3303
      %v3305 = vlaneseq
      %v3306 = vshrl.u32 %v3305, 7
      %v3307 = vadd.s32 %v3306, 8
      %3308 = vset.pattern.permute.xlu0 %v3307
      %3309 = vperm.xlu0 %3308, %v3298
      %v3310 = vpop.permute.xlu0 %3309
      %v3311 = vperm.slane %v2143, 1
      %v3312 = vlaneseq
      %v3313 = vshrl.u32 %v3312, 7
      %3315 = vset.pattern.permute.xlu0 %v3313
      %3316 = vperm.xlu0 %3315, %v3311
      %v3317 = vpop.permute.xlu0 %3316
      %v3318 = vlaneseq
      %v3319 = vshrl.u32 %v3318, 7
      %v3320 = vadd.s32 %v3319, 8
      %3321 = vset.pattern.permute.xlu0 %v3320
      %3322 = vperm.xlu0 %3321, %v3311
      %v3323 = vpop.permute.xlu0 %3322
      %v3324 = vperm.slane %v2143, 2
      %v3325 = vlaneseq
      %v3326 = vshrl.u32 %v3325, 7
      %3328 = vset.pattern.permute.xlu0 %v3326
      %3329 = vperm.xlu0 %3328, %v3324
      %v3330 = vpop.permute.xlu0 %3329
      %v3331 = vlaneseq
      %v3332 = vshrl.u32 %v3331, 7
      %v3333 = vadd.s32 %v3332, 8
      %3334 = vset.pattern.permute.xlu0 %v3333
      %3335 = vperm.xlu0 %3334, %v3324
      %v3336 = vpop.permute.xlu0 %3335
      %v3337 = vperm.slane %v2143, 3
      %v3338 = vlaneseq
      %v3339 = vshrl.u32 %v3338, 7
      %3341 = vset.pattern.permute.xlu0 %v3339
      %3342 = vperm.xlu0 %3341, %v3337
      %v3343 = vpop.permute.xlu0 %3342
      %v3344 = vlaneseq
      %v3345 = vshrl.u32 %v3344, 7
      %v3346 = vadd.s32 %v3345, 8
      %3347 = vset.pattern.permute.xlu0 %v3346
      %3348 = vperm.xlu0 %3347, %v3337
      %v3349 = vpop.permute.xlu0 %3348
      %v3350 = vperm.slane %v2143, 4
      %v3351 = vlaneseq
      %v3352 = vshrl.u32 %v3351, 7
      %3354 = vset.pattern.permute.xlu0 %v3352
      %3355 = vperm.xlu0 %3354, %v3350
      %v3356 = vpop.permute.xlu0 %3355
      %v3357 = vlaneseq
      %v3358 = vshrl.u32 %v3357, 7
      %v3359 = vadd.s32 %v3358, 8
      %3360 = vset.pattern.permute.xlu0 %v3359
      %3361 = vperm.xlu0 %3360, %v3350
      %v3362 = vpop.permute.xlu0 %3361
      %v3363 = vperm.slane %v2143, 5
      %v3364 = vlaneseq
      %v3365 = vshrl.u32 %v3364, 7
      %3367 = vset.pattern.permute.xlu0 %v3365
      %3368 = vperm.xlu0 %3367, %v3363
      %v3369 = vpop.permute.xlu0 %3368
      %v3370 = vlaneseq
      %v3371 = vshrl.u32 %v3370, 7
      %v3372 = vadd.s32 %v3371, 8
      %3373 = vset.pattern.permute.xlu0 %v3372
      %3374 = vperm.xlu0 %3373, %v3363
      %v3375 = vpop.permute.xlu0 %3374
      %v3376 = vperm.slane %v2143, 6
      %v3377 = vlaneseq
      %v3378 = vshrl.u32 %v3377, 7
      %3380 = vset.pattern.permute.xlu0 %v3378
      %3381 = vperm.xlu0 %3380, %v3376
      %v3382 = vpop.permute.xlu0 %3381
      %v3383 = vlaneseq
      %v3384 = vshrl.u32 %v3383, 7
      %v3385 = vadd.s32 %v3384, 8
      %3386 = vset.pattern.permute.xlu0 %v3385
      %3387 = vperm.xlu0 %3386, %v3376
      %v3388 = vpop.permute.xlu0 %3387
      %v3389 = vperm.slane %v2143, 7
      %v3390 = vlaneseq
      %v3391 = vshrl.u32 %v3390, 7
      %3393 = vset.pattern.permute.xlu0 %v3391
      %3394 = vperm.xlu0 %3393, %v3389
      %v3395 = vpop.permute.xlu0 %3394
      %v3396 = vlaneseq
      %v3397 = vshrl.u32 %v3396, 7
      %v3398 = vadd.s32 %v3397, 8
      %3399 = vset.pattern.permute.xlu0 %v3398
      %3400 = vperm.xlu0 %3399, %v3389
      %v3401 = vpop.permute.xlu0 %3400
      %v3402 = vmul.f32 %v279, %v2576
      %v3403 = vmul.f32 %v280, %v2582
      %v3404 = vmul.f32 %v281, %v2589
      %v3405 = vmul.f32 %v282, %v2595
      %v3406 = vmul.f32 %v283, %v2602
      %v3407 = vmul.f32 %v284, %v2608
      %v3408 = vmul.f32 %v285, %v2615
      %v3409 = vmul.f32 %v286, %v2621
      %v3410 = vmul.f32 %v287, %v2628
      %v3411 = vmul.f32 %v288, %v2634
      %v3412 = vmul.f32 %v289, %v2641
      %v3413 = vmul.f32 %v290, %v2647
      %v3414 = vmul.f32 %v291, %v2654
      %v3415 = vmul.f32 %v292, %v2660
      %v3416 = vmul.f32 %v293, %v2667
      %v3417 = vmul.f32 %v294, %v2673
      %v3418 = vmul.f32 %v295, %v2680
      %v3419 = vmul.f32 %v296, %v2686
      %v3420 = vmul.f32 %v297, %v2693
      %v3421 = vmul.f32 %v298, %v2699
      %v3422 = vmul.f32 %v299, %v2706
      %v3423 = vmul.f32 %v300, %v2712
      %v3424 = vmul.f32 %v301, %v2719
      %v3425 = vmul.f32 %v302, %v2725
      %v3426 = vmul.f32 %v303, %v2732
      %v3427 = vmul.f32 %v304, %v2738
      %v3428 = vmul.f32 %v305, %v2745
      %v3429 = vmul.f32 %v306, %v2751
      %v3430 = vmul.f32 %v307, %v2758
      %v3431 = vmul.f32 %v308, %v2764
      %v3432 = vmul.f32 %v309, %v2771
      %v3433 = vmul.f32 %v310, %v2777
      %v3434 = vmul.f32 %v311, %v2784
      %v3435 = vmul.f32 %v312, %v2790
      %v3436 = vmul.f32 %v313, %v2797
      %v3437 = vmul.f32 %v314, %v2803
      %v3438 = vmul.f32 %v315, %v2810
      %v3439 = vmul.f32 %v316, %v2816
      %v3440 = vmul.f32 %v317, %v2823
      %v3441 = vmul.f32 %v318, %v2829
      %v3442 = vmul.f32 %v319, %v2836
      %v3443 = vmul.f32 %v320, %v2842
      %v3444 = vmul.f32 %v321, %v2849
      %v3445 = vmul.f32 %v322, %v2855
      %v3446 = vmul.f32 %v323, %v2862
      %v3447 = vmul.f32 %v324, %v2868
      %v3448 = vmul.f32 %v325, %v2875
      %v3449 = vmul.f32 %v326, %v2881
      %v3450 = vmul.f32 %v327, %v2888
      %v3451 = vmul.f32 %v328, %v2894
      %v3452 = vmul.f32 %v329, %v2901
      %v3453 = vmul.f32 %v330, %v2907
      %v3454 = vmul.f32 %v331, %v2914
      %v3455 = vmul.f32 %v332, %v2920
      %v3456 = vmul.f32 %v333, %v2927
      %v3457 = vmul.f32 %v334, %v2933
      %v3458 = vmul.f32 %v335, %v2940
      %v3459 = vmul.f32 %v336, %v2946
      %v3460 = vmul.f32 %v337, %v2953
      %v3461 = vmul.f32 %v338, %v2959
      %v3462 = vmul.f32 %v339, %v2966
      %v3463 = vmul.f32 %v340, %v2972
      %v3464 = vmul.f32 %v341, %v2979
      %v3465 = vmul.f32 %v342, %v2985
      %v3466 = vmul.f32 %v343, %v2992
      %v3467 = vmul.f32 %v344, %v2998
      %v3468 = vmul.f32 %v345, %v3005
      %v3469 = vmul.f32 %v346, %v3011
      %v3470 = vmul.f32 %v347, %v3018
      %v3471 = vmul.f32 %v348, %v3024
      %v3472 = vmul.f32 %v349, %v3031
      %v3473 = vmul.f32 %v350, %v3037
      %v3474 = vmul.f32 %v351, %v3044
      %v3475 = vmul.f32 %v352, %v3050
      %v3476 = vmul.f32 %v353, %v3057
      %v3477 = vmul.f32 %v354, %v3063
      %v3478 = vmul.f32 %v355, %v3070
      %v3479 = vmul.f32 %v356, %v3076
      %v3480 = vmul.f32 %v357, %v3083
      %v3481 = vmul.f32 %v358, %v3089
      %v3482 = vmul.f32 %v359, %v3096
      %v3483 = vmul.f32 %v360, %v3102
      %v3484 = vmul.f32 %v361, %v3109
      %v3485 = vmul.f32 %v362, %v3115
      %v3486 = vmul.f32 %v363, %v3122
      %v3487 = vmul.f32 %v364, %v3128
      %v3488 = vmul.f32 %v365, %v3135
      %v3489 = vmul.f32 %v366, %v3141
      %v3490 = vmul.f32 %v367, %v3148
      %v3491 = vmul.f32 %v368, %v3154
      %v3492 = vmul.f32 %v369, %v3161
      %v3493 = vmul.f32 %v370, %v3167
      %v3494 = vmul.f32 %v371, %v3174
      %v3495 = vmul.f32 %v372, %v3180
      %v3496 = vmul.f32 %v373, %v3187
      %v3497 = vmul.f32 %v374, %v3193
      %v3498 = vmul.f32 %v375, %v3200
      %v3499 = vmul.f32 %v376, %v3206
      %v3500 = vmul.f32 %v377, %v3213
      %v3501 = vmul.f32 %v378, %v3219
      %v3502 = vmul.f32 %v379, %v3226
      %v3503 = vmul.f32 %v380, %v3232
      %v3504 = vmul.f32 %v381, %v3239
      %v3505 = vmul.f32 %v382, %v3245
      %v3506 = vmul.f32 %v383, %v3252
      %v3507 = vmul.f32 %v384, %v3258
      %v3508 = vmul.f32 %v385, %v3265
      %v3509 = vmul.f32 %v386, %v3271
      %v3510 = vmul.f32 %v387, %v3278
      %v3511 = vmul.f32 %v388, %v3284
      %v3512 = vmul.f32 %v389, %v3291
      %v3513 = vmul.f32 %v390, %v3297
      %v3514 = vmul.f32 %v391, %v3304
      %v3515 = vmul.f32 %v392, %v3310
      %v3516 = vmul.f32 %v393, %v3317
      %v3517 = vmul.f32 %v394, %v3323
      %v3518 = vmul.f32 %v395, %v3330
      %v3519 = vmul.f32 %v396, %v3336
      %v3520 = vmul.f32 %v397, %v3343
      %v3521 = vmul.f32 %v398, %v3349
      %v3522 = vmul.f32 %v399, %v3356
      %v3523 = vmul.f32 %v400, %v3362
      %v3524 = vmul.f32 %v401, %v3369
      %v3525 = vmul.f32 %v402, %v3375
      %v3526 = vmul.f32 %v403, %v3382
      %v3527 = vmul.f32 %v404, %v3388
      %v3528 = vmul.f32 %v405, %v3395
      %v3529 = vmul.f32 %v406, %v3401
      %v3538 = vrot.slane %v2464, 1
      %v3539 = vrot.slane %v2464, 2
      %v3540 = vrot.slane %v2464, 3
      %v3541 = vrot.slane %v2464, 4
      %v3542 = vrot.slane %v2464, 5
      %v3543 = vrot.slane %v2464, 6
      %v3544 = vrot.slane %v2464, 7
      %v3545 = vrot.slane %v2479, 1
      %v3546 = vrot.slane %v2479, 2
      %v3547 = vrot.slane %v2479, 3
      %v3548 = vrot.slane %v2479, 4
      %v3549 = vrot.slane %v2479, 5
      %v3550 = vrot.slane %v2479, 6
      %v3551 = vrot.slane %v2479, 7
      %v3552 = vrot.slane %v2494, 1
      %v3553 = vrot.slane %v2494, 2
      %v3554 = vrot.slane %v2494, 3
      %v3555 = vrot.slane %v2494, 4
      %v3556 = vrot.slane %v2494, 5
      %v3557 = vrot.slane %v2494, 6
      %v3558 = vrot.slane %v2494, 7
      %v3559 = vrot.slane %v2509, 1
      %v3560 = vrot.slane %v2509, 2
      %v3561 = vrot.slane %v2509, 3
      %v3562 = vrot.slane %v2509, 4
      %v3563 = vrot.slane %v2509, 5
      %v3564 = vrot.slane %v2509, 6
      %v3565 = vrot.slane %v2509, 7
      %v3566 = vrot.slane %v2524, 1
      %v3567 = vrot.slane %v2524, 2
      %v3568 = vrot.slane %v2524, 3
      %v3569 = vrot.slane %v2524, 4
      %v3570 = vrot.slane %v2524, 5
      %v3571 = vrot.slane %v2524, 6
      %v3572 = vrot.slane %v2524, 7
      %v3573 = vrot.slane %v2539, 1
      %v3574 = vrot.slane %v2539, 2
      %v3575 = vrot.slane %v2539, 3
      %v3576 = vrot.slane %v2539, 4
      %v3577 = vrot.slane %v2539, 5
      %v3578 = vrot.slane %v2539, 6
      %v3579 = vrot.slane %v2539, 7
      %v3580 = vrot.slane %v2554, 1
      %v3581 = vrot.slane %v2554, 2
      %v3582 = vrot.slane %v2554, 3
      %v3583 = vrot.slane %v2554, 4
      %v3584 = vrot.slane %v2554, 5
      %v3585 = vrot.slane %v2554, 6
      %v3586 = vrot.slane %v2554, 7
      %v3587 = vrot.slane %v2569, 1
      %v3588 = vrot.slane %v2569, 2
      %v3589 = vrot.slane %v2569, 3
      %v3590 = vrot.slane %v2569, 4
      %v3591 = vrot.slane %v2569, 5
      %v3592 = vrot.slane %v2569, 6
      %v3593 = vrot.slane %v2569, 7
      %v3594 = vperm.slane %v2464, 0
      %v3595 = vperm.slane %v3538, 0
      %v3596 = vperm.slane %v3539, 0
      %v3597 = vperm.slane %v3540, 0
      %v3598 = vperm.slane %v3541, 0
      %v3599 = vperm.slane %v3542, 0
      %v3600 = vperm.slane %v3543, 0
      %v3601 = vperm.slane %v3544, 0
      %v3602 = vperm.slane %v2479, 0
      %v3603 = vperm.slane %v3545, 0
      %v3604 = vperm.slane %v3546, 0
      %v3605 = vperm.slane %v3547, 0
      %v3606 = vperm.slane %v3548, 0
      %v3607 = vperm.slane %v3549, 0
      %v3608 = vperm.slane %v3550, 0
      %v3609 = vperm.slane %v3551, 0
      %v3610 = vperm.slane %v2494, 0
      %v3611 = vperm.slane %v3552, 0
      %v3612 = vperm.slane %v3553, 0
      %v3613 = vperm.slane %v3554, 0
      %v3614 = vperm.slane %v3555, 0
      %v3615 = vperm.slane %v3556, 0
      %v3616 = vperm.slane %v3557, 0
      %v3617 = vperm.slane %v3558, 0
      %v3618 = vperm.slane %v2509, 0
      %v3619 = vperm.slane %v3559, 0
      %v3620 = vperm.slane %v3560, 0
      %v3621 = vperm.slane %v3561, 0
      %v3622 = vperm.slane %v3562, 0
      %v3623 = vperm.slane %v3563, 0
      %v3624 = vperm.slane %v3564, 0
      %v3625 = vperm.slane %v3565, 0
      %v3626 = vperm.slane %v2524, 0
      %v3627 = vperm.slane %v3566, 0
      %v3628 = vperm.slane %v3567, 0
      %v3629 = vperm.slane %v3568, 0
      %v3630 = vperm.slane %v3569, 0
      %v3631 = vperm.slane %v3570, 0
      %v3632 = vperm.slane %v3571, 0
      %v3633 = vperm.slane %v3572, 0
      %v3634 = vperm.slane %v2539, 0
      %v3635 = vperm.slane %v3573, 0
      %v3636 = vperm.slane %v3574, 0
      %v3637 = vperm.slane %v3575, 0
      %v3638 = vperm.slane %v3576, 0
      %v3639 = vperm.slane %v3577, 0
      %v3640 = vperm.slane %v3578, 0
      %v3641 = vperm.slane %v3579, 0
      %v3642 = vperm.slane %v2554, 0
      %v3643 = vperm.slane %v3580, 0
      %v3644 = vperm.slane %v3581, 0
      %v3645 = vperm.slane %v3582, 0
      %v3646 = vperm.slane %v3583, 0
      %v3647 = vperm.slane %v3584, 0
      %v3648 = vperm.slane %v3585, 0
      %v3649 = vperm.slane %v3586, 0
      %v3650 = vperm.slane %v2569, 0
      %v3651 = vperm.slane %v3587, 0
      %v3652 = vperm.slane %v3588, 0
      %v3653 = vperm.slane %v3589, 0
      %v3654 = vperm.slane %v3590, 0
      %v3655 = vperm.slane %v3591, 0
      %v3656 = vperm.slane %v3592, 0
      %v3657 = vperm.slane %v3593, 0
      %v3722 = vmul.f32 %v3402, %v3594
      %v3723 = vmul.f32 %v3403, %v3594
      %v3724 = vmul.f32 %v3404, %v3595
      %v3725 = vmul.f32 %v3405, %v3595
      %v3726 = vmul.f32 %v3406, %v3596
      %v3727 = vmul.f32 %v3407, %v3596
      %v3728 = vmul.f32 %v3408, %v3597
      %v3729 = vmul.f32 %v3409, %v3597
      %v3730 = vmul.f32 %v3410, %v3598
      %v3731 = vmul.f32 %v3411, %v3598
      %v3732 = vmul.f32 %v3412, %v3599
      %v3733 = vmul.f32 %v3413, %v3599
      %v3734 = vmul.f32 %v3414, %v3600
      %v3735 = vmul.f32 %v3415, %v3600
      %v3736 = vmul.f32 %v3416, %v3601
      %v3737 = vmul.f32 %v3417, %v3601
      %v3738 = vmul.f32 %v3418, %v3602
      %v3739 = vmul.f32 %v3419, %v3602
      %v3740 = vmul.f32 %v3420, %v3603
      %v3741 = vmul.f32 %v3421, %v3603
      %v3742 = vmul.f32 %v3422, %v3604
      %v3743 = vmul.f32 %v3423, %v3604
      %v3744 = vmul.f32 %v3424, %v3605
      %v3745 = vmul.f32 %v3425, %v3605
      %v3746 = vmul.f32 %v3426, %v3606
      %v3747 = vmul.f32 %v3427, %v3606
      %v3748 = vmul.f32 %v3428, %v3607
      %v3749 = vmul.f32 %v3429, %v3607
      %v3750 = vmul.f32 %v3430, %v3608
      %v3751 = vmul.f32 %v3431, %v3608
      %v3752 = vmul.f32 %v3432, %v3609
      %v3753 = vmul.f32 %v3433, %v3609
      %v3754 = vmul.f32 %v3434, %v3610
      %v3755 = vmul.f32 %v3435, %v3610
      %v3756 = vmul.f32 %v3436, %v3611
      %v3757 = vmul.f32 %v3437, %v3611
      %v3758 = vmul.f32 %v3438, %v3612
      %v3759 = vmul.f32 %v3439, %v3612
      %v3760 = vmul.f32 %v3440, %v3613
      %v3761 = vmul.f32 %v3441, %v3613
      %v3762 = vmul.f32 %v3442, %v3614
      %v3763 = vmul.f32 %v3443, %v3614
      %v3764 = vmul.f32 %v3444, %v3615
      %v3765 = vmul.f32 %v3445, %v3615
      %v3766 = vmul.f32 %v3446, %v3616
      %v3767 = vmul.f32 %v3447, %v3616
      %v3768 = vmul.f32 %v3448, %v3617
      %v3769 = vmul.f32 %v3449, %v3617
      %v3770 = vmul.f32 %v3450, %v3618
      %v3771 = vmul.f32 %v3451, %v3618
      %v3772 = vmul.f32 %v3452, %v3619
      %v3773 = vmul.f32 %v3453, %v3619
      %v3774 = vmul.f32 %v3454, %v3620
      %v3775 = vmul.f32 %v3455, %v3620
      %v3776 = vmul.f32 %v3456, %v3621
      %v3777 = vmul.f32 %v3457, %v3621
      %v3778 = vmul.f32 %v3458, %v3622
      %v3779 = vmul.f32 %v3459, %v3622
      %v3780 = vmul.f32 %v3460, %v3623
      %v3781 = vmul.f32 %v3461, %v3623
      %v3782 = vmul.f32 %v3462, %v3624
      %v3783 = vmul.f32 %v3463, %v3624
      %v3784 = vmul.f32 %v3464, %v3625
      %v3785 = vmul.f32 %v3465, %v3625
      %v3786 = vmul.f32 %v3466, %v3626
      %v3787 = vmul.f32 %v3467, %v3626
      %v3788 = vmul.f32 %v3468, %v3627
      %v3789 = vmul.f32 %v3469, %v3627
      %v3790 = vmul.f32 %v3470, %v3628
      %v3791 = vmul.f32 %v3471, %v3628
      %v3792 = vmul.f32 %v3472, %v3629
      %v3793 = vmul.f32 %v3473, %v3629
      %v3794 = vmul.f32 %v3474, %v3630
      %v3795 = vmul.f32 %v3475, %v3630
      %v3796 = vmul.f32 %v3476, %v3631
      %v3797 = vmul.f32 %v3477, %v3631
      %v3798 = vmul.f32 %v3478, %v3632
      %v3799 = vmul.f32 %v3479, %v3632
      %v3800 = vmul.f32 %v3480, %v3633
      %v3801 = vmul.f32 %v3481, %v3633
      %v3802 = vmul.f32 %v3482, %v3634
      %v3803 = vmul.f32 %v3483, %v3634
      %v3804 = vmul.f32 %v3484, %v3635
      %v3805 = vmul.f32 %v3485, %v3635
      %v3806 = vmul.f32 %v3486, %v3636
      %v3807 = vmul.f32 %v3487, %v3636
      %v3808 = vmul.f32 %v3488, %v3637
      %v3809 = vmul.f32 %v3489, %v3637
      %v3810 = vmul.f32 %v3490, %v3638
      %v3811 = vmul.f32 %v3491, %v3638
      %v3812 = vmul.f32 %v3492, %v3639
      %v3813 = vmul.f32 %v3493, %v3639
      %v3814 = vmul.f32 %v3494, %v3640
      %v3815 = vmul.f32 %v3495, %v3640
      %v3816 = vmul.f32 %v3496, %v3641
      %v3817 = vmul.f32 %v3497, %v3641
      %v3818 = vmul.f32 %v3498, %v3642
      %v3819 = vmul.f32 %v3499, %v3642
      %v3820 = vmul.f32 %v3500, %v3643
      %v3821 = vmul.f32 %v3501, %v3643
      %v3822 = vmul.f32 %v3502, %v3644
      %v3823 = vmul.f32 %v3503, %v3644
      %v3824 = vmul.f32 %v3504, %v3645
      %v3825 = vmul.f32 %v3505, %v3645
      %v3826 = vmul.f32 %v3506, %v3646
      %v3827 = vmul.f32 %v3507, %v3646
      %v3828 = vmul.f32 %v3508, %v3647
      %v3829 = vmul.f32 %v3509, %v3647
      %v3830 = vmul.f32 %v3510, %v3648
      %v3831 = vmul.f32 %v3511, %v3648
      %v3832 = vmul.f32 %v3512, %v3649
      %v3833 = vmul.f32 %v3513, %v3649
      %v3834 = vmul.f32 %v3514, %v3650
      %v3835 = vmul.f32 %v3515, %v3650
      %v3836 = vmul.f32 %v3516, %v3651
      %v3837 = vmul.f32 %v3517, %v3651
      %v3838 = vmul.f32 %v3518, %v3652
      %v3839 = vmul.f32 %v3519, %v3652
      %v3840 = vmul.f32 %v3520, %v3653
      %v3841 = vmul.f32 %v3521, %v3653
      %v3842 = vmul.f32 %v3522, %v3654
      %v3843 = vmul.f32 %v3523, %v3654
      %v3844 = vmul.f32 %v3524, %v3655
      %v3845 = vmul.f32 %v3525, %v3655
      %v3846 = vmul.f32 %v3526, %v3656
      %v3847 = vmul.f32 %v3527, %v3656
      %v3848 = vmul.f32 %v3528, %v3657
      %v3849 = vmul.f32 %v3529, %v3657
      %3850 = vst.msk [vmem:[%s278] sm:$0xff] %vm407, %v3722
      %3851 = vst.msk [vmem:[%s278 + $0x8] sm:$0xff] %vm407, %v3723
      %3852 = vst.msk [vmem:[%s278 + $0x10] sm:$0xff] %vm407, %v3724
      %3853 = vst.msk [vmem:[%s278 + $0x18] sm:$0xff] %vm407, %v3725
      %3854 = vst.msk [vmem:[%s278 + $0x20] sm:$0xff] %vm407, %v3726
      %3855 = vst.msk [vmem:[%s278 + $0x28] sm:$0xff] %vm407, %v3727
      %3856 = vst.msk [vmem:[%s278 + $0x30] sm:$0xff] %vm407, %v3728
      %3857 = vst.msk [vmem:[%s278 + $0x38] sm:$0xff] %vm407, %v3729
      %3858 = vst.msk [vmem:[%s278 + $0x40] sm:$0xff] %vm407, %v3730
      %3859 = vst.msk [vmem:[%s278 + $0x48] sm:$0xff] %vm407, %v3731
      %3860 = vst.msk [vmem:[%s278 + $0x50] sm:$0xff] %vm407, %v3732
      %3861 = vst.msk [vmem:[%s278 + $0x58] sm:$0xff] %vm407, %v3733
      %3862 = vst.msk [vmem:[%s278 + $0x60] sm:$0xff] %vm407, %v3734
      %3863 = vst.msk [vmem:[%s278 + $0x68] sm:$0xff] %vm407, %v3735
      %3864 = vst.msk [vmem:[%s278 + $0x70] sm:$0xff] %vm407, %v3736
      %3865 = vst.msk [vmem:[%s278 + $0x78] sm:$0xff] %vm407, %v3737
      %3866 = vst.msk [vmem:[%s278 + $0x80] sm:$0xff] %vm407, %v3738
      %3867 = vst.msk [vmem:[%s278 + $0x88] sm:$0xff] %vm407, %v3739
      %3868 = vst.msk [vmem:[%s278 + $0x90] sm:$0xff] %vm407, %v3740
      %3869 = vst.msk [vmem:[%s278 + $0x98] sm:$0xff] %vm407, %v3741
      %3870 = vst.msk [vmem:[%s278 + $0xa0] sm:$0xff] %vm407, %v3742
      %3871 = vst.msk [vmem:[%s278 + $0xa8] sm:$0xff] %vm407, %v3743
      %3872 = vst.msk [vmem:[%s278 + $0xb0] sm:$0xff] %vm407, %v3744
      %3873 = vst.msk [vmem:[%s278 + $0xb8] sm:$0xff] %vm407, %v3745
      %3874 = vst.msk [vmem:[%s278 + $0xc0] sm:$0xff] %vm407, %v3746
      %3875 = vst.msk [vmem:[%s278 + $0xc8] sm:$0xff] %vm407, %v3747
      %3876 = vst.msk [vmem:[%s278 + $0xd0] sm:$0xff] %vm407, %v3748
      %3877 = vst.msk [vmem:[%s278 + $0xd8] sm:$0xff] %vm407, %v3749
      %3878 = vst.msk [vmem:[%s278 + $0xe0] sm:$0xff] %vm407, %v3750
      %3879 = vst.msk [vmem:[%s278 + $0xe8] sm:$0xff] %vm407, %v3751
      %3880 = vst.msk [vmem:[%s278 + $0xf0] sm:$0xff] %vm407, %v3752
      %3881 = vst.msk [vmem:[%s278 + $0xf8] sm:$0xff] %vm407, %v3753
      %3882 = vst.msk [vmem:[%s278 + $0x100] sm:$0xff] %vm407, %v3754
      %3883 = vst.msk [vmem:[%s278 + $0x108] sm:$0xff] %vm407, %v3755
      %3884 = vst.msk [vmem:[%s278 + $0x110] sm:$0xff] %vm407, %v3756
      %3885 = vst.msk [vmem:[%s278 + $0x118] sm:$0xff] %vm407, %v3757
      %3886 = vst.msk [vmem:[%s278 + $0x120] sm:$0xff] %vm407, %v3758
      %3887 = vst.msk [vmem:[%s278 + $0x128] sm:$0xff] %vm407, %v3759
      %3888 = vst.msk [vmem:[%s278 + $0x130] sm:$0xff] %vm407, %v3760
      %3889 = vst.msk [vmem:[%s278 + $0x138] sm:$0xff] %vm407, %v3761
      %3890 = vst.msk [vmem:[%s278 + $0x140] sm:$0xff] %vm407, %v3762
      %3891 = vst.msk [vmem:[%s278 + $0x148] sm:$0xff] %vm407, %v3763
      %3892 = vst.msk [vmem:[%s278 + $0x150] sm:$0xff] %vm407, %v3764
      %3893 = vst.msk [vmem:[%s278 + $0x158] sm:$0xff] %vm407, %v3765
      %3894 = vst.msk [vmem:[%s278 + $0x160] sm:$0xff] %vm407, %v3766
      %3895 = vst.msk [vmem:[%s278 + $0x168] sm:$0xff] %vm407, %v3767
      %3896 = vst.msk [vmem:[%s278 + $0x170] sm:$0xff] %vm407, %v3768
      %3897 = vst.msk [vmem:[%s278 + $0x178] sm:$0xff] %vm407, %v3769
      %3898 = vst.msk [vmem:[%s278 + $0x180] sm:$0xff] %vm407, %v3770
      %3899 = vst.msk [vmem:[%s278 + $0x188] sm:$0xff] %vm407, %v3771
      %3900 = vst.msk [vmem:[%s278 + $0x190] sm:$0xff] %vm407, %v3772
      %3901 = vst.msk [vmem:[%s278 + $0x198] sm:$0xff] %vm407, %v3773
      %3902 = vst.msk [vmem:[%s278 + $0x1a0] sm:$0xff] %vm407, %v3774
      %3903 = vst.msk [vmem:[%s278 + $0x1a8] sm:$0xff] %vm407, %v3775
      %3904 = vst.msk [vmem:[%s278 + $0x1b0] sm:$0xff] %vm407, %v3776
      %3905 = vst.msk [vmem:[%s278 + $0x1b8] sm:$0xff] %vm407, %v3777
      %3906 = vst.msk [vmem:[%s278 + $0x1c0] sm:$0xff] %vm407, %v3778
      %3907 = vst.msk [vmem:[%s278 + $0x1c8] sm:$0xff] %vm407, %v3779
      %3908 = vst.msk [vmem:[%s278 + $0x1d0] sm:$0xff] %vm407, %v3780
      %3909 = vst.msk [vmem:[%s278 + $0x1d8] sm:$0xff] %vm407, %v3781
      %3910 = vst.msk [vmem:[%s278 + $0x1e0] sm:$0xff] %vm407, %v3782
      %3911 = vst.msk [vmem:[%s278 + $0x1e8] sm:$0xff] %vm407, %v3783
      %3912 = vst.msk [vmem:[%s278 + $0x1f0] sm:$0xff] %vm407, %v3784
      %3913 = vst.msk [vmem:[%s278 + $0x1f8] sm:$0xff] %vm407, %v3785
      %3914 = vst.msk [vmem:[%s278 + $0x200] sm:$0xff] %vm407, %v3786
      %3915 = vst.msk [vmem:[%s278 + $0x208] sm:$0xff] %vm407, %v3787
      %3916 = vst.msk [vmem:[%s278 + $0x210] sm:$0xff] %vm407, %v3788
      %3917 = vst.msk [vmem:[%s278 + $0x218] sm:$0xff] %vm407, %v3789
      %3918 = vst.msk [vmem:[%s278 + $0x220] sm:$0xff] %vm407, %v3790
      %3919 = vst.msk [vmem:[%s278 + $0x228] sm:$0xff] %vm407, %v3791
      %3920 = vst.msk [vmem:[%s278 + $0x230] sm:$0xff] %vm407, %v3792
      %3921 = vst.msk [vmem:[%s278 + $0x238] sm:$0xff] %vm407, %v3793
      %3922 = vst.msk [vmem:[%s278 + $0x240] sm:$0xff] %vm407, %v3794
      %3923 = vst.msk [vmem:[%s278 + $0x248] sm:$0xff] %vm407, %v3795
      %3924 = vst.msk [vmem:[%s278 + $0x250] sm:$0xff] %vm407, %v3796
      %3925 = vst.msk [vmem:[%s278 + $0x258] sm:$0xff] %vm407, %v3797
      %3926 = vst.msk [vmem:[%s278 + $0x260] sm:$0xff] %vm407, %v3798
      %3927 = vst.msk [vmem:[%s278 + $0x268] sm:$0xff] %vm407, %v3799
      %3928 = vst.msk [vmem:[%s278 + $0x270] sm:$0xff] %vm407, %v3800
      %3929 = vst.msk [vmem:[%s278 + $0x278] sm:$0xff] %vm407, %v3801
      %3930 = vst.msk [vmem:[%s278 + $0x280] sm:$0xff] %vm407, %v3802
      %3931 = vst.msk [vmem:[%s278 + $0x288] sm:$0xff] %vm407, %v3803
      %3932 = vst.msk [vmem:[%s278 + $0x290] sm:$0xff] %vm407, %v3804
      %3933 = vst.msk [vmem:[%s278 + $0x298] sm:$0xff] %vm407, %v3805
      %3934 = vst.msk [vmem:[%s278 + $0x2a0] sm:$0xff] %vm407, %v3806
      %3935 = vst.msk [vmem:[%s278 + $0x2a8] sm:$0xff] %vm407, %v3807
      %3936 = vst.msk [vmem:[%s278 + $0x2b0] sm:$0xff] %vm407, %v3808
      %3937 = vst.msk [vmem:[%s278 + $0x2b8] sm:$0xff] %vm407, %v3809
      %3938 = vst.msk [vmem:[%s278 + $0x2c0] sm:$0xff] %vm407, %v3810
      %3939 = vst.msk [vmem:[%s278 + $0x2c8] sm:$0xff] %vm407, %v3811
      %3940 = vst.msk [vmem:[%s278 + $0x2d0] sm:$0xff] %vm407, %v3812
      %3941 = vst.msk [vmem:[%s278 + $0x2d8] sm:$0xff] %vm407, %v3813
      %3942 = vst.msk [vmem:[%s278 + $0x2e0] sm:$0xff] %vm407, %v3814
      %3943 = vst.msk [vmem:[%s278 + $0x2e8] sm:$0xff] %vm407, %v3815
      %3944 = vst.msk [vmem:[%s278 + $0x2f0] sm:$0xff] %vm407, %v3816
      %3945 = vst.msk [vmem:[%s278 + $0x2f8] sm:$0xff] %vm407, %v3817
      %3946 = vst.msk [vmem:[%s278 + $0x300] sm:$0xff] %vm407, %v3818
      %3947 = vst.msk [vmem:[%s278 + $0x308] sm:$0xff] %vm407, %v3819
      %3948 = vst.msk [vmem:[%s278 + $0x310] sm:$0xff] %vm407, %v3820
      %3949 = vst.msk [vmem:[%s278 + $0x318] sm:$0xff] %vm407, %v3821
      %3950 = vst.msk [vmem:[%s278 + $0x320] sm:$0xff] %vm407, %v3822
      %3951 = vst.msk [vmem:[%s278 + $0x328] sm:$0xff] %vm407, %v3823
      %3952 = vst.msk [vmem:[%s278 + $0x330] sm:$0xff] %vm407, %v3824
      %3953 = vst.msk [vmem:[%s278 + $0x338] sm:$0xff] %vm407, %v3825
      %3954 = vst.msk [vmem:[%s278 + $0x340] sm:$0xff] %vm407, %v3826
      %3955 = vst.msk [vmem:[%s278 + $0x348] sm:$0xff] %vm407, %v3827
      %3956 = vst.msk [vmem:[%s278 + $0x350] sm:$0xff] %vm407, %v3828
      %3957 = vst.msk [vmem:[%s278 + $0x358] sm:$0xff] %vm407, %v3829
      %3958 = vst.msk [vmem:[%s278 + $0x360] sm:$0xff] %vm407, %v3830
      %3959 = vst.msk [vmem:[%s278 + $0x368] sm:$0xff] %vm407, %v3831
      %3960 = vst.msk [vmem:[%s278 + $0x370] sm:$0xff] %vm407, %v3832
      %3961 = vst.msk [vmem:[%s278 + $0x378] sm:$0xff] %vm407, %v3833
      %3962 = vst.msk [vmem:[%s278 + $0x380] sm:$0xff] %vm407, %v3834
      %3963 = vst.msk [vmem:[%s278 + $0x388] sm:$0xff] %vm407, %v3835
      %3964 = vst.msk [vmem:[%s278 + $0x390] sm:$0xff] %vm407, %v3836
      %3965 = vst.msk [vmem:[%s278 + $0x398] sm:$0xff] %vm407, %v3837
      %3966 = vst.msk [vmem:[%s278 + $0x3a0] sm:$0xff] %vm407, %v3838
      %3967 = vst.msk [vmem:[%s278 + $0x3a8] sm:$0xff] %vm407, %v3839
      %3968 = vst.msk [vmem:[%s278 + $0x3b0] sm:$0xff] %vm407, %v3840
      %3969 = vst.msk [vmem:[%s278 + $0x3b8] sm:$0xff] %vm407, %v3841
      %3970 = vst.msk [vmem:[%s278 + $0x3c0] sm:$0xff] %vm407, %v3842
      %3971 = vst.msk [vmem:[%s278 + $0x3c8] sm:$0xff] %vm407, %v3843
      %3972 = vst.msk [vmem:[%s278 + $0x3d0] sm:$0xff] %vm407, %v3844
      %3973 = vst.msk [vmem:[%s278 + $0x3d8] sm:$0xff] %vm407, %v3845
      %3974 = vst.msk [vmem:[%s278 + $0x3e0] sm:$0xff] %vm407, %v3846
      %3975 = vst.msk [vmem:[%s278 + $0x3e8] sm:$0xff] %vm407, %v3847
      %3976 = vst.msk [vmem:[%s278 + $0x3f0] sm:$0xff] %vm407, %v3848
      %3977 = vst.msk [vmem:[%s278 + $0x3f8] sm:$0xff] %vm407, %v3849
      %p3978 = scmp.lt.s32.totalorder %s18, 1
      %s3979 = scalar_select %p3978, %s18, 1
      %s3980 = smul.addr %s3979, 128
      %s3981 = smul.addr %s3980, 8
      %s3982 = scalar_lea.vmem %s7, %s3981
      // Predicated region
      $region49: #{tpu_custom_call.1} parent=47 // pred_check
        %p3983 = pneg %p188
      $region50: #{tpu_custom_call.1} parent=47 // pred_check_branch
        %3985 = sbr.rel (%p3983) target = $region52
      $region51: #{tpu_custom_call.1} parent=47 // pred_region
        _
      $region52: #{tpu_custom_call.1} parent=47 // pred_fallthru
        _
    $region48: #{tpu_custom_call.1} parent=5 // pred_fallthru
      _
    %p3986 = scmp.le.s32.totalorder 2, %s13
    // Predicated region
    $region53: #{tpu_custom_call.1} parent=5 // pred_check
      %p3987 = pneg %p3986
    $region54: #{tpu_custom_call.1} parent=5 // pred_check_branch
      %3989 = sbr.rel (%p3987) target = $region56
    $region55: #{tpu_custom_call.1} parent=5 // pred_region
      %s3990 = ssub.s32 %s13, 2
      // Predicated region
      $region57: #{tpu_custom_call.1} parent=55 // pred_check
        %p3991 = pneg %p194
      $region58: #{tpu_custom_call.1} parent=55 // pred_check_branch
        %3993 = sbr.rel (%p3991) target = $region60
      $region59: #{tpu_custom_call.1} parent=55 // pred_region
        %p3994 = scmp.lt.s32.totalorder %s19, 1
        %s3995 = scalar_select %p3994, %s19, 1
        %s3996 = smul.addr %s3995, 128
        %s3997 = smul.addr %s3996, 8
        %s3998 = scalar_lea.vmem %s7, %s3997
      $region60: #{tpu_custom_call.1} parent=55 // pred_fallthru
        _
    $region56: #{tpu_custom_call.1} parent=5 // pred_fallthru
      _
  $region6: #{tpu_custom_call.1} parent=0 // loop_footer
    %s17 = sadd.s32 1, %s13
  $region7: #{tpu_custom_call.1} parent=0 // loop_footer_branch
    %12 = sbr.rel target = $region3
  $region8: #{tpu_custom_call.1} parent=0 // loop_exit
    _

</llo_original>
